<compile_context>
chip_gen: v6e
topology: v6e:2x2x1
jax: 0.10.0
libtpu: 0.0.40
codegen_flags: <defaults>
</compile_context>

<pallas_src>
import functools
import math

import jax
import jax.numpy as jnp
import numpy as np
from jax.experimental import pallas as pl
from jax.experimental.pallas import tpu as pltpu


def _round_up(x, m):
    return ((x + m - 1) // m) * m


# ----------------------------------------------------------------------------
# Fused bidirectional GRU kernel: relu(x+bias) -> input GEMM -> recurrence
# ----------------------------------------------------------------------------
def gru_bidir_kernel(xf_ref, xr_ref, h0_ref, rb_ref, wih_ref, bih_ref, whh_ref,
                     bhn_ref, of_ref, or_ref, h_scr, gi_scr,
                     *, chunk, hp, bp, pad, mxu_dtype):
    """One grid step processes `chunk` time steps of BOTH directions.

    xf_ref : (chunk*Bp, Hp)      node rows, times [t*chunk, (t+1)*chunk)          (fwd)
    xr_ref : (chunk*Bp, Hp)      node rows, times [(n-1-t)*chunk, (n-t)*chunk)    (rev)
    h0_ref : (Bp, Hp)            shared initial hidden state
    rb_ref : (1, Hp)             relu bias (the module's self.bias)
    wih_ref: (2, Hp, 3*Hp)       input->gate weights  [r|z|n] per direction
    bih_ref: (2, 1, 3*Hp)        b_ih with b_hr/b_hz folded in
    whh_ref: (2, Hp, 3*Hp)       hidden->gate weights
    bhn_ref: (2, 1, Hp)          b_hn (applied inside r * (.))
    of_ref : (chunk*Bp, Hp)      forward outputs, original time order
    or_ref : (chunk*Bp, Hp)      reverse outputs, original time order
    h_scr  : (2, Bp, Hp)         carried hidden state (persists across grid steps)
    gi_scr : (2, chunk*Bp, 3*Hp) this chunk's input gates (VMEM scratch)
    """
    pid = pl.program_id(0)

    @pl.when(pid == 0)
    def _():
        h_scr[0] = h0_ref[...]
        h_scr[1] = h0_ref[...]

    rb = rb_ref[...]                                           # (1, Hp)

    # Fused message = relu(x + bias) and input GEMM (big M = chunk*Bp fills the MXU).
    for d, x_ref in ((0, xf_ref), (1, xr_ref)):
        m = jnp.maximum(x_ref[...] + rb, 0.0)
        gi_scr[d] = (
            jnp.dot(m.astype(mxu_dtype), wih_ref[d],
                    preferred_element_type=jnp.float32) + bih_ref[d])

    # Recurrence: d-outer / c-inner, h carried in registers, one h_scr store per chunk.
    for d, o_ref in ((0, of_ref), (1, or_ref)):
        h = h_scr[d]                                           # (Bp, Hp)
        whh = whh_ref[d]                                       # (Hp, 3*Hp), hoisted
        b_hn = bhn_ref[d]                                      # (1, Hp), hoisted
        order = range(chunk) if d == 0 else range(chunk - 1, -1, -1)
        for c in order:
            r0, r1 = c * bp, (c + 1) * bp                      # static row slice
            gh = jnp.dot(h.astype(mxu_dtype), whh,
                         preferred_element_type=jnp.float32)   # (Bp, 3*Hp)
            r = jax.nn.sigmoid(gi_scr[d, r0:r1, :hp] + gh[:, :hp])
            z = jax.nn.sigmoid(gi_scr[d, r0:r1, hp:2 * hp] + gh[:, hp:2 * hp])
            n = jnp.tanh(gi_scr[d, r0:r1, 2 * hp:] + r * (gh[:, 2 * hp:] + b_hn))
            h_new = (1.0 - z) * n + z * h
            o_ref[r0:r1, :] = h_new.astype(o_ref.dtype)
            if d == 1 and c >= chunk - pad:
                # The reverse scan hits the Tp-T chunk-padding time steps FIRST, and
                # only at grid step 0; they must not update the carried state.
                keep = (pid > 0).astype(jnp.float32)
                h = keep * h_new + (1.0 - keep) * h
            else:
                h = h_new
        h_scr[d] = h


# ----------------------------------------------------------------------------
# Parameter packing (lane-padded, gate-fused, biases pre-folded)
# ----------------------------------------------------------------------------
def _fuse_w(w3, H, Hp):
    W = jnp.zeros((Hp, 3 * Hp), jnp.float32)
    for g in range(3):
        W = W.at[:H, g * Hp:g * Hp + H].set(w3[g])
    return W


def _fuse_b(b3, H, Hp):
    b = jnp.zeros((3 * Hp,), jnp.float32)
    for g in range(3):
        b = b.at[g * Hp:g * Hp + H].set(b3[g])
    return b


def _prepare_params(params, H, Hp, mxu_dtype):
    wih, bih, whh, bhn = [], [], [], []
    for k in ("fwd", "rev"):
        pd = params[k]
        bi = _fuse_b(pd["bih"], H, Hp)
        bh = _fuse_b(pd["bhh"], H, Hp)
        wih.append(_fuse_w(pd["wih"], H, Hp))
        whh.append(_fuse_w(pd["whh"], H, Hp))
        # b_hr / b_hz commute with the r/z sums -> fold into the input bias;
        # b_hn must stay separate (it sits inside r * (W_hn h + b_hn)).
        bih.append(bi.at[:2 * Hp].add(bh[:2 * Hp]))
        bhn.append(bh[2 * Hp:])
    return {
        "wih": jnp.stack(wih).astype(mxu_dtype),     # (2, Hp, 3*Hp)
        "bih": jnp.stack(bih)[:, None, :],           # (2, 1, 3*Hp)  (f32)
        "whh": jnp.stack(whh).astype(mxu_dtype),     # (2, Hp, 3*Hp)
        "bhn": jnp.stack(bhn)[:, None, :],           # (2, 1, Hp)    (f32)
    }


# ----------------------------------------------------------------------------
# Forward pass
# ----------------------------------------------------------------------------
def batch_gru_forward(node, a_scope, bias, params, *, chunk=8,
                      mxu_dtype=jnp.float32):
    N, H = node.shape
    B = len(a_scope)
    T = max(sz for _, sz in a_scope)

    Hp = _round_up(H, 128)       # lane-dense hidden (300 -> 384 in production)
    Bp = _round_up(B, 8)         # sublane-dense batch
    Tp = _round_up(T, chunk)
    nchunks = Tp // chunk
    pad_t = Tp - T

    p = _prepare_params(params, H, Hp, mxu_dtype)
    rb = jnp.zeros((1, Hp), jnp.float32).at[0, :H].set(bias)

    # Pack segments time-major into (Tp*Bp, Hp) with ONE gather from node.  Padded
    # (t, b) slots point at a sentinel row chosen so that relu(sentinel + bias) == 0,
    # reproducing the reference's zero-padded message without a separate HBM pass.
    gather_idx = np.full((Tp, Bp), N, dtype=np.int32)
    seg_ids = np.full((N,), B, dtype=np.int32)
    for b, (start, size) in enumerate(a_scope):
        gather_idx[:size, b] = np.arange(start, start + size, dtype=np.int32)
        seg_ids[start:start + size] = b
    node_p = jnp.full((N + 1, Hp), -1e9, jnp.float32)
    node_p = node_p.at[:N, :].set(0.0).at[:N, :H].set(node)
    x2d = node_p[jnp.asarray(gather_idx.reshape(-1))]           # (Tp*Bp, Hp)

    h0 = jax.ops.segment_max(node, jnp.asarray(seg_ids), num_segments=B + 1)[:B]
    h0_p = jnp.zeros((Bp, Hp), jnp.float32).at[:B, :H].set(h0)

    blk = (chunk * Bp, Hp)
    kern = functools.partial(gru_bidir_kernel, chunk=chunk, hp=Hp, bp=Bp,
                             pad=pad_t, mxu_dtype=mxu_dtype)
    out_f, out_r = pl.pallas_call(
        kern,
        out_shape=(jax.ShapeDtypeStruct((Tp * Bp, Hp), jnp.float32),
                   jax.ShapeDtypeStruct((Tp * Bp, Hp), jnp.float32)),
        grid_spec=pltpu.PrefetchScalarGridSpec(
            num_scalar_prefetch=0,
            grid=(nchunks,),
            in_specs=[
                pl.BlockSpec(blk, lambda t: (t, 0)),                  # x, fwd order
                pl.BlockSpec(blk, lambda t: (nchunks - 1 - t, 0)),    # x, rev order
                pl.BlockSpec((Bp, Hp), lambda t: (0, 0)),             # h0
                pl.BlockSpec((1, Hp), lambda t: (0, 0)),              # relu bias
                pl.BlockSpec((2, Hp, 3 * Hp), lambda t: (0, 0, 0)),   # W_ih
                pl.BlockSpec((2, 1, 3 * Hp), lambda t: (0, 0, 0)),    # b_ih (+b_hr,b_hz)
                pl.BlockSpec((2, Hp, 3 * Hp), lambda t: (0, 0, 0)),   # W_hh
                pl.BlockSpec((2, 1, Hp), lambda t: (0, 0, 0)),        # b_hn
            ],
            out_specs=[
                pl.BlockSpec(blk, lambda t: (t, 0)),                  # fwd out
                pl.BlockSpec(blk, lambda t: (nchunks - 1 - t, 0)),    # rev out (orig order)
            ],
            scratch_shapes=[
                pltpu.VMEM((2, Bp, Hp), jnp.float32),                 # carried hidden
                pltpu.VMEM((2, chunk * Bp, 3 * Hp), jnp.float32),     # chunk input gates
            ],
        ),
        compiler_params=pltpu.CompilerParams(
            dimension_semantics=("arbitrary",)),     # recurrence is serial in time
    )(x2d, x2d, h0_p, rb, p["wih"], p["bih"], p["whh"], p["bhn"])

    # Gather the kept (b, t) rows straight from the padded, lane-dense outputs.
    keep = np.concatenate(
        [np.arange(size, dtype=np.int32) * Bp + b
         for b, (_, size) in enumerate(a_scope)])
    keep = jnp.asarray(keep)
    cur = jnp.concatenate([out_f[keep][:, :H], out_r[keep][:, :H]], axis=1)

    head = jnp.maximum(node[0:1] + bias[None, :], 0.0)          # the single pad-atom row
    return jnp.concatenate([jnp.concatenate([head, head], axis=1), cur], axis=0)


# ----------------------------------------------------------------------------
# Pure-JAX reference (correctness check only)
# ----------------------------------------------------------------------------
def _gru_dir_ref(x_tbh, h0, wih, whh, bih, bhh):
    def step(h, x):
        gi_r = x @ wih[0] + bih[0]
        gi_z = x @ wih[1] + bih[1]
        gi_n = x @ wih[2] + bih[2]
        gh_r = h @ whh[0] + bhh[0]
        gh_z = h @ whh[1] + bhh[1]
        gh_n = h @ whh[2] + bhh[2]
        r = jax.nn.sigmoid(gi_r + gh_r)
        z = jax.nn.sigmoid(gi_z + gh_z)
        n = jnp.tanh(gi_n + r * gh_n)
        h_new = (1.0 - z) * n + z * h
        return h_new, h_new
    _, hs = jax.lax.scan(step, h0, x_tbh)
    return hs


def batch_gru_reference(node, a_scope, bias, params):
    N, H = node.shape
    message = jnp.maximum(node + bias[None, :], 0.0)
    B = len(a_scope)
    T = max(sz for _, sz in a_scope)
    segs, h0s = [], []
    for start, size in a_scope:
        segs.append(jnp.pad(message[start:start + size], ((0, T - size), (0, 0))))
        h0s.append(jnp.max(node[start:start + size], axis=0))
    x_tbh = jnp.transpose(jnp.stack(segs, 0), (1, 0, 2))
    h0 = jnp.stack(h0s, 0)
    pf, pr = params["fwd"], params["rev"]
    out_f = _gru_dir_ref(x_tbh, h0, pf["wih"], pf["whh"], pf["bih"], pf["bhh"])
    out_r = _gru_dir_ref(x_tbh[::-1], h0, pr["wih"], pr["whh"], pr["bih"], pr["bhh"])[::-1]
    out = jnp.transpose(jnp.concatenate([out_f, out_r], axis=-1), (1, 0, 2))
    unpad = [out[i, :size] for i, (_, size) in enumerate(a_scope)]
    cur_message_unpadding = jnp.concatenate(unpad, axis=0)
    head = jnp.concatenate([message[0:1], message[0:1]], axis=1)
    return jnp.concatenate([head, cur_message_unpadding], axis=0)


# ----------------------------------------------------------------------------
# Main
# ----------------------------------------------------------------------------
if __name__ == "__main__":
    H = 32                                   # hidden_size (300 in the original module)
    a_scope = [(1, 5), (6, 3), (9, 11)]      # (start, size); row 0 is the pad atom; T=11
    N = 1 + sum(sz for _, sz in a_scope)     # 20 rows total

    key = jax.random.PRNGKey(0)
    keys = jax.random.split(key, 10)
    bound = 1.0 / math.sqrt(H)

    def u(k, shape):
        return jax.random.uniform(k, shape, jnp.float32, -bound, bound)

    node = jax.random.normal(keys[0], (N, H), jnp.float32)
    bias = u(keys[1], (H,))

    params = {
        "fwd": {"wih": u(keys[2], (3, H, H)), "whh": u(keys[3], (3, H, H)),
                "bih": u(keys[4], (3, H)),    "bhh": u(keys[5], (3, H))},
        "rev": {"wih": u(keys[6], (3, H, H)), "whh": u(keys[7], (3, H, H)),
                "bih": u(keys[8], (3, H)),    "bhh": u(keys[9], (3, H))},
    }

    ref = jax.block_until_ready(batch_gru_reference(node, a_scope, bias, params))

    # chunk=8 -> Tp=16, 2 chunks, 5 padded reverse steps; chunk=4 -> 3 chunks, 1 padded.
    for chunk in (8, 4):
        fwd_fn = jax.jit(
            lambda n, b, p, c=chunk: batch_gru_forward(n, a_scope, b, p, chunk=c))
        out = jax.block_until_ready(fwd_fn(node, bias, params))
        assert out.shape == (N, 2 * H), out.shape
        max_err = float(jnp.max(jnp.abs(out - ref)))
        assert max_err < 1e-3, f"chunk={chunk} max abs error {max_err}"

    print("KERNEL_OK")
</pallas_src>

<mosaic_0001>
module attributes {stable_mosaic.version = 11 : i64} {
  func.func @gru_bidir_kernel(%arg0: i32, %arg1: memref<64x128xf32, #tpu.memory_space<vmem>>, %arg2: memref<64x128xf32, #tpu.memory_space<vmem>>, %arg3: memref<8x128xf32, #tpu.memory_space<vmem>>, %arg4: memref<1x128xf32, #tpu.memory_space<vmem>>, %arg5: memref<2x128x384xf32, #tpu.memory_space<vmem>>, %arg6: memref<2x1x384xf32, #tpu.memory_space<vmem>>, %arg7: memref<2x128x384xf32, #tpu.memory_space<vmem>>, %arg8: memref<2x1x128xf32, #tpu.memory_space<vmem>>, %arg9: memref<64x128xf32, #tpu.memory_space<vmem>>, %arg10: memref<64x128xf32, #tpu.memory_space<vmem>>, %arg11: memref<2x8x128xf32, #tpu.memory_space<vmem>>, %arg12: memref<2x64x384xf32, #tpu.memory_space<vmem>>) attributes {dimension_semantics = [#tpu.dimension_semantics<arbitrary>], iteration_bounds = array<i64: 2>, scalar_prefetch = 0 : i64, scratch_operands = 2 : i64, tpu.core_type = #tpu.core_type<tc>, window_params = [{transform_indices = @transform_0, window_bounds = array<i64: 64, 128>}, {transform_indices = @transform_1, window_bounds = array<i64: 64, 128>}, {pipeline_mode = #tpu.pipeline_mode<synchronous>, transform_indices = @transform_2, window_bounds = array<i64: 8, 128>}, {pipeline_mode = #tpu.pipeline_mode<synchronous>, transform_indices = @transform_3, window_bounds = array<i64: 1, 128>}, {pipeline_mode = #tpu.pipeline_mode<synchronous>, transform_indices = @transform_4, window_bounds = array<i64: 2, 128, 384>}, {pipeline_mode = #tpu.pipeline_mode<synchronous>, transform_indices = @transform_5, window_bounds = array<i64: 2, 1, 384>}, {pipeline_mode = #tpu.pipeline_mode<synchronous>, transform_indices = @transform_6, window_bounds = array<i64: 2, 128, 384>}, {pipeline_mode = #tpu.pipeline_mode<synchronous>, transform_indices = @transform_7, window_bounds = array<i64: 2, 1, 128>}, {transform_indices = @transform_8, window_bounds = array<i64: 64, 128>}, {transform_indices = @transform_9, window_bounds = array<i64: 64, 128>}]} {
    %c0_i32 = arith.constant 0 : i32
    %0 = arith.cmpi eq, %arg0, %c0_i32 : i32
    %1 = arith.extui %0 : i1 to i32
    %c0_i32_0 = arith.constant 0 : i32
    %2 = arith.cmpi ne, %1, %c0_i32_0 : i32
    scf.if %2 {
      %c0_291 = arith.constant 0 : index
      %c0_292 = arith.constant 0 : index
      %625 = vector.load %arg3[%c0_291, %c0_292] : memref<8x128xf32, #tpu.memory_space<vmem>>, vector<8x128xf32>
      %c0_293 = arith.constant 0 : index
      %c0_294 = arith.constant 0 : index
      %c0_295 = arith.constant 0 : index
      %626 = vector.load %arg11[%c0_293, %c0_294, %c0_295] : memref<2x8x128xf32, #tpu.memory_space<vmem>>, vector<1x8x128xf32>
      %627 = vector.shape_cast %626 : vector<1x8x128xf32> to vector<8x128xf32>
      %628 = vector.shape_cast %625 : vector<8x128xf32> to vector<1x8x128xf32>
      tpu.vector_store %arg11[%c0_293, %c0_294, %c0_295], %628 {strides = array<i32>} : memref<2x8x128xf32, #tpu.memory_space<vmem>>, vector<1x8x128xf32>,
      %c0_296 = arith.constant 0 : index
      %c0_297 = arith.constant 0 : index
      %629 = vector.load %arg3[%c0_296, %c0_297] : memref<8x128xf32, #tpu.memory_space<vmem>>, vector<8x128xf32>
      %c1_298 = arith.constant 1 : index
      %c0_299 = arith.constant 0 : index
      %c0_300 = arith.constant 0 : index
      %630 = vector.load %arg11[%c1_298, %c0_299, %c0_300] : memref<2x8x128xf32, #tpu.memory_space<vmem>>, vector<1x8x128xf32>
      %631 = vector.shape_cast %630 : vector<1x8x128xf32> to vector<8x128xf32>
      %632 = vector.shape_cast %629 : vector<8x128xf32> to vector<1x8x128xf32>
      tpu.vector_store %arg11[%c1_298, %c0_299, %c0_300], %632 {strides = array<i32>} : memref<2x8x128xf32, #tpu.memory_space<vmem>>, vector<1x8x128xf32>,
    } else {
    }
    %c0 = arith.constant 0 : index
    %c0_1 = arith.constant 0 : index
    %3 = vector.load %arg4[%c0, %c0_1] : memref<1x128xf32, #tpu.memory_space<vmem>>, vector<1x128xf32>
    %c0_2 = arith.constant 0 : index
    %c0_3 = arith.constant 0 : index
    %4 = vector.load %arg1[%c0_2, %c0_3] : memref<64x128xf32, #tpu.memory_space<vmem>>, vector<64x128xf32>
    %5 = vector.broadcast %3 : vector<1x128xf32> to vector<64x128xf32>
    %6 = arith.addf %4, %5 : vector<64x128xf32>
    %cst = arith.constant 0.000000e+00 : f32
    %7 = vector.broadcast %cst : f32 to vector<64x128xf32>
    %8 = arith.maximumf %6, %7 : vector<64x128xf32>
    %c0_4 = arith.constant 0 : index
    %c0_5 = arith.constant 0 : index
    %c0_6 = arith.constant 0 : index
    %9 = vector.load %arg5[%c0_4, %c0_5, %c0_6] : memref<2x128x384xf32, #tpu.memory_space<vmem>>, vector<1x128x384xf32>
    %10 = vector.shape_cast %9 : vector<1x128x384xf32> to vector<128x384xf32>
    %cst_7 = arith.constant dense<0.000000e+00> : vector<64x384xf32>
    %11 = tpu.matmul %8, %10, %cst_7 {dimension_numbers = #tpu.dot_dimension_numbers<[1], [0], [0], [1], [0, 0, 1, 1], [], []>} : vector<64x128xf32>, vector<128x384xf32>, vector<64x384xf32> -> vector<64x384xf32>
    %c0_8 = arith.constant 0 : index
    %c0_9 = arith.constant 0 : index
    %c0_10 = arith.constant 0 : index
    %12 = vector.load %arg6[%c0_8, %c0_9, %c0_10] : memref<2x1x384xf32, #tpu.memory_space<vmem>>, vector<1x1x384xf32>
    %13 = vector.shape_cast %12 : vector<1x1x384xf32> to vector<1x384xf32>
    %14 = vector.broadcast %13 : vector<1x384xf32> to vector<64x384xf32>
    %15 = arith.addf %11, %14 : vector<64x384xf32>
    %c0_11 = arith.constant 0 : index
    %c0_12 = arith.constant 0 : index
    %c0_13 = arith.constant 0 : index
    %16 = vector.load %arg12[%c0_11, %c0_12, %c0_13] : memref<2x64x384xf32, #tpu.memory_space<vmem>>, vector<1x64x384xf32>
    %17 = vector.shape_cast %16 : vector<1x64x384xf32> to vector<64x384xf32>
    %18 = vector.shape_cast %15 : vector<64x384xf32> to vector<1x64x384xf32>
    tpu.vector_store %arg12[%c0_11, %c0_12, %c0_13], %18 {strides = array<i32>} : memref<2x64x384xf32, #tpu.memory_space<vmem>>, vector<1x64x384xf32>,
    %c0_14 = arith.constant 0 : index
    %c0_15 = arith.constant 0 : index
    %19 = vector.load %arg2[%c0_14, %c0_15] : memref<64x128xf32, #tpu.memory_space<vmem>>, vector<64x128xf32>
    %20 = vector.broadcast %3 : vector<1x128xf32> to vector<64x128xf32>
    %21 = arith.addf %19, %20 : vector<64x128xf32>
    %cst_16 = arith.constant 0.000000e+00 : f32
    %22 = vector.broadcast %cst_16 : f32 to vector<64x128xf32>
    %23 = arith.maximumf %21, %22 : vector<64x128xf32>
    %c1 = arith.constant 1 : index
    %c0_17 = arith.constant 0 : index
    %c0_18 = arith.constant 0 : index
    %24 = vector.load %arg5[%c1, %c0_17, %c0_18] : memref<2x128x384xf32, #tpu.memory_space<vmem>>, vector<1x128x384xf32>
    %25 = vector.shape_cast %24 : vector<1x128x384xf32> to vector<128x384xf32>
    %cst_19 = arith.constant dense<0.000000e+00> : vector<64x384xf32>
    %26 = tpu.matmul %23, %25, %cst_19 {dimension_numbers = #tpu.dot_dimension_numbers<[1], [0], [0], [1], [0, 0, 1, 1], [], []>} : vector<64x128xf32>, vector<128x384xf32>, vector<64x384xf32> -> vector<64x384xf32>
    %c1_20 = arith.constant 1 : index
    %c0_21 = arith.constant 0 : index
    %c0_22 = arith.constant 0 : index
    %27 = vector.load %arg6[%c1_20, %c0_21, %c0_22] : memref<2x1x384xf32, #tpu.memory_space<vmem>>, vector<1x1x384xf32>
    %28 = vector.shape_cast %27 : vector<1x1x384xf32> to vector<1x384xf32>
    %29 = vector.broadcast %28 : vector<1x384xf32> to vector<64x384xf32>
    %30 = arith.addf %26, %29 : vector<64x384xf32>
    %c1_23 = arith.constant 1 : index
    %c0_24 = arith.constant 0 : index
    %c0_25 = arith.constant 0 : index
    %31 = vector.load %arg12[%c1_23, %c0_24, %c0_25] : memref<2x64x384xf32, #tpu.memory_space<vmem>>, vector<1x64x384xf32>
    %32 = vector.shape_cast %31 : vector<1x64x384xf32> to vector<64x384xf32>
    %33 = vector.shape_cast %30 : vector<64x384xf32> to vector<1x64x384xf32>
    tpu.vector_store %arg12[%c1_23, %c0_24, %c0_25], %33 {strides = array<i32>} : memref<2x64x384xf32, #tpu.memory_space<vmem>>, vector<1x64x384xf32>,
    %c0_26 = arith.constant 0 : index
    %c0_27 = arith.constant 0 : index
    %c0_28 = arith.constant 0 : index
    %34 = vector.load %arg11[%c0_26, %c0_27, %c0_28] : memref<2x8x128xf32, #tpu.memory_space<vmem>>, vector<1x8x128xf32>
    %35 = vector.shape_cast %34 : vector<1x8x128xf32> to vector<8x128xf32>
    %c0_29 = arith.constant 0 : index
    %c0_30 = arith.constant 0 : index
    %c0_31 = arith.constant 0 : index
    %36 = vector.load %arg7[%c0_29, %c0_30, %c0_31] : memref<2x128x384xf32, #tpu.memory_space<vmem>>, vector<1x128x384xf32>
    %37 = vector.shape_cast %36 : vector<1x128x384xf32> to vector<128x384xf32>
    %c0_32 = arith.constant 0 : index
    %c0_33 = arith.constant 0 : index
    %c0_34 = arith.constant 0 : index
    %38 = vector.load %arg8[%c0_32, %c0_33, %c0_34] : memref<2x1x128xf32, #tpu.memory_space<vmem>>, vector<1x1x128xf32>
    %39 = vector.shape_cast %38 : vector<1x1x128xf32> to vector<1x128xf32>
    %cst_35 = arith.constant dense<0.000000e+00> : vector<8x384xf32>
    %40 = tpu.matmul %35, %37, %cst_35 {dimension_numbers = #tpu.dot_dimension_numbers<[1], [0], [0], [1], [0, 0, 1, 1], [], []>} : vector<8x128xf32>, vector<128x384xf32>, vector<8x384xf32> -> vector<8x384xf32>
    %c0_36 = arith.constant 0 : index
    %c0_37 = arith.constant 0 : index
    %c0_38 = arith.constant 0 : index
    %41 = vector.load %arg12[%c0_36, %c0_37, %c0_38] : memref<2x64x384xf32, #tpu.memory_space<vmem>>, vector<1x8x128xf32>
    %42 = vector.shape_cast %41 : vector<1x8x128xf32> to vector<8x128xf32>
    %43 = vector.extract_strided_slice %40 {offsets = [0, 0], sizes = [8, 128], strides = [1, 1]} : vector<8x384xf32> to vector<8x128xf32>
    %44 = arith.addf %42, %43 : vector<8x128xf32>
    %45 = arith.negf %44 : vector<8x128xf32>
    %46 = math.exp %45 : vector<8x128xf32>
    %cst_39 = arith.constant 1.000000e+00 : f32
    %47 = vector.broadcast %cst_39 : f32 to vector<8x128xf32>
    %48 = arith.addf %47, %46 : vector<8x128xf32>
    %49 = arith.divf %47, %48 : vector<8x128xf32>
    %c0_40 = arith.constant 0 : index
    %c0_41 = arith.constant 0 : index
    %c128 = arith.constant 128 : index
    %50 = vector.load %arg12[%c0_40, %c0_41, %c128] : memref<2x64x384xf32, #tpu.memory_space<vmem>>, vector<1x8x128xf32>
    %51 = vector.shape_cast %50 : vector<1x8x128xf32> to vector<8x128xf32>
    %52 = vector.extract_strided_slice %40 {offsets = [0, 128], sizes = [8, 128], strides = [1, 1]} : vector<8x384xf32> to vector<8x128xf32>
    %53 = arith.addf %51, %52 : vector<8x128xf32>
    %54 = arith.negf %53 : vector<8x128xf32>
    %55 = math.exp %54 : vector<8x128xf32>
    %cst_42 = arith.constant 1.000000e+00 : f32
    %56 = vector.broadcast %cst_42 : f32 to vector<8x128xf32>
    %57 = arith.addf %56, %55 : vector<8x128xf32>
    %58 = arith.divf %56, %57 : vector<8x128xf32>
    %c0_43 = arith.constant 0 : index
    %c0_44 = arith.constant 0 : index
    %c256 = arith.constant 256 : index
    %59 = vector.load %arg12[%c0_43, %c0_44, %c256] : memref<2x64x384xf32, #tpu.memory_space<vmem>>, vector<1x8x128xf32>
    %60 = vector.shape_cast %59 : vector<1x8x128xf32> to vector<8x128xf32>
    %61 = vector.extract_strided_slice %40 {offsets = [0, 256], sizes = [8, 128], strides = [1, 1]} : vector<8x384xf32> to vector<8x128xf32>
    %62 = vector.broadcast %39 : vector<1x128xf32> to vector<8x128xf32>
    %63 = arith.addf %61, %62 : vector<8x128xf32>
    %64 = arith.mulf %49, %63 : vector<8x128xf32>
    %65 = arith.addf %60, %64 : vector<8x128xf32>
    %66 = math.tanh %65 : vector<8x128xf32>
    %cst_45 = arith.constant 1.000000e+00 : f32
    %67 = vector.broadcast %cst_45 : f32 to vector<8x128xf32>
    %68 = arith.subf %67, %58 : vector<8x128xf32>
    %69 = arith.mulf %68, %66 : vector<8x128xf32>
    %70 = arith.mulf %58, %35 : vector<8x128xf32>
    %71 = arith.addf %69, %70 : vector<8x128xf32>
    %c0_46 = arith.constant 0 : index
    %c0_47 = arith.constant 0 : index
    %72 = vector.load %arg9[%c0_46, %c0_47] : memref<64x128xf32, #tpu.memory_space<vmem>>, vector<8x128xf32>
    tpu.vector_store %arg9[%c0_46, %c0_47], %71 {strides = array<i32>} : memref<64x128xf32, #tpu.memory_space<vmem>>, vector<8x128xf32>,
    %cst_48 = arith.constant dense<0.000000e+00> : vector<8x384xf32>
    %73 = tpu.matmul %71, %37, %cst_48 {dimension_numbers = #tpu.dot_dimension_numbers<[1], [0], [0], [1], [0, 0, 1, 1], [], []>} : vector<8x128xf32>, vector<128x384xf32>, vector<8x384xf32> -> vector<8x384xf32>
    %c0_49 = arith.constant 0 : index
    %c8 = arith.constant 8 : index
    %c0_50 = arith.constant 0 : index
    %74 = vector.load %arg12[%c0_49, %c8, %c0_50] : memref<2x64x384xf32, #tpu.memory_space<vmem>>, vector<1x8x128xf32>
    %75 = vector.shape_cast %74 : vector<1x8x128xf32> to vector<8x128xf32>
    %76 = vector.extract_strided_slice %73 {offsets = [0, 0], sizes = [8, 128], strides = [1, 1]} : vector<8x384xf32> to vector<8x128xf32>
    %77 = arith.addf %75, %76 : vector<8x128xf32>
    %78 = arith.negf %77 : vector<8x128xf32>
    %79 = math.exp %78 : vector<8x128xf32>
    %cst_51 = arith.constant 1.000000e+00 : f32
    %80 = vector.broadcast %cst_51 : f32 to vector<8x128xf32>
    %81 = arith.addf %80, %79 : vector<8x128xf32>
    %82 = arith.divf %80, %81 : vector<8x128xf32>
    %c0_52 = arith.constant 0 : index
    %c8_53 = arith.constant 8 : index
    %c128_54 = arith.constant 128 : index
    %83 = vector.load %arg12[%c0_52, %c8_53, %c128_54] : memref<2x64x384xf32, #tpu.memory_space<vmem>>, vector<1x8x128xf32>
    %84 = vector.shape_cast %83 : vector<1x8x128xf32> to vector<8x128xf32>
    %85 = vector.extract_strided_slice %73 {offsets = [0, 128], sizes = [8, 128], strides = [1, 1]} : vector<8x384xf32> to vector<8x128xf32>
    %86 = arith.addf %84, %85 : vector<8x128xf32>
    %87 = arith.negf %86 : vector<8x128xf32>
    %88 = math.exp %87 : vector<8x128xf32>
    %cst_55 = arith.constant 1.000000e+00 : f32
    %89 = vector.broadcast %cst_55 : f32 to vector<8x128xf32>
    %90 = arith.addf %89, %88 : vector<8x128xf32>
    %91 = arith.divf %89, %90 : vector<8x128xf32>
    %c0_56 = arith.constant 0 : index
    %c8_57 = arith.constant 8 : index
    %c256_58 = arith.constant 256 : index
    %92 = vector.load %arg12[%c0_56, %c8_57, %c256_58] : memref<2x64x384xf32, #tpu.memory_space<vmem>>, vector<1x8x128xf32>
    %93 = vector.shape_cast %92 : vector<1x8x128xf32> to vector<8x128xf32>
    %94 = vector.extract_strided_slice %73 {offsets = [0, 256], sizes = [8, 128], strides = [1, 1]} : vector<8x384xf32> to vector<8x128xf32>
    %95 = vector.broadcast %39 : vector<1x128xf32> to vector<8x128xf32>
    %96 = arith.addf %94, %95 : vector<8x128xf32>
    %97 = arith.mulf %82, %96 : vector<8x128xf32>
    %98 = arith.addf %93, %97 : vector<8x128xf32>
    %99 = math.tanh %98 : vector<8x128xf32>
    %cst_59 = arith.constant 1.000000e+00 : f32
    %100 = vector.broadcast %cst_59 : f32 to vector<8x128xf32>
    %101 = arith.subf %100, %91 : vector<8x128xf32>
    %102 = arith.mulf %101, %99 : vector<8x128xf32>
    %103 = arith.mulf %91, %71 : vector<8x128xf32>
    %104 = arith.addf %102, %103 : vector<8x128xf32>
    %c8_60 = arith.constant 8 : index
    %c0_61 = arith.constant 0 : index
    %105 = vector.load %arg9[%c8_60, %c0_61] : memref<64x128xf32, #tpu.memory_space<vmem>>, vector<8x128xf32>
    tpu.vector_store %arg9[%c8_60, %c0_61], %104 {strides = array<i32>} : memref<64x128xf32, #tpu.memory_space<vmem>>, vector<8x128xf32>,
    %cst_62 = arith.constant dense<0.000000e+00> : vector<8x384xf32>
    %106 = tpu.matmul %104, %37, %cst_62 {dimension_numbers = #tpu.dot_dimension_numbers<[1], [0], [0], [1], [0, 0, 1, 1], [], []>} : vector<8x128xf32>, vector<128x384xf32>, vector<8x384xf32> -> vector<8x384xf32>
    %c0_63 = arith.constant 0 : index
    %c16 = arith.constant 16 : index
    %c0_64 = arith.constant 0 : index
    %107 = vector.load %arg12[%c0_63, %c16, %c0_64] : memref<2x64x384xf32, #tpu.memory_space<vmem>>, vector<1x8x128xf32>
    %108 = vector.shape_cast %107 : vector<1x8x128xf32> to vector<8x128xf32>
    %109 = vector.extract_strided_slice %106 {offsets = [0, 0], sizes = [8, 128], strides = [1, 1]} : vector<8x384xf32> to vector<8x128xf32>
    %110 = arith.addf %108, %109 : vector<8x128xf32>
    %111 = arith.negf %110 : vector<8x128xf32>
    %112 = math.exp %111 : vector<8x128xf32>
    %cst_65 = arith.constant 1.000000e+00 : f32
    %113 = vector.broadcast %cst_65 : f32 to vector<8x128xf32>
    %114 = arith.addf %113, %112 : vector<8x128xf32>
    %115 = arith.divf %113, %114 : vector<8x128xf32>
    %c0_66 = arith.constant 0 : index
    %c16_67 = arith.constant 16 : index
    %c128_68 = arith.constant 128 : index
    %116 = vector.load %arg12[%c0_66, %c16_67, %c128_68] : memref<2x64x384xf32, #tpu.memory_space<vmem>>, vector<1x8x128xf32>
    %117 = vector.shape_cast %116 : vector<1x8x128xf32> to vector<8x128xf32>
    %118 = vector.extract_strided_slice %106 {offsets = [0, 128], sizes = [8, 128], strides = [1, 1]} : vector<8x384xf32> to vector<8x128xf32>
    %119 = arith.addf %117, %118 : vector<8x128xf32>
    %120 = arith.negf %119 : vector<8x128xf32>
    %121 = math.exp %120 : vector<8x128xf32>
    %cst_69 = arith.constant 1.000000e+00 : f32
    %122 = vector.broadcast %cst_69 : f32 to vector<8x128xf32>
    %123 = arith.addf %122, %121 : vector<8x128xf32>
    %124 = arith.divf %122, %123 : vector<8x128xf32>
    %c0_70 = arith.constant 0 : index
    %c16_71 = arith.constant 16 : index
    %c256_72 = arith.constant 256 : index
    %125 = vector.load %arg12[%c0_70, %c16_71, %c256_72] : memref<2x64x384xf32, #tpu.memory_space<vmem>>, vector<1x8x128xf32>
    %126 = vector.shape_cast %125 : vector<1x8x128xf32> to vector<8x128xf32>
    %127 = vector.extract_strided_slice %106 {offsets = [0, 256], sizes = [8, 128], strides = [1, 1]} : vector<8x384xf32> to vector<8x128xf32>
    %128 = vector.broadcast %39 : vector<1x128xf32> to vector<8x128xf32>
    %129 = arith.addf %127, %128 : vector<8x128xf32>
    %130 = arith.mulf %115, %129 : vector<8x128xf32>
    %131 = arith.addf %126, %130 : vector<8x128xf32>
    %132 = math.tanh %131 : vector<8x128xf32>
    %cst_73 = arith.constant 1.000000e+00 : f32
    %133 = vector.broadcast %cst_73 : f32 to vector<8x128xf32>
    %134 = arith.subf %133, %124 : vector<8x128xf32>
    %135 = arith.mulf %134, %132 : vector<8x128xf32>
    %136 = arith.mulf %124, %104 : vector<8x128xf32>
    %137 = arith.addf %135, %136 : vector<8x128xf32>
    %c16_74 = arith.constant 16 : index
    %c0_75 = arith.constant 0 : index
    %138 = vector.load %arg9[%c16_74, %c0_75] : memref<64x128xf32, #tpu.memory_space<vmem>>, vector<8x128xf32>
    tpu.vector_store %arg9[%c16_74, %c0_75], %137 {strides = array<i32>} : memref<64x128xf32, #tpu.memory_space<vmem>>, vector<8x128xf32>,
    %cst_76 = arith.constant dense<0.000000e+00> : vector<8x384xf32>
    %139 = tpu.matmul %137, %37, %cst_76 {dimension_numbers = #tpu.dot_dimension_numbers<[1], [0], [0], [1], [0, 0, 1, 1], [], []>} : vector<8x128xf32>, vector<128x384xf32>, vector<8x384xf32> -> vector<8x384xf32>
    %c0_77 = arith.constant 0 : index
    %c24 = arith.constant 24 : index
    %c0_78 = arith.constant 0 : index
    %140 = vector.load %arg12[%c0_77, %c24, %c0_78] : memref<2x64x384xf32, #tpu.memory_space<vmem>>, vector<1x8x128xf32>
    %141 = vector.shape_cast %140 : vector<1x8x128xf32> to vector<8x128xf32>
    %142 = vector.extract_strided_slice %139 {offsets = [0, 0], sizes = [8, 128], strides = [1, 1]} : vector<8x384xf32> to vector<8x128xf32>
    %143 = arith.addf %141, %142 : vector<8x128xf32>
    %144 = arith.negf %143 : vector<8x128xf32>
    %145 = math.exp %144 : vector<8x128xf32>
    %cst_79 = arith.constant 1.000000e+00 : f32
    %146 = vector.broadcast %cst_79 : f32 to vector<8x128xf32>
    %147 = arith.addf %146, %145 : vector<8x128xf32>
    %148 = arith.divf %146, %147 : vector<8x128xf32>
    %c0_80 = arith.constant 0 : index
    %c24_81 = arith.constant 24 : index
    %c128_82 = arith.constant 128 : index
    %149 = vector.load %arg12[%c0_80, %c24_81, %c128_82] : memref<2x64x384xf32, #tpu.memory_space<vmem>>, vector<1x8x128xf32>
    %150 = vector.shape_cast %149 : vector<1x8x128xf32> to vector<8x128xf32>
    %151 = vector.extract_strided_slice %139 {offsets = [0, 128], sizes = [8, 128], strides = [1, 1]} : vector<8x384xf32> to vector<8x128xf32>
    %152 = arith.addf %150, %151 : vector<8x128xf32>
    %153 = arith.negf %152 : vector<8x128xf32>
    %154 = math.exp %153 : vector<8x128xf32>
    %cst_83 = arith.constant 1.000000e+00 : f32
    %155 = vector.broadcast %cst_83 : f32 to vector<8x128xf32>
    %156 = arith.addf %155, %154 : vector<8x128xf32>
    %157 = arith.divf %155, %156 : vector<8x128xf32>
    %c0_84 = arith.constant 0 : index
    %c24_85 = arith.constant 24 : index
    %c256_86 = arith.constant 256 : index
    %158 = vector.load %arg12[%c0_84, %c24_85, %c256_86] : memref<2x64x384xf32, #tpu.memory_space<vmem>>, vector<1x8x128xf32>
    %159 = vector.shape_cast %158 : vector<1x8x128xf32> to vector<8x128xf32>
    %160 = vector.extract_strided_slice %139 {offsets = [0, 256], sizes = [8, 128], strides = [1, 1]} : vector<8x384xf32> to vector<8x128xf32>
    %161 = vector.broadcast %39 : vector<1x128xf32> to vector<8x128xf32>
    %162 = arith.addf %160, %161 : vector<8x128xf32>
    %163 = arith.mulf %148, %162 : vector<8x128xf32>
    %164 = arith.addf %159, %163 : vector<8x128xf32>
    %165 = math.tanh %164 : vector<8x128xf32>
    %cst_87 = arith.constant 1.000000e+00 : f32
    %166 = vector.broadcast %cst_87 : f32 to vector<8x128xf32>
    %167 = arith.subf %166, %157 : vector<8x128xf32>
    %168 = arith.mulf %167, %165 : vector<8x128xf32>
    %169 = arith.mulf %157, %137 : vector<8x128xf32>
    %170 = arith.addf %168, %169 : vector<8x128xf32>
    %c24_88 = arith.constant 24 : index
    %c0_89 = arith.constant 0 : index
    %171 = vector.load %arg9[%c24_88, %c0_89] : memref<64x128xf32, #tpu.memory_space<vmem>>, vector<8x128xf32>
    tpu.vector_store %arg9[%c24_88, %c0_89], %170 {strides = array<i32>} : memref<64x128xf32, #tpu.memory_space<vmem>>, vector<8x128xf32>,
    %cst_90 = arith.constant dense<0.000000e+00> : vector<8x384xf32>
    %172 = tpu.matmul %170, %37, %cst_90 {dimension_numbers = #tpu.dot_dimension_numbers<[1], [0], [0], [1], [0, 0, 1, 1], [], []>} : vector<8x128xf32>, vector<128x384xf32>, vector<8x384xf32> -> vector<8x384xf32>
    %c0_91 = arith.constant 0 : index
    %c32 = arith.constant 32 : index
    %c0_92 = arith.constant 0 : index
    %173 = vector.load %arg12[%c0_91, %c32, %c0_92] : memref<2x64x384xf32, #tpu.memory_space<vmem>>, vector<1x8x128xf32>
    %174 = vector.shape_cast %173 : vector<1x8x128xf32> to vector<8x128xf32>
    %175 = vector.extract_strided_slice %172 {offsets = [0, 0], sizes = [8, 128], strides = [1, 1]} : vector<8x384xf32> to vector<8x128xf32>
    %176 = arith.addf %174, %175 : vector<8x128xf32>
    %177 = arith.negf %176 : vector<8x128xf32>
    %178 = math.exp %177 : vector<8x128xf32>
    %cst_93 = arith.constant 1.000000e+00 : f32
    %179 = vector.broadcast %cst_93 : f32 to vector<8x128xf32>
    %180 = arith.addf %179, %178 : vector<8x128xf32>
    %181 = arith.divf %179, %180 : vector<8x128xf32>
    %c0_94 = arith.constant 0 : index
    %c32_95 = arith.constant 32 : index
    %c128_96 = arith.constant 128 : index
    %182 = vector.load %arg12[%c0_94, %c32_95, %c128_96] : memref<2x64x384xf32, #tpu.memory_space<vmem>>, vector<1x8x128xf32>
    %183 = vector.shape_cast %182 : vector<1x8x128xf32> to vector<8x128xf32>
    %184 = vector.extract_strided_slice %172 {offsets = [0, 128], sizes = [8, 128], strides = [1, 1]} : vector<8x384xf32> to vector<8x128xf32>
    %185 = arith.addf %183, %184 : vector<8x128xf32>
    %186 = arith.negf %185 : vector<8x128xf32>
    %187 = math.exp %186 : vector<8x128xf32>
    %cst_97 = arith.constant 1.000000e+00 : f32
    %188 = vector.broadcast %cst_97 : f32 to vector<8x128xf32>
    %189 = arith.addf %188, %187 : vector<8x128xf32>
    %190 = arith.divf %188, %189 : vector<8x128xf32>
    %c0_98 = arith.constant 0 : index
    %c32_99 = arith.constant 32 : index
    %c256_100 = arith.constant 256 : index
    %191 = vector.load %arg12[%c0_98, %c32_99, %c256_100] : memref<2x64x384xf32, #tpu.memory_space<vmem>>, vector<1x8x128xf32>
    %192 = vector.shape_cast %191 : vector<1x8x128xf32> to vector<8x128xf32>
    %193 = vector.extract_strided_slice %172 {offsets = [0, 256], sizes = [8, 128], strides = [1, 1]} : vector<8x384xf32> to vector<8x128xf32>
    %194 = vector.broadcast %39 : vector<1x128xf32> to vector<8x128xf32>
    %195 = arith.addf %193, %194 : vector<8x128xf32>
    %196 = arith.mulf %181, %195 : vector<8x128xf32>
    %197 = arith.addf %192, %196 : vector<8x128xf32>
    %198 = math.tanh %197 : vector<8x128xf32>
    %cst_101 = arith.constant 1.000000e+00 : f32
    %199 = vector.broadcast %cst_101 : f32 to vector<8x128xf32>
    %200 = arith.subf %199, %190 : vector<8x128xf32>
    %201 = arith.mulf %200, %198 : vector<8x128xf32>
    %202 = arith.mulf %190, %170 : vector<8x128xf32>
    %203 = arith.addf %201, %202 : vector<8x128xf32>
    %c32_102 = arith.constant 32 : index
    %c0_103 = arith.constant 0 : index
    %204 = vector.load %arg9[%c32_102, %c0_103] : memref<64x128xf32, #tpu.memory_space<vmem>>, vector<8x128xf32>
    tpu.vector_store %arg9[%c32_102, %c0_103], %203 {strides = array<i32>} : memref<64x128xf32, #tpu.memory_space<vmem>>, vector<8x128xf32>,
    %cst_104 = arith.constant dense<0.000000e+00> : vector<8x384xf32>
    %205 = tpu.matmul %203, %37, %cst_104 {dimension_numbers = #tpu.dot_dimension_numbers<[1], [0], [0], [1], [0, 0, 1, 1], [], []>} : vector<8x128xf32>, vector<128x384xf32>, vector<8x384xf32> -> vector<8x384xf32>
    %c0_105 = arith.constant 0 : index
    %c40 = arith.constant 40 : index
    %c0_106 = arith.constant 0 : index
    %206 = vector.load %arg12[%c0_105, %c40, %c0_106] : memref<2x64x384xf32, #tpu.memory_space<vmem>>, vector<1x8x128xf32>
    %207 = vector.shape_cast %206 : vector<1x8x128xf32> to vector<8x128xf32>
    %208 = vector.extract_strided_slice %205 {offsets = [0, 0], sizes = [8, 128], strides = [1, 1]} : vector<8x384xf32> to vector<8x128xf32>
    %209 = arith.addf %207, %208 : vector<8x128xf32>
    %210 = arith.negf %209 : vector<8x128xf32>
    %211 = math.exp %210 : vector<8x128xf32>
    %cst_107 = arith.constant 1.000000e+00 : f32
    %212 = vector.broadcast %cst_107 : f32 to vector<8x128xf32>
    %213 = arith.addf %212, %211 : vector<8x128xf32>
    %214 = arith.divf %212, %213 : vector<8x128xf32>
    %c0_108 = arith.constant 0 : index
    %c40_109 = arith.constant 40 : index
    %c128_110 = arith.constant 128 : index
    %215 = vector.load %arg12[%c0_108, %c40_109, %c128_110] : memref<2x64x384xf32, #tpu.memory_space<vmem>>, vector<1x8x128xf32>
    %216 = vector.shape_cast %215 : vector<1x8x128xf32> to vector<8x128xf32>
    %217 = vector.extract_strided_slice %205 {offsets = [0, 128], sizes = [8, 128], strides = [1, 1]} : vector<8x384xf32> to vector<8x128xf32>
    %218 = arith.addf %216, %217 : vector<8x128xf32>
    %219 = arith.negf %218 : vector<8x128xf32>
    %220 = math.exp %219 : vector<8x128xf32>
    %cst_111 = arith.constant 1.000000e+00 : f32
    %221 = vector.broadcast %cst_111 : f32 to vector<8x128xf32>
    %222 = arith.addf %221, %220 : vector<8x128xf32>
    %223 = arith.divf %221, %222 : vector<8x128xf32>
    %c0_112 = arith.constant 0 : index
    %c40_113 = arith.constant 40 : index
    %c256_114 = arith.constant 256 : index
    %224 = vector.load %arg12[%c0_112, %c40_113, %c256_114] : memref<2x64x384xf32, #tpu.memory_space<vmem>>, vector<1x8x128xf32>
    %225 = vector.shape_cast %224 : vector<1x8x128xf32> to vector<8x128xf32>
    %226 = vector.extract_strided_slice %205 {offsets = [0, 256], sizes = [8, 128], strides = [1, 1]} : vector<8x384xf32> to vector<8x128xf32>
    %227 = vector.broadcast %39 : vector<1x128xf32> to vector<8x128xf32>
    %228 = arith.addf %226, %227 : vector<8x128xf32>
    %229 = arith.mulf %214, %228 : vector<8x128xf32>
    %230 = arith.addf %225, %229 : vector<8x128xf32>
    %231 = math.tanh %230 : vector<8x128xf32>
    %cst_115 = arith.constant 1.000000e+00 : f32
    %232 = vector.broadcast %cst_115 : f32 to vector<8x128xf32>
    %233 = arith.subf %232, %223 : vector<8x128xf32>
    %234 = arith.mulf %233, %231 : vector<8x128xf32>
    %235 = arith.mulf %223, %203 : vector<8x128xf32>
    %236 = arith.addf %234, %235 : vector<8x128xf32>
    %c40_116 = arith.constant 40 : index
    %c0_117 = arith.constant 0 : index
    %237 = vector.load %arg9[%c40_116, %c0_117] : memref<64x128xf32, #tpu.memory_space<vmem>>, vector<8x128xf32>
    tpu.vector_store %arg9[%c40_116, %c0_117], %236 {strides = array<i32>} : memref<64x128xf32, #tpu.memory_space<vmem>>, vector<8x128xf32>,
    %cst_118 = arith.constant dense<0.000000e+00> : vector<8x384xf32>
    %238 = tpu.matmul %236, %37, %cst_118 {dimension_numbers = #tpu.dot_dimension_numbers<[1], [0], [0], [1], [0, 0, 1, 1], [], []>} : vector<8x128xf32>, vector<128x384xf32>, vector<8x384xf32> -> vector<8x384xf32>
    %c0_119 = arith.constant 0 : index
    %c48 = arith.constant 48 : index
    %c0_120 = arith.constant 0 : index
    %239 = vector.load %arg12[%c0_119, %c48, %c0_120] : memref<2x64x384xf32, #tpu.memory_space<vmem>>, vector<1x8x128xf32>
    %240 = vector.shape_cast %239 : vector<1x8x128xf32> to vector<8x128xf32>
    %241 = vector.extract_strided_slice %238 {offsets = [0, 0], sizes = [8, 128], strides = [1, 1]} : vector<8x384xf32> to vector<8x128xf32>
    %242 = arith.addf %240, %241 : vector<8x128xf32>
    %243 = arith.negf %242 : vector<8x128xf32>
    %244 = math.exp %243 : vector<8x128xf32>
    %cst_121 = arith.constant 1.000000e+00 : f32
    %245 = vector.broadcast %cst_121 : f32 to vector<8x128xf32>
    %246 = arith.addf %245, %244 : vector<8x128xf32>
    %247 = arith.divf %245, %246 : vector<8x128xf32>
    %c0_122 = arith.constant 0 : index
    %c48_123 = arith.constant 48 : index
    %c128_124 = arith.constant 128 : index
    %248 = vector.load %arg12[%c0_122, %c48_123, %c128_124] : memref<2x64x384xf32, #tpu.memory_space<vmem>>, vector<1x8x128xf32>
    %249 = vector.shape_cast %248 : vector<1x8x128xf32> to vector<8x128xf32>
    %250 = vector.extract_strided_slice %238 {offsets = [0, 128], sizes = [8, 128], strides = [1, 1]} : vector<8x384xf32> to vector<8x128xf32>
    %251 = arith.addf %249, %250 : vector<8x128xf32>
    %252 = arith.negf %251 : vector<8x128xf32>
    %253 = math.exp %252 : vector<8x128xf32>
    %cst_125 = arith.constant 1.000000e+00 : f32
    %254 = vector.broadcast %cst_125 : f32 to vector<8x128xf32>
    %255 = arith.addf %254, %253 : vector<8x128xf32>
    %256 = arith.divf %254, %255 : vector<8x128xf32>
    %c0_126 = arith.constant 0 : index
    %c48_127 = arith.constant 48 : index
    %c256_128 = arith.constant 256 : index
    %257 = vector.load %arg12[%c0_126, %c48_127, %c256_128] : memref<2x64x384xf32, #tpu.memory_space<vmem>>, vector<1x8x128xf32>
    %258 = vector.shape_cast %257 : vector<1x8x128xf32> to vector<8x128xf32>
    %259 = vector.extract_strided_slice %238 {offsets = [0, 256], sizes = [8, 128], strides = [1, 1]} : vector<8x384xf32> to vector<8x128xf32>
    %260 = vector.broadcast %39 : vector<1x128xf32> to vector<8x128xf32>
    %261 = arith.addf %259, %260 : vector<8x128xf32>
    %262 = arith.mulf %247, %261 : vector<8x128xf32>
    %263 = arith.addf %258, %262 : vector<8x128xf32>
    %264 = math.tanh %263 : vector<8x128xf32>
    %cst_129 = arith.constant 1.000000e+00 : f32
    %265 = vector.broadcast %cst_129 : f32 to vector<8x128xf32>
    %266 = arith.subf %265, %256 : vector<8x128xf32>
    %267 = arith.mulf %266, %264 : vector<8x128xf32>
    %268 = arith.mulf %256, %236 : vector<8x128xf32>
    %269 = arith.addf %267, %268 : vector<8x128xf32>
    %c48_130 = arith.constant 48 : index
    %c0_131 = arith.constant 0 : index
    %270 = vector.load %arg9[%c48_130, %c0_131] : memref<64x128xf32, #tpu.memory_space<vmem>>, vector<8x128xf32>
    tpu.vector_store %arg9[%c48_130, %c0_131], %269 {strides = array<i32>} : memref<64x128xf32, #tpu.memory_space<vmem>>, vector<8x128xf32>,
    %cst_132 = arith.constant dense<0.000000e+00> : vector<8x384xf32>
    %271 = tpu.matmul %269, %37, %cst_132 {dimension_numbers = #tpu.dot_dimension_numbers<[1], [0], [0], [1], [0, 0, 1, 1], [], []>} : vector<8x128xf32>, vector<128x384xf32>, vector<8x384xf32> -> vector<8x384xf32>
    %c0_133 = arith.constant 0 : index
    %c56 = arith.constant 56 : index
    %c0_134 = arith.constant 0 : index
    %272 = vector.load %arg12[%c0_133, %c56, %c0_134] : memref<2x64x384xf32, #tpu.memory_space<vmem>>, vector<1x8x128xf32>
    %273 = vector.shape_cast %272 : vector<1x8x128xf32> to vector<8x128xf32>
    %274 = vector.extract_strided_slice %271 {offsets = [0, 0], sizes = [8, 128], strides = [1, 1]} : vector<8x384xf32> to vector<8x128xf32>
    %275 = arith.addf %273, %274 : vector<8x128xf32>
    %276 = arith.negf %275 : vector<8x128xf32>
    %277 = math.exp %276 : vector<8x128xf32>
    %cst_135 = arith.constant 1.000000e+00 : f32
    %278 = vector.broadcast %cst_135 : f32 to vector<8x128xf32>
    %279 = arith.addf %278, %277 : vector<8x128xf32>
    %280 = arith.divf %278, %279 : vector<8x128xf32>
    %c0_136 = arith.constant 0 : index
    %c56_137 = arith.constant 56 : index
    %c128_138 = arith.constant 128 : index
    %281 = vector.load %arg12[%c0_136, %c56_137, %c128_138] : memref<2x64x384xf32, #tpu.memory_space<vmem>>, vector<1x8x128xf32>
    %282 = vector.shape_cast %281 : vector<1x8x128xf32> to vector<8x128xf32>
    %283 = vector.extract_strided_slice %271 {offsets = [0, 128], sizes = [8, 128], strides = [1, 1]} : vector<8x384xf32> to vector<8x128xf32>
    %284 = arith.addf %282, %283 : vector<8x128xf32>
    %285 = arith.negf %284 : vector<8x128xf32>
    %286 = math.exp %285 : vector<8x128xf32>
    %cst_139 = arith.constant 1.000000e+00 : f32
    %287 = vector.broadcast %cst_139 : f32 to vector<8x128xf32>
    %288 = arith.addf %287, %286 : vector<8x128xf32>
    %289 = arith.divf %287, %288 : vector<8x128xf32>
    %c0_140 = arith.constant 0 : index
    %c56_141 = arith.constant 56 : index
    %c256_142 = arith.constant 256 : index
    %290 = vector.load %arg12[%c0_140, %c56_141, %c256_142] : memref<2x64x384xf32, #tpu.memory_space<vmem>>, vector<1x8x128xf32>
    %291 = vector.shape_cast %290 : vector<1x8x128xf32> to vector<8x128xf32>
    %292 = vector.extract_strided_slice %271 {offsets = [0, 256], sizes = [8, 128], strides = [1, 1]} : vector<8x384xf32> to vector<8x128xf32>
    %293 = vector.broadcast %39 : vector<1x128xf32> to vector<8x128xf32>
    %294 = arith.addf %292, %293 : vector<8x128xf32>
    %295 = arith.mulf %280, %294 : vector<8x128xf32>
    %296 = arith.addf %291, %295 : vector<8x128xf32>
    %297 = math.tanh %296 : vector<8x128xf32>
    %cst_143 = arith.constant 1.000000e+00 : f32
    %298 = vector.broadcast %cst_143 : f32 to vector<8x128xf32>
    %299 = arith.subf %298, %289 : vector<8x128xf32>
    %300 = arith.mulf %299, %297 : vector<8x128xf32>
    %301 = arith.mulf %289, %269 : vector<8x128xf32>
    %302 = arith.addf %300, %301 : vector<8x128xf32>
    %c56_144 = arith.constant 56 : index
    %c0_145 = arith.constant 0 : index
    %303 = vector.load %arg9[%c56_144, %c0_145] : memref<64x128xf32, #tpu.memory_space<vmem>>, vector<8x128xf32>
    tpu.vector_store %arg9[%c56_144, %c0_145], %302 {strides = array<i32>} : memref<64x128xf32, #tpu.memory_space<vmem>>, vector<8x128xf32>,
    %c0_146 = arith.constant 0 : index
    %c0_147 = arith.constant 0 : index
    %c0_148 = arith.constant 0 : index
    %304 = vector.load %arg11[%c0_146, %c0_147, %c0_148] : memref<2x8x128xf32, #tpu.memory_space<vmem>>, vector<1x8x128xf32>
    %305 = vector.shape_cast %304 : vector<1x8x128xf32> to vector<8x128xf32>
    %306 = vector.shape_cast %302 : vector<8x128xf32> to vector<1x8x128xf32>
    tpu.vector_store %arg11[%c0_146, %c0_147, %c0_148], %306 {strides = array<i32>} : memref<2x8x128xf32, #tpu.memory_space<vmem>>, vector<1x8x128xf32>,
    %c1_149 = arith.constant 1 : index
    %c0_150 = arith.constant 0 : index
    %c0_151 = arith.constant 0 : index
    %307 = vector.load %arg11[%c1_149, %c0_150, %c0_151] : memref<2x8x128xf32, #tpu.memory_space<vmem>>, vector<1x8x128xf32>
    %308 = vector.shape_cast %307 : vector<1x8x128xf32> to vector<8x128xf32>
    %c1_152 = arith.constant 1 : index
    %c0_153 = arith.constant 0 : index
    %c0_154 = arith.constant 0 : index
    %309 = vector.load %arg7[%c1_152, %c0_153, %c0_154] : memref<2x128x384xf32, #tpu.memory_space<vmem>>, vector<1x128x384xf32>
    %310 = vector.shape_cast %309 : vector<1x128x384xf32> to vector<128x384xf32>
    %c1_155 = arith.constant 1 : index
    %c0_156 = arith.constant 0 : index
    %c0_157 = arith.constant 0 : index
    %311 = vector.load %arg8[%c1_155, %c0_156, %c0_157] : memref<2x1x128xf32, #tpu.memory_space<vmem>>, vector<1x1x128xf32>
    %312 = vector.shape_cast %311 : vector<1x1x128xf32> to vector<1x128xf32>
    %cst_158 = arith.constant dense<0.000000e+00> : vector<8x384xf32>
    %313 = tpu.matmul %308, %310, %cst_158 {dimension_numbers = #tpu.dot_dimension_numbers<[1], [0], [0], [1], [0, 0, 1, 1], [], []>} : vector<8x128xf32>, vector<128x384xf32>, vector<8x384xf32> -> vector<8x384xf32>
    %c1_159 = arith.constant 1 : index
    %c56_160 = arith.constant 56 : index
    %c0_161 = arith.constant 0 : index
    %314 = vector.load %arg12[%c1_159, %c56_160, %c0_161] : memref<2x64x384xf32, #tpu.memory_space<vmem>>, vector<1x8x128xf32>
    %315 = vector.shape_cast %314 : vector<1x8x128xf32> to vector<8x128xf32>
    %316 = vector.extract_strided_slice %313 {offsets = [0, 0], sizes = [8, 128], strides = [1, 1]} : vector<8x384xf32> to vector<8x128xf32>
    %317 = arith.addf %315, %316 : vector<8x128xf32>
    %318 = arith.negf %317 : vector<8x128xf32>
    %319 = math.exp %318 : vector<8x128xf32>
    %cst_162 = arith.constant 1.000000e+00 : f32
    %320 = vector.broadcast %cst_162 : f32 to vector<8x128xf32>
    %321 = arith.addf %320, %319 : vector<8x128xf32>
    %322 = arith.divf %320, %321 : vector<8x128xf32>
    %c1_163 = arith.constant 1 : index
    %c56_164 = arith.constant 56 : index
    %c128_165 = arith.constant 128 : index
    %323 = vector.load %arg12[%c1_163, %c56_164, %c128_165] : memref<2x64x384xf32, #tpu.memory_space<vmem>>, vector<1x8x128xf32>
    %324 = vector.shape_cast %323 : vector<1x8x128xf32> to vector<8x128xf32>
    %325 = vector.extract_strided_slice %313 {offsets = [0, 128], sizes = [8, 128], strides = [1, 1]} : vector<8x384xf32> to vector<8x128xf32>
    %326 = arith.addf %324, %325 : vector<8x128xf32>
    %327 = arith.negf %326 : vector<8x128xf32>
    %328 = math.exp %327 : vector<8x128xf32>
    %cst_166 = arith.constant 1.000000e+00 : f32
    %329 = vector.broadcast %cst_166 : f32 to vector<8x128xf32>
    %330 = arith.addf %329, %328 : vector<8x128xf32>
    %331 = arith.divf %329, %330 : vector<8x128xf32>
    %c1_167 = arith.constant 1 : index
    %c56_168 = arith.constant 56 : index
    %c256_169 = arith.constant 256 : index
    %332 = vector.load %arg12[%c1_167, %c56_168, %c256_169] : memref<2x64x384xf32, #tpu.memory_space<vmem>>, vector<1x8x128xf32>
    %333 = vector.shape_cast %332 : vector<1x8x128xf32> to vector<8x128xf32>
    %334 = vector.extract_strided_slice %313 {offsets = [0, 256], sizes = [8, 128], strides = [1, 1]} : vector<8x384xf32> to vector<8x128xf32>
    %335 = vector.broadcast %312 : vector<1x128xf32> to vector<8x128xf32>
    %336 = arith.addf %334, %335 : vector<8x128xf32>
    %337 = arith.mulf %322, %336 : vector<8x128xf32>
    %338 = arith.addf %333, %337 : vector<8x128xf32>
    %339 = math.tanh %338 : vector<8x128xf32>
    %cst_170 = arith.constant 1.000000e+00 : f32
    %340 = vector.broadcast %cst_170 : f32 to vector<8x128xf32>
    %341 = arith.subf %340, %331 : vector<8x128xf32>
    %342 = arith.mulf %341, %339 : vector<8x128xf32>
    %343 = arith.mulf %331, %308 : vector<8x128xf32>
    %344 = arith.addf %342, %343 : vector<8x128xf32>
    %c56_171 = arith.constant 56 : index
    %c0_172 = arith.constant 0 : index
    %345 = vector.load %arg10[%c56_171, %c0_172] : memref<64x128xf32, #tpu.memory_space<vmem>>, vector<8x128xf32>
    tpu.vector_store %arg10[%c56_171, %c0_172], %344 {strides = array<i32>} : memref<64x128xf32, #tpu.memory_space<vmem>>, vector<8x128xf32>,
    %c0_i32_173 = arith.constant 0 : i32
    %346 = arith.cmpi sgt, %arg0, %c0_i32_173 : i32
    %347 = arith.extui %346 : i1 to i32
    %348 = arith.sitofp %347 : i32 to f32
    %349 = vector.broadcast %348 : f32 to vector<8x128xf32>
    %350 = arith.mulf %349, %344 : vector<8x128xf32>
    %cst_174 = arith.constant 1.000000e+00 : f32
    %351 = arith.subf %cst_174, %348 : f32
    %352 = vector.broadcast %351 : f32 to vector<8x128xf32>
    %353 = arith.mulf %352, %308 : vector<8x128xf32>
    %354 = arith.addf %350, %353 : vector<8x128xf32>
    %cst_175 = arith.constant dense<0.000000e+00> : vector<8x384xf32>
    %355 = tpu.matmul %354, %310, %cst_175 {dimension_numbers = #tpu.dot_dimension_numbers<[1], [0], [0], [1], [0, 0, 1, 1], [], []>} : vector<8x128xf32>, vector<128x384xf32>, vector<8x384xf32> -> vector<8x384xf32>
    %c1_176 = arith.constant 1 : index
    %c48_177 = arith.constant 48 : index
    %c0_178 = arith.constant 0 : index
    %356 = vector.load %arg12[%c1_176, %c48_177, %c0_178] : memref<2x64x384xf32, #tpu.memory_space<vmem>>, vector<1x8x128xf32>
    %357 = vector.shape_cast %356 : vector<1x8x128xf32> to vector<8x128xf32>
    %358 = vector.extract_strided_slice %355 {offsets = [0, 0], sizes = [8, 128], strides = [1, 1]} : vector<8x384xf32> to vector<8x128xf32>
    %359 = arith.addf %357, %358 : vector<8x128xf32>
    %360 = arith.negf %359 : vector<8x128xf32>
    %361 = math.exp %360 : vector<8x128xf32>
    %cst_179 = arith.constant 1.000000e+00 : f32
    %362 = vector.broadcast %cst_179 : f32 to vector<8x128xf32>
    %363 = arith.addf %362, %361 : vector<8x128xf32>
    %364 = arith.divf %362, %363 : vector<8x128xf32>
    %c1_180 = arith.constant 1 : index
    %c48_181 = arith.constant 48 : index
    %c128_182 = arith.constant 128 : index
    %365 = vector.load %arg12[%c1_180, %c48_181, %c128_182] : memref<2x64x384xf32, #tpu.memory_space<vmem>>, vector<1x8x128xf32>
    %366 = vector.shape_cast %365 : vector<1x8x128xf32> to vector<8x128xf32>
    %367 = vector.extract_strided_slice %355 {offsets = [0, 128], sizes = [8, 128], strides = [1, 1]} : vector<8x384xf32> to vector<8x128xf32>
    %368 = arith.addf %366, %367 : vector<8x128xf32>
    %369 = arith.negf %368 : vector<8x128xf32>
    %370 = math.exp %369 : vector<8x128xf32>
    %cst_183 = arith.constant 1.000000e+00 : f32
    %371 = vector.broadcast %cst_183 : f32 to vector<8x128xf32>
    %372 = arith.addf %371, %370 : vector<8x128xf32>
    %373 = arith.divf %371, %372 : vector<8x128xf32>
    %c1_184 = arith.constant 1 : index
    %c48_185 = arith.constant 48 : index
    %c256_186 = arith.constant 256 : index
    %374 = vector.load %arg12[%c1_184, %c48_185, %c256_186] : memref<2x64x384xf32, #tpu.memory_space<vmem>>, vector<1x8x128xf32>
    %375 = vector.shape_cast %374 : vector<1x8x128xf32> to vector<8x128xf32>
    %376 = vector.extract_strided_slice %355 {offsets = [0, 256], sizes = [8, 128], strides = [1, 1]} : vector<8x384xf32> to vector<8x128xf32>
    %377 = vector.broadcast %312 : vector<1x128xf32> to vector<8x128xf32>
    %378 = arith.addf %376, %377 : vector<8x128xf32>
    %379 = arith.mulf %364, %378 : vector<8x128xf32>
    %380 = arith.addf %375, %379 : vector<8x128xf32>
    %381 = math.tanh %380 : vector<8x128xf32>
    %cst_187 = arith.constant 1.000000e+00 : f32
    %382 = vector.broadcast %cst_187 : f32 to vector<8x128xf32>
    %383 = arith.subf %382, %373 : vector<8x128xf32>
    %384 = arith.mulf %383, %381 : vector<8x128xf32>
    %385 = arith.mulf %373, %354 : vector<8x128xf32>
    %386 = arith.addf %384, %385 : vector<8x128xf32>
    %c48_188 = arith.constant 48 : index
    %c0_189 = arith.constant 0 : index
    %387 = vector.load %arg10[%c48_188, %c0_189] : memref<64x128xf32, #tpu.memory_space<vmem>>, vector<8x128xf32>
    tpu.vector_store %arg10[%c48_188, %c0_189], %386 {strides = array<i32>} : memref<64x128xf32, #tpu.memory_space<vmem>>, vector<8x128xf32>,
    %c0_i32_190 = arith.constant 0 : i32
    %388 = arith.cmpi sgt, %arg0, %c0_i32_190 : i32
    %389 = arith.extui %388 : i1 to i32
    %390 = arith.sitofp %389 : i32 to f32
    %391 = vector.broadcast %390 : f32 to vector<8x128xf32>
    %392 = arith.mulf %391, %386 : vector<8x128xf32>
    %cst_191 = arith.constant 1.000000e+00 : f32
    %393 = arith.subf %cst_191, %390 : f32
    %394 = vector.broadcast %393 : f32 to vector<8x128xf32>
    %395 = arith.mulf %394, %354 : vector<8x128xf32>
    %396 = arith.addf %392, %395 : vector<8x128xf32>
    %cst_192 = arith.constant dense<0.000000e+00> : vector<8x384xf32>
    %397 = tpu.matmul %396, %310, %cst_192 {dimension_numbers = #tpu.dot_dimension_numbers<[1], [0], [0], [1], [0, 0, 1, 1], [], []>} : vector<8x128xf32>, vector<128x384xf32>, vector<8x384xf32> -> vector<8x384xf32>
    %c1_193 = arith.constant 1 : index
    %c40_194 = arith.constant 40 : index
    %c0_195 = arith.constant 0 : index
    %398 = vector.load %arg12[%c1_193, %c40_194, %c0_195] : memref<2x64x384xf32, #tpu.memory_space<vmem>>, vector<1x8x128xf32>
    %399 = vector.shape_cast %398 : vector<1x8x128xf32> to vector<8x128xf32>
    %400 = vector.extract_strided_slice %397 {offsets = [0, 0], sizes = [8, 128], strides = [1, 1]} : vector<8x384xf32> to vector<8x128xf32>
    %401 = arith.addf %399, %400 : vector<8x128xf32>
    %402 = arith.negf %401 : vector<8x128xf32>
    %403 = math.exp %402 : vector<8x128xf32>
    %cst_196 = arith.constant 1.000000e+00 : f32
    %404 = vector.broadcast %cst_196 : f32 to vector<8x128xf32>
    %405 = arith.addf %404, %403 : vector<8x128xf32>
    %406 = arith.divf %404, %405 : vector<8x128xf32>
    %c1_197 = arith.constant 1 : index
    %c40_198 = arith.constant 40 : index
    %c128_199 = arith.constant 128 : index
    %407 = vector.load %arg12[%c1_197, %c40_198, %c128_199] : memref<2x64x384xf32, #tpu.memory_space<vmem>>, vector<1x8x128xf32>
    %408 = vector.shape_cast %407 : vector<1x8x128xf32> to vector<8x128xf32>
    %409 = vector.extract_strided_slice %397 {offsets = [0, 128], sizes = [8, 128], strides = [1, 1]} : vector<8x384xf32> to vector<8x128xf32>
    %410 = arith.addf %408, %409 : vector<8x128xf32>
    %411 = arith.negf %410 : vector<8x128xf32>
    %412 = math.exp %411 : vector<8x128xf32>
    %cst_200 = arith.constant 1.000000e+00 : f32
    %413 = vector.broadcast %cst_200 : f32 to vector<8x128xf32>
    %414 = arith.addf %413, %412 : vector<8x128xf32>
    %415 = arith.divf %413, %414 : vector<8x128xf32>
    %c1_201 = arith.constant 1 : index
    %c40_202 = arith.constant 40 : index
    %c256_203 = arith.constant 256 : index
    %416 = vector.load %arg12[%c1_201, %c40_202, %c256_203] : memref<2x64x384xf32, #tpu.memory_space<vmem>>, vector<1x8x128xf32>
    %417 = vector.shape_cast %416 : vector<1x8x128xf32> to vector<8x128xf32>
    %418 = vector.extract_strided_slice %397 {offsets = [0, 256], sizes = [8, 128], strides = [1, 1]} : vector<8x384xf32> to vector<8x128xf32>
    %419 = vector.broadcast %312 : vector<1x128xf32> to vector<8x128xf32>
    %420 = arith.addf %418, %419 : vector<8x128xf32>
    %421 = arith.mulf %406, %420 : vector<8x128xf32>
    %422 = arith.addf %417, %421 : vector<8x128xf32>
    %423 = math.tanh %422 : vector<8x128xf32>
    %cst_204 = arith.constant 1.000000e+00 : f32
    %424 = vector.broadcast %cst_204 : f32 to vector<8x128xf32>
    %425 = arith.subf %424, %415 : vector<8x128xf32>
    %426 = arith.mulf %425, %423 : vector<8x128xf32>
    %427 = arith.mulf %415, %396 : vector<8x128xf32>
    %428 = arith.addf %426, %427 : vector<8x128xf32>
    %c40_205 = arith.constant 40 : index
    %c0_206 = arith.constant 0 : index
    %429 = vector.load %arg10[%c40_205, %c0_206] : memref<64x128xf32, #tpu.memory_space<vmem>>, vector<8x128xf32>
    tpu.vector_store %arg10[%c40_205, %c0_206], %428 {strides = array<i32>} : memref<64x128xf32, #tpu.memory_space<vmem>>, vector<8x128xf32>,
    %c0_i32_207 = arith.constant 0 : i32
    %430 = arith.cmpi sgt, %arg0, %c0_i32_207 : i32
    %431 = arith.extui %430 : i1 to i32
    %432 = arith.sitofp %431 : i32 to f32
    %433 = vector.broadcast %432 : f32 to vector<8x128xf32>
    %434 = arith.mulf %433, %428 : vector<8x128xf32>
    %cst_208 = arith.constant 1.000000e+00 : f32
    %435 = arith.subf %cst_208, %432 : f32
    %436 = vector.broadcast %435 : f32 to vector<8x128xf32>
    %437 = arith.mulf %436, %396 : vector<8x128xf32>
    %438 = arith.addf %434, %437 : vector<8x128xf32>
    %cst_209 = arith.constant dense<0.000000e+00> : vector<8x384xf32>
    %439 = tpu.matmul %438, %310, %cst_209 {dimension_numbers = #tpu.dot_dimension_numbers<[1], [0], [0], [1], [0, 0, 1, 1], [], []>} : vector<8x128xf32>, vector<128x384xf32>, vector<8x384xf32> -> vector<8x384xf32>
    %c1_210 = arith.constant 1 : index
    %c32_211 = arith.constant 32 : index
    %c0_212 = arith.constant 0 : index
    %440 = vector.load %arg12[%c1_210, %c32_211, %c0_212] : memref<2x64x384xf32, #tpu.memory_space<vmem>>, vector<1x8x128xf32>
    %441 = vector.shape_cast %440 : vector<1x8x128xf32> to vector<8x128xf32>
    %442 = vector.extract_strided_slice %439 {offsets = [0, 0], sizes = [8, 128], strides = [1, 1]} : vector<8x384xf32> to vector<8x128xf32>
    %443 = arith.addf %441, %442 : vector<8x128xf32>
    %444 = arith.negf %443 : vector<8x128xf32>
    %445 = math.exp %444 : vector<8x128xf32>
    %cst_213 = arith.constant 1.000000e+00 : f32
    %446 = vector.broadcast %cst_213 : f32 to vector<8x128xf32>
    %447 = arith.addf %446, %445 : vector<8x128xf32>
    %448 = arith.divf %446, %447 : vector<8x128xf32>
    %c1_214 = arith.constant 1 : index
    %c32_215 = arith.constant 32 : index
    %c128_216 = arith.constant 128 : index
    %449 = vector.load %arg12[%c1_214, %c32_215, %c128_216] : memref<2x64x384xf32, #tpu.memory_space<vmem>>, vector<1x8x128xf32>
    %450 = vector.shape_cast %449 : vector<1x8x128xf32> to vector<8x128xf32>
    %451 = vector.extract_strided_slice %439 {offsets = [0, 128], sizes = [8, 128], strides = [1, 1]} : vector<8x384xf32> to vector<8x128xf32>
    %452 = arith.addf %450, %451 : vector<8x128xf32>
    %453 = arith.negf %452 : vector<8x128xf32>
    %454 = math.exp %453 : vector<8x128xf32>
    %cst_217 = arith.constant 1.000000e+00 : f32
    %455 = vector.broadcast %cst_217 : f32 to vector<8x128xf32>
    %456 = arith.addf %455, %454 : vector<8x128xf32>
    %457 = arith.divf %455, %456 : vector<8x128xf32>
    %c1_218 = arith.constant 1 : index
    %c32_219 = arith.constant 32 : index
    %c256_220 = arith.constant 256 : index
    %458 = vector.load %arg12[%c1_218, %c32_219, %c256_220] : memref<2x64x384xf32, #tpu.memory_space<vmem>>, vector<1x8x128xf32>
    %459 = vector.shape_cast %458 : vector<1x8x128xf32> to vector<8x128xf32>
    %460 = vector.extract_strided_slice %439 {offsets = [0, 256], sizes = [8, 128], strides = [1, 1]} : vector<8x384xf32> to vector<8x128xf32>
    %461 = vector.broadcast %312 : vector<1x128xf32> to vector<8x128xf32>
    %462 = arith.addf %460, %461 : vector<8x128xf32>
    %463 = arith.mulf %448, %462 : vector<8x128xf32>
    %464 = arith.addf %459, %463 : vector<8x128xf32>
    %465 = math.tanh %464 : vector<8x128xf32>
    %cst_221 = arith.constant 1.000000e+00 : f32
    %466 = vector.broadcast %cst_221 : f32 to vector<8x128xf32>
    %467 = arith.subf %466, %457 : vector<8x128xf32>
    %468 = arith.mulf %467, %465 : vector<8x128xf32>
    %469 = arith.mulf %457, %438 : vector<8x128xf32>
    %470 = arith.addf %468, %469 : vector<8x128xf32>
    %c32_222 = arith.constant 32 : index
    %c0_223 = arith.constant 0 : index
    %471 = vector.load %arg10[%c32_222, %c0_223] : memref<64x128xf32, #tpu.memory_space<vmem>>, vector<8x128xf32>
    tpu.vector_store %arg10[%c32_222, %c0_223], %470 {strides = array<i32>} : memref<64x128xf32, #tpu.memory_space<vmem>>, vector<8x128xf32>,
    %c0_i32_224 = arith.constant 0 : i32
    %472 = arith.cmpi sgt, %arg0, %c0_i32_224 : i32
    %473 = arith.extui %472 : i1 to i32
    %474 = arith.sitofp %473 : i32 to f32
    %475 = vector.broadcast %474 : f32 to vector<8x128xf32>
    %476 = arith.mulf %475, %470 : vector<8x128xf32>
    %cst_225 = arith.constant 1.000000e+00 : f32
    %477 = arith.subf %cst_225, %474 : f32
    %478 = vector.broadcast %477 : f32 to vector<8x128xf32>
    %479 = arith.mulf %478, %438 : vector<8x128xf32>
    %480 = arith.addf %476, %479 : vector<8x128xf32>
    %cst_226 = arith.constant dense<0.000000e+00> : vector<8x384xf32>
    %481 = tpu.matmul %480, %310, %cst_226 {dimension_numbers = #tpu.dot_dimension_numbers<[1], [0], [0], [1], [0, 0, 1, 1], [], []>} : vector<8x128xf32>, vector<128x384xf32>, vector<8x384xf32> -> vector<8x384xf32>
    %c1_227 = arith.constant 1 : index
    %c24_228 = arith.constant 24 : index
    %c0_229 = arith.constant 0 : index
    %482 = vector.load %arg12[%c1_227, %c24_228, %c0_229] : memref<2x64x384xf32, #tpu.memory_space<vmem>>, vector<1x8x128xf32>
    %483 = vector.shape_cast %482 : vector<1x8x128xf32> to vector<8x128xf32>
    %484 = vector.extract_strided_slice %481 {offsets = [0, 0], sizes = [8, 128], strides = [1, 1]} : vector<8x384xf32> to vector<8x128xf32>
    %485 = arith.addf %483, %484 : vector<8x128xf32>
    %486 = arith.negf %485 : vector<8x128xf32>
    %487 = math.exp %486 : vector<8x128xf32>
    %cst_230 = arith.constant 1.000000e+00 : f32
    %488 = vector.broadcast %cst_230 : f32 to vector<8x128xf32>
    %489 = arith.addf %488, %487 : vector<8x128xf32>
    %490 = arith.divf %488, %489 : vector<8x128xf32>
    %c1_231 = arith.constant 1 : index
    %c24_232 = arith.constant 24 : index
    %c128_233 = arith.constant 128 : index
    %491 = vector.load %arg12[%c1_231, %c24_232, %c128_233] : memref<2x64x384xf32, #tpu.memory_space<vmem>>, vector<1x8x128xf32>
    %492 = vector.shape_cast %491 : vector<1x8x128xf32> to vector<8x128xf32>
    %493 = vector.extract_strided_slice %481 {offsets = [0, 128], sizes = [8, 128], strides = [1, 1]} : vector<8x384xf32> to vector<8x128xf32>
    %494 = arith.addf %492, %493 : vector<8x128xf32>
    %495 = arith.negf %494 : vector<8x128xf32>
    %496 = math.exp %495 : vector<8x128xf32>
    %cst_234 = arith.constant 1.000000e+00 : f32
    %497 = vector.broadcast %cst_234 : f32 to vector<8x128xf32>
    %498 = arith.addf %497, %496 : vector<8x128xf32>
    %499 = arith.divf %497, %498 : vector<8x128xf32>
    %c1_235 = arith.constant 1 : index
    %c24_236 = arith.constant 24 : index
    %c256_237 = arith.constant 256 : index
    %500 = vector.load %arg12[%c1_235, %c24_236, %c256_237] : memref<2x64x384xf32, #tpu.memory_space<vmem>>, vector<1x8x128xf32>
    %501 = vector.shape_cast %500 : vector<1x8x128xf32> to vector<8x128xf32>
    %502 = vector.extract_strided_slice %481 {offsets = [0, 256], sizes = [8, 128], strides = [1, 1]} : vector<8x384xf32> to vector<8x128xf32>
    %503 = vector.broadcast %312 : vector<1x128xf32> to vector<8x128xf32>
    %504 = arith.addf %502, %503 : vector<8x128xf32>
    %505 = arith.mulf %490, %504 : vector<8x128xf32>
    %506 = arith.addf %501, %505 : vector<8x128xf32>
    %507 = math.tanh %506 : vector<8x128xf32>
    %cst_238 = arith.constant 1.000000e+00 : f32
    %508 = vector.broadcast %cst_238 : f32 to vector<8x128xf32>
    %509 = arith.subf %508, %499 : vector<8x128xf32>
    %510 = arith.mulf %509, %507 : vector<8x128xf32>
    %511 = arith.mulf %499, %480 : vector<8x128xf32>
    %512 = arith.addf %510, %511 : vector<8x128xf32>
    %c24_239 = arith.constant 24 : index
    %c0_240 = arith.constant 0 : index
    %513 = vector.load %arg10[%c24_239, %c0_240] : memref<64x128xf32, #tpu.memory_space<vmem>>, vector<8x128xf32>
    tpu.vector_store %arg10[%c24_239, %c0_240], %512 {strides = array<i32>} : memref<64x128xf32, #tpu.memory_space<vmem>>, vector<8x128xf32>,
    %c0_i32_241 = arith.constant 0 : i32
    %514 = arith.cmpi sgt, %arg0, %c0_i32_241 : i32
    %515 = arith.extui %514 : i1 to i32
    %516 = arith.sitofp %515 : i32 to f32
    %517 = vector.broadcast %516 : f32 to vector<8x128xf32>
    %518 = arith.mulf %517, %512 : vector<8x128xf32>
    %cst_242 = arith.constant 1.000000e+00 : f32
    %519 = arith.subf %cst_242, %516 : f32
    %520 = vector.broadcast %519 : f32 to vector<8x128xf32>
    %521 = arith.mulf %520, %480 : vector<8x128xf32>
    %522 = arith.addf %518, %521 : vector<8x128xf32>
    %cst_243 = arith.constant dense<0.000000e+00> : vector<8x384xf32>
    %523 = tpu.matmul %522, %310, %cst_243 {dimension_numbers = #tpu.dot_dimension_numbers<[1], [0], [0], [1], [0, 0, 1, 1], [], []>} : vector<8x128xf32>, vector<128x384xf32>, vector<8x384xf32> -> vector<8x384xf32>
    %c1_244 = arith.constant 1 : index
    %c16_245 = arith.constant 16 : index
    %c0_246 = arith.constant 0 : index
    %524 = vector.load %arg12[%c1_244, %c16_245, %c0_246] : memref<2x64x384xf32, #tpu.memory_space<vmem>>, vector<1x8x128xf32>
    %525 = vector.shape_cast %524 : vector<1x8x128xf32> to vector<8x128xf32>
    %526 = vector.extract_strided_slice %523 {offsets = [0, 0], sizes = [8, 128], strides = [1, 1]} : vector<8x384xf32> to vector<8x128xf32>
    %527 = arith.addf %525, %526 : vector<8x128xf32>
    %528 = arith.negf %527 : vector<8x128xf32>
    %529 = math.exp %528 : vector<8x128xf32>
    %cst_247 = arith.constant 1.000000e+00 : f32
    %530 = vector.broadcast %cst_247 : f32 to vector<8x128xf32>
    %531 = arith.addf %530, %529 : vector<8x128xf32>
    %532 = arith.divf %530, %531 : vector<8x128xf32>
    %c1_248 = arith.constant 1 : index
    %c16_249 = arith.constant 16 : index
    %c128_250 = arith.constant 128 : index
    %533 = vector.load %arg12[%c1_248, %c16_249, %c128_250] : memref<2x64x384xf32, #tpu.memory_space<vmem>>, vector<1x8x128xf32>
    %534 = vector.shape_cast %533 : vector<1x8x128xf32> to vector<8x128xf32>
    %535 = vector.extract_strided_slice %523 {offsets = [0, 128], sizes = [8, 128], strides = [1, 1]} : vector<8x384xf32> to vector<8x128xf32>
    %536 = arith.addf %534, %535 : vector<8x128xf32>
    %537 = arith.negf %536 : vector<8x128xf32>
    %538 = math.exp %537 : vector<8x128xf32>
    %cst_251 = arith.constant 1.000000e+00 : f32
    %539 = vector.broadcast %cst_251 : f32 to vector<8x128xf32>
    %540 = arith.addf %539, %538 : vector<8x128xf32>
    %541 = arith.divf %539, %540 : vector<8x128xf32>
    %c1_252 = arith.constant 1 : index
    %c16_253 = arith.constant 16 : index
    %c256_254 = arith.constant 256 : index
    %542 = vector.load %arg12[%c1_252, %c16_253, %c256_254] : memref<2x64x384xf32, #tpu.memory_space<vmem>>, vector<1x8x128xf32>
    %543 = vector.shape_cast %542 : vector<1x8x128xf32> to vector<8x128xf32>
    %544 = vector.extract_strided_slice %523 {offsets = [0, 256], sizes = [8, 128], strides = [1, 1]} : vector<8x384xf32> to vector<8x128xf32>
    %545 = vector.broadcast %312 : vector<1x128xf32> to vector<8x128xf32>
    %546 = arith.addf %544, %545 : vector<8x128xf32>
    %547 = arith.mulf %532, %546 : vector<8x128xf32>
    %548 = arith.addf %543, %547 : vector<8x128xf32>
    %549 = math.tanh %548 : vector<8x128xf32>
    %cst_255 = arith.constant 1.000000e+00 : f32
    %550 = vector.broadcast %cst_255 : f32 to vector<8x128xf32>
    %551 = arith.subf %550, %541 : vector<8x128xf32>
    %552 = arith.mulf %551, %549 : vector<8x128xf32>
    %553 = arith.mulf %541, %522 : vector<8x128xf32>
    %554 = arith.addf %552, %553 : vector<8x128xf32>
    %c16_256 = arith.constant 16 : index
    %c0_257 = arith.constant 0 : index
    %555 = vector.load %arg10[%c16_256, %c0_257] : memref<64x128xf32, #tpu.memory_space<vmem>>, vector<8x128xf32>
    tpu.vector_store %arg10[%c16_256, %c0_257], %554 {strides = array<i32>} : memref<64x128xf32, #tpu.memory_space<vmem>>, vector<8x128xf32>,
    %cst_258 = arith.constant dense<0.000000e+00> : vector<8x384xf32>
    %556 = tpu.matmul %554, %310, %cst_258 {dimension_numbers = #tpu.dot_dimension_numbers<[1], [0], [0], [1], [0, 0, 1, 1], [], []>} : vector<8x128xf32>, vector<128x384xf32>, vector<8x384xf32> -> vector<8x384xf32>
    %c1_259 = arith.constant 1 : index
    %c8_260 = arith.constant 8 : index
    %c0_261 = arith.constant 0 : index
    %557 = vector.load %arg12[%c1_259, %c8_260, %c0_261] : memref<2x64x384xf32, #tpu.memory_space<vmem>>, vector<1x8x128xf32>
    %558 = vector.shape_cast %557 : vector<1x8x128xf32> to vector<8x128xf32>
    %559 = vector.extract_strided_slice %556 {offsets = [0, 0], sizes = [8, 128], strides = [1, 1]} : vector<8x384xf32> to vector<8x128xf32>
    %560 = arith.addf %558, %559 : vector<8x128xf32>
    %561 = arith.negf %560 : vector<8x128xf32>
    %562 = math.exp %561 : vector<8x128xf32>
    %cst_262 = arith.constant 1.000000e+00 : f32
    %563 = vector.broadcast %cst_262 : f32 to vector<8x128xf32>
    %564 = arith.addf %563, %562 : vector<8x128xf32>
    %565 = arith.divf %563, %564 : vector<8x128xf32>
    %c1_263 = arith.constant 1 : index
    %c8_264 = arith.constant 8 : index
    %c128_265 = arith.constant 128 : index
    %566 = vector.load %arg12[%c1_263, %c8_264, %c128_265] : memref<2x64x384xf32, #tpu.memory_space<vmem>>, vector<1x8x128xf32>
    %567 = vector.shape_cast %566 : vector<1x8x128xf32> to vector<8x128xf32>
    %568 = vector.extract_strided_slice %556 {offsets = [0, 128], sizes = [8, 128], strides = [1, 1]} : vector<8x384xf32> to vector<8x128xf32>
    %569 = arith.addf %567, %568 : vector<8x128xf32>
    %570 = arith.negf %569 : vector<8x128xf32>
    %571 = math.exp %570 : vector<8x128xf32>
    %cst_266 = arith.constant 1.000000e+00 : f32
    %572 = vector.broadcast %cst_266 : f32 to vector<8x128xf32>
    %573 = arith.addf %572, %571 : vector<8x128xf32>
    %574 = arith.divf %572, %573 : vector<8x128xf32>
    %c1_267 = arith.constant 1 : index
    %c8_268 = arith.constant 8 : index
    %c256_269 = arith.constant 256 : index
    %575 = vector.load %arg12[%c1_267, %c8_268, %c256_269] : memref<2x64x384xf32, #tpu.memory_space<vmem>>, vector<1x8x128xf32>
    %576 = vector.shape_cast %575 : vector<1x8x128xf32> to vector<8x128xf32>
    %577 = vector.extract_strided_slice %556 {offsets = [0, 256], sizes = [8, 128], strides = [1, 1]} : vector<8x384xf32> to vector<8x128xf32>
    %578 = vector.broadcast %312 : vector<1x128xf32> to vector<8x128xf32>
    %579 = arith.addf %577, %578 : vector<8x128xf32>
    %580 = arith.mulf %565, %579 : vector<8x128xf32>
    %581 = arith.addf %576, %580 : vector<8x128xf32>
    %582 = math.tanh %581 : vector<8x128xf32>
    %cst_270 = arith.constant 1.000000e+00 : f32
    %583 = vector.broadcast %cst_270 : f32 to vector<8x128xf32>
    %584 = arith.subf %583, %574 : vector<8x128xf32>
    %585 = arith.mulf %584, %582 : vector<8x128xf32>
    %586 = arith.mulf %574, %554 : vector<8x128xf32>
    %587 = arith.addf %585, %586 : vector<8x128xf32>
    %c8_271 = arith.constant 8 : index
    %c0_272 = arith.constant 0 : index
    %588 = vector.load %arg10[%c8_271, %c0_272] : memref<64x128xf32, #tpu.memory_space<vmem>>, vector<8x128xf32>
    tpu.vector_store %arg10[%c8_271, %c0_272], %587 {strides = array<i32>} : memref<64x128xf32, #tpu.memory_space<vmem>>, vector<8x128xf32>,
    %cst_273 = arith.constant dense<0.000000e+00> : vector<8x384xf32>
    %589 = tpu.matmul %587, %310, %cst_273 {dimension_numbers = #tpu.dot_dimension_numbers<[1], [0], [0], [1], [0, 0, 1, 1], [], []>} : vector<8x128xf32>, vector<128x384xf32>, vector<8x384xf32> -> vector<8x384xf32>
    %c1_274 = arith.constant 1 : index
    %c0_275 = arith.constant 0 : index
    %c0_276 = arith.constant 0 : index
    %590 = vector.load %arg12[%c1_274, %c0_275, %c0_276] : memref<2x64x384xf32, #tpu.memory_space<vmem>>, vector<1x8x128xf32>
    %591 = vector.shape_cast %590 : vector<1x8x128xf32> to vector<8x128xf32>
    %592 = vector.extract_strided_slice %589 {offsets = [0, 0], sizes = [8, 128], strides = [1, 1]} : vector<8x384xf32> to vector<8x128xf32>
    %593 = arith.addf %591, %592 : vector<8x128xf32>
    %594 = arith.negf %593 : vector<8x128xf32>
    %595 = math.exp %594 : vector<8x128xf32>
    %cst_277 = arith.constant 1.000000e+00 : f32
    %596 = vector.broadcast %cst_277 : f32 to vector<8x128xf32>
    %597 = arith.addf %596, %595 : vector<8x128xf32>
    %598 = arith.divf %596, %597 : vector<8x128xf32>
    %c1_278 = arith.constant 1 : index
    %c0_279 = arith.constant 0 : index
    %c128_280 = arith.constant 128 : index
    %599 = vector.load %arg12[%c1_278, %c0_279, %c128_280] : memref<2x64x384xf32, #tpu.memory_space<vmem>>, vector<1x8x128xf32>
    %600 = vector.shape_cast %599 : vector<1x8x128xf32> to vector<8x128xf32>
    %601 = vector.extract_strided_slice %589 {offsets = [0, 128], sizes = [8, 128], strides = [1, 1]} : vector<8x384xf32> to vector<8x128xf32>
    %602 = arith.addf %600, %601 : vector<8x128xf32>
    %603 = arith.negf %602 : vector<8x128xf32>
    %604 = math.exp %603 : vector<8x128xf32>
    %cst_281 = arith.constant 1.000000e+00 : f32
    %605 = vector.broadcast %cst_281 : f32 to vector<8x128xf32>
    %606 = arith.addf %605, %604 : vector<8x128xf32>
    %607 = arith.divf %605, %606 : vector<8x128xf32>
    %c1_282 = arith.constant 1 : index
    %c0_283 = arith.constant 0 : index
    %c256_284 = arith.constant 256 : index
    %608 = vector.load %arg12[%c1_282, %c0_283, %c256_284] : memref<2x64x384xf32, #tpu.memory_space<vmem>>, vector<1x8x128xf32>
    %609 = vector.shape_cast %608 : vector<1x8x128xf32> to vector<8x128xf32>
    %610 = vector.extract_strided_slice %589 {offsets = [0, 256], sizes = [8, 128], strides = [1, 1]} : vector<8x384xf32> to vector<8x128xf32>
    %611 = vector.broadcast %312 : vector<1x128xf32> to vector<8x128xf32>
    %612 = arith.addf %610, %611 : vector<8x128xf32>
    %613 = arith.mulf %598, %612 : vector<8x128xf32>
    %614 = arith.addf %609, %613 : vector<8x128xf32>
    %615 = math.tanh %614 : vector<8x128xf32>
    %cst_285 = arith.constant 1.000000e+00 : f32
    %616 = vector.broadcast %cst_285 : f32 to vector<8x128xf32>
    %617 = arith.subf %616, %607 : vector<8x128xf32>
    %618 = arith.mulf %617, %615 : vector<8x128xf32>
    %619 = arith.mulf %607, %587 : vector<8x128xf32>
    %620 = arith.addf %618, %619 : vector<8x128xf32>
    %c0_286 = arith.constant 0 : index
    %c0_287 = arith.constant 0 : index
    %621 = vector.load %arg10[%c0_286, %c0_287] : memref<64x128xf32, #tpu.memory_space<vmem>>, vector<8x128xf32>
    tpu.vector_store %arg10[%c0_286, %c0_287], %620 {strides = array<i32>} : memref<64x128xf32, #tpu.memory_space<vmem>>, vector<8x128xf32>,
    %c1_288 = arith.constant 1 : index
    %c0_289 = arith.constant 0 : index
    %c0_290 = arith.constant 0 : index
    %622 = vector.load %arg11[%c1_288, %c0_289, %c0_290] : memref<2x8x128xf32, #tpu.memory_space<vmem>>, vector<1x8x128xf32>
    %623 = vector.shape_cast %622 : vector<1x8x128xf32> to vector<8x128xf32>
    %624 = vector.shape_cast %620 : vector<8x128xf32> to vector<1x8x128xf32>
    tpu.vector_store %arg11[%c1_288, %c0_289, %c0_290], %624 {strides = array<i32>} : memref<2x8x128xf32, #tpu.memory_space<vmem>>, vector<1x8x128xf32>,
    return
  }
  func.func @transform_0(%arg0: i32) -> (i32, i32) {
    %c0_i32 = arith.constant 0 : i32
    %c0_i32_0 = arith.constant 0 : i32
    return %arg0, %c0_i32 : i32, i32
  }
  func.func @transform_1(%arg0: i32) -> (i32, i32) {
    %c1_i32 = arith.constant 1 : i32
    %0 = arith.subi %c1_i32, %arg0 : i32
    %c0_i32 = arith.constant 0 : i32
    %c0_i32_0 = arith.constant 0 : i32
    return %0, %c0_i32 : i32, i32
  }
  func.func @transform_2(%arg0: i32) -> (i32, i32) {
    %c0_i32 = arith.constant 0 : i32
    %c0_i32_0 = arith.constant 0 : i32
    %c0_i32_1 = arith.constant 0 : i32
    return %c0_i32, %c0_i32_0 : i32, i32
  }
  func.func @transform_3(%arg0: i32) -> (i32, i32) {
    %c0_i32 = arith.constant 0 : i32
    %c0_i32_0 = arith.constant 0 : i32
    %c0_i32_1 = arith.constant 0 : i32
    return %c0_i32, %c0_i32_0 : i32, i32
  }
  func.func @transform_4(%arg0: i32) -> (i32, i32, i32) {
    %c0_i32 = arith.constant 0 : i32
    %c0_i32_0 = arith.constant 0 : i32
    %c0_i32_1 = arith.constant 0 : i32
    %c0_i32_2 = arith.constant 0 : i32
    return %c0_i32, %c0_i32_0, %c0_i32_1 : i32, i32, i32
  }
  func.func @transform_5(%arg0: i32) -> (i32, i32, i32) {
    %c0_i32 = arith.constant 0 : i32
    %c0_i32_0 = arith.constant 0 : i32
    %c0_i32_1 = arith.constant 0 : i32
    %c0_i32_2 = arith.constant 0 : i32
    return %c0_i32, %c0_i32_0, %c0_i32_1 : i32, i32, i32
  }
  func.func @transform_6(%arg0: i32) -> (i32, i32, i32) {
    %c0_i32 = arith.constant 0 : i32
    %c0_i32_0 = arith.constant 0 : i32
    %c0_i32_1 = arith.constant 0 : i32
    %c0_i32_2 = arith.constant 0 : i32
    return %c0_i32, %c0_i32_0, %c0_i32_1 : i32, i32, i32
  }
  func.func @transform_7(%arg0: i32) -> (i32, i32, i32) {
    %c0_i32 = arith.constant 0 : i32
    %c0_i32_0 = arith.constant 0 : i32
    %c0_i32_1 = arith.constant 0 : i32
    %c0_i32_2 = arith.constant 0 : i32
    return %c0_i32, %c0_i32_0, %c0_i32_1 : i32, i32, i32
  }
  func.func @transform_8(%arg0: i32) -> (i32, i32) {
    %c0_i32 = arith.constant 0 : i32
    %c0_i32_0 = arith.constant 0 : i32
    return %arg0, %c0_i32 : i32, i32
  }
  func.func @transform_9(%arg0: i32) -> (i32, i32) {
    %c1_i32 = arith.constant 1 : i32
    %0 = arith.subi %c1_i32, %arg0 : i32
    %c0_i32 = arith.constant 0 : i32
    %c0_i32_0 = arith.constant 0 : i32
    return %0, %c0_i32 : i32, i32
  }
}

</mosaic_0001>

<llo_original>
// kernel: _lambda_.1
$region0: #{_lambda_.1}
  #allocation0 [shape = 'u32[]', space=smem, size = 0x4, offset = 0x4, fixed_abs, tag = 'smem constant byte address 0x4 - core index']
  #allocation1 [shape = 'u32[144,128]{1,0:T(1,128)}', space=vmem, size = 0x12000, scoped, tag = 'internal scratch']
  #allocation2 [shape = 'f32[2,8,128]{2,1,0:T(8,128)}', space=vmem, size = 0x2000, scoped, tag = 'scratch operand']
  #allocation3 [shape = 'f32[2,64,384]{2,1,0:T(8,128)}', space=vmem, size = 0x30000, scoped, tag = 'scratch operand']
  %s0 = inlined_call_operand.vmem [shape: f32[128,128], index: 0, kind: input, shape index: {}, may-alias: {0,1}]
  %s1 = inlined_call_operand.vmem [shape: f32[128,128], index: 1, kind: input, shape index: {}, may-alias: {0,1}]
  %s2 = inlined_call_operand.vmem [shape: f32[8,128], index: 2, kind: input, shape index: {}]
  %s3 = inlined_call_operand.vmem [shape: f32[1,128], index: 3, kind: input, shape index: {}]
  %s4 = inlined_call_operand.vmem [shape: f32[2,128,384], index: 4, kind: input, shape index: {}]
  %s5 = inlined_call_operand.vmem [shape: f32[2,1,384], index: 5, kind: input, shape index: {}]
  %s6 = inlined_call_operand.vmem [shape: f32[2,128,384], index: 6, kind: input, shape index: {}]
  %s7 = inlined_call_operand.vmem [shape: f32[2,1,128], index: 7, kind: input, shape index: {}]
  %s8 = inlined_call_operand.vmem [shape: f32[128,128], index: 8, kind: output, shape index: {0}]
  %s9 = inlined_call_operand.vmem [shape: f32[128,128], index: 9, kind: output, shape index: {1}]
  %10 = xla_tuple %s8, %s9
  %s11 = sld [smem:[#allocation0]]
  $region77: #{_lambda_.1} parent=0
    _
  %s13 = ssub.s32 1, %s11
  %s14 = scalar_select 0, %s13, %s11
  loop: start=0, step=1, limit=4
  $region2: #{_lambda_.1} parent=0 // loop_pre_header
    _
  $region3: #{_lambda_.1} parent=0 // loop_header
    %s16 = sphi 0, %s20
    %p17 = scmp.ge.s32.totalorder %s16, 4
    %s26 = sphi 0, %s28
    %s29 = sphi 0, %s26
    %s30 = sphi 0, %s29
    %s46 = sphi 0, %s30
    %s54 = sphi 0, %s56
    %s57 = sphi 0, %s54
    %s58 = sphi 0, %s57
    %s74 = sphi 0, %s58
    %s78 = sphi 0, %s78
    %s80 = sphi 0, %s78
    %s81 = sphi 0, %s80
    %s95 = sphi 0, %s81
    %s99 = sphi 0, %s99
    %s101 = sphi 0, %s99
    %s102 = sphi 0, %s101
    %s116 = sphi 0, %s102
    %s120 = sphi 0, %s120
    %s122 = sphi 0, %s120
    %s123 = sphi 0, %s122
    %s137 = sphi 0, %s123
    %s141 = sphi 0, %s141
    %s143 = sphi 0, %s141
    %s144 = sphi 0, %s143
    %s158 = sphi 0, %s144
    %s162 = sphi 0, %s162
    %s164 = sphi 0, %s162
    %s165 = sphi 0, %s164
    %s179 = sphi 0, %s165
    %s183 = sphi 0, %s183
    %s185 = sphi 0, %s183
    %s186 = sphi 0, %s185
    %s200 = sphi 0, %s186
    %s206 = sphi 0, %s208
    %s209 = sphi 0, %s206
    %s210 = sphi 0, %s209
    %s226 = sphi 0, %s210
    %s234 = sphi 0, %s236
    %s237 = sphi 0, %s234
    %s238 = sphi 0, %s237
    %s254 = sphi 0, %s238
  $region4: #{_lambda_.1} parent=0 // loop_header_branch
    %19 = sbr.rel (%p17) target = $region8
  $region5: #{_lambda_.1} parent=0 // loop_body
    %s21 = ssub.s32 %s16, 1
    %s22 = ssub.s32 %s16, 2
    %s23 = sadd.s32 %s16, 1
    %s24 = ssub.s32 %s16, %s23
    %p25 = scmp.eq.s32.totalorder %s24, 0
    %s27 = sadd.s32 %s26, 1
    %s28 = scalar_select %p25, %s26, %s27
    %p31 = pneg %p25
    %p32 = scmp.eq.s32.totalorder %s16, 1
    %p33 = por %p31, %p32
    %p34 = scmp.ne.s32.totalorder %s26, %s29
    %p35 = scmp.eq.s32.totalorder %s16, 0
    %p36 = por %p34, %p35
    %p37 = scmp.ne.s32.totalorder %s26, %s29
    %p38 = scmp.eq.s32.totalorder %s21, 1
    %p39 = por %p37, %p38
    %p40 = scmp.ne.s32.totalorder %s29, %s30
    %p41 = scmp.eq.s32.totalorder %s21, 0
    %p42 = por %p40, %p41
    %p43 = scmp.ne.s32.totalorder %s29, %s30
    %p44 = scmp.eq.s32.totalorder %s22, 1
    %p45 = por %p43, %p44
    %p47 = scmp.ne.s32.totalorder %s30, %s46
    %p48 = scmp.eq.s32.totalorder %s22, 0
    %p49 = por %p47, %p48
    %s50 = ssub.s32 1, %s16
    %s51 = ssub.s32 1, %s23
    %s52 = ssub.s32 %s50, %s51
    %p53 = scmp.eq.s32.totalorder %s52, 0
    %s55 = sadd.s32 %s54, 1
    %s56 = scalar_select %p53, %s54, %s55
    %p59 = pneg %p53
    %p60 = scmp.eq.s32.totalorder %s16, 1
    %p61 = por %p59, %p60
    %p62 = scmp.ne.s32.totalorder %s54, %s57
    %p63 = scmp.eq.s32.totalorder %s16, 0
    %p64 = por %p62, %p63
    %p65 = scmp.ne.s32.totalorder %s54, %s57
    %p66 = scmp.eq.s32.totalorder %s21, 1
    %p67 = por %p65, %p66
    %p68 = scmp.ne.s32.totalorder %s57, %s58
    %p69 = scmp.eq.s32.totalorder %s21, 0
    %p70 = por %p68, %p69
    %p71 = scmp.ne.s32.totalorder %s57, %s58
    %p72 = scmp.eq.s32.totalorder %s22, 1
    %p73 = por %p71, %p72
    %p75 = scmp.ne.s32.totalorder %s58, %s74
    %p76 = scmp.eq.s32.totalorder %s22, 0
    %p77 = por %p75, %p76
    %s79 = sadd.s32 %s78, 1
    %p82 = scmp.eq.s32.totalorder %s16, 1
    %p83 = scmp.ne.s32.totalorder %s78, %s80
    %p84 = scmp.eq.s32.totalorder %s16, 0
    %p85 = por %p83, %p84
    %p86 = scmp.ne.s32.totalorder %s78, %s80
    %p87 = scmp.eq.s32.totalorder %s21, 1
    %p88 = por %p86, %p87
    %p89 = scmp.ne.s32.totalorder %s80, %s81
    %p90 = scmp.eq.s32.totalorder %s21, 0
    %p91 = por %p89, %p90
    %p92 = scmp.ne.s32.totalorder %s80, %s81
    %p93 = scmp.eq.s32.totalorder %s22, 1
    %p94 = por %p92, %p93
    %p96 = scmp.ne.s32.totalorder %s81, %s95
    %p97 = scmp.eq.s32.totalorder %s22, 0
    %p98 = por %p96, %p97
    %s100 = sadd.s32 %s99, 1
    %p103 = scmp.eq.s32.totalorder %s16, 1
    %p104 = scmp.ne.s32.totalorder %s99, %s101
    %p105 = scmp.eq.s32.totalorder %s16, 0
    %p106 = por %p104, %p105
    %p107 = scmp.ne.s32.totalorder %s99, %s101
    %p108 = scmp.eq.s32.totalorder %s21, 1
    %p109 = por %p107, %p108
    %p110 = scmp.ne.s32.totalorder %s101, %s102
    %p111 = scmp.eq.s32.totalorder %s21, 0
    %p112 = por %p110, %p111
    %p113 = scmp.ne.s32.totalorder %s101, %s102
    %p114 = scmp.eq.s32.totalorder %s22, 1
    %p115 = por %p113, %p114
    %p117 = scmp.ne.s32.totalorder %s102, %s116
    %p118 = scmp.eq.s32.totalorder %s22, 0
    %p119 = por %p117, %p118
    %s121 = sadd.s32 %s120, 1
    %p124 = scmp.eq.s32.totalorder %s16, 1
    %p125 = scmp.ne.s32.totalorder %s120, %s122
    %p126 = scmp.eq.s32.totalorder %s16, 0
    %p127 = por %p125, %p126
    %p128 = scmp.ne.s32.totalorder %s120, %s122
    %p129 = scmp.eq.s32.totalorder %s21, 1
    %p130 = por %p128, %p129
    %p131 = scmp.ne.s32.totalorder %s122, %s123
    %p132 = scmp.eq.s32.totalorder %s21, 0
    %p133 = por %p131, %p132
    %p134 = scmp.ne.s32.totalorder %s122, %s123
    %p135 = scmp.eq.s32.totalorder %s22, 1
    %p136 = por %p134, %p135
    %p138 = scmp.ne.s32.totalorder %s123, %s137
    %p139 = scmp.eq.s32.totalorder %s22, 0
    %p140 = por %p138, %p139
    %s142 = sadd.s32 %s141, 1
    %p145 = scmp.eq.s32.totalorder %s16, 1
    %p146 = scmp.ne.s32.totalorder %s141, %s143
    %p147 = scmp.eq.s32.totalorder %s16, 0
    %p148 = por %p146, %p147
    %p149 = scmp.ne.s32.totalorder %s141, %s143
    %p150 = scmp.eq.s32.totalorder %s21, 1
    %p151 = por %p149, %p150
    %p152 = scmp.ne.s32.totalorder %s143, %s144
    %p153 = scmp.eq.s32.totalorder %s21, 0
    %p154 = por %p152, %p153
    %p155 = scmp.ne.s32.totalorder %s143, %s144
    %p156 = scmp.eq.s32.totalorder %s22, 1
    %p157 = por %p155, %p156
    %p159 = scmp.ne.s32.totalorder %s144, %s158
    %p160 = scmp.eq.s32.totalorder %s22, 0
    %p161 = por %p159, %p160
    %s163 = sadd.s32 %s162, 1
    %p166 = scmp.eq.s32.totalorder %s16, 1
    %p167 = scmp.ne.s32.totalorder %s162, %s164
    %p168 = scmp.eq.s32.totalorder %s16, 0
    %p169 = por %p167, %p168
    %p170 = scmp.ne.s32.totalorder %s162, %s164
    %p171 = scmp.eq.s32.totalorder %s21, 1
    %p172 = por %p170, %p171
    %p173 = scmp.ne.s32.totalorder %s164, %s165
    %p174 = scmp.eq.s32.totalorder %s21, 0
    %p175 = por %p173, %p174
    %p176 = scmp.ne.s32.totalorder %s164, %s165
    %p177 = scmp.eq.s32.totalorder %s22, 1
    %p178 = por %p176, %p177
    %p180 = scmp.ne.s32.totalorder %s165, %s179
    %p181 = scmp.eq.s32.totalorder %s22, 0
    %p182 = por %p180, %p181
    %s184 = sadd.s32 %s183, 1
    %p187 = scmp.eq.s32.totalorder %s16, 1
    %p188 = scmp.ne.s32.totalorder %s183, %s185
    %p189 = scmp.eq.s32.totalorder %s16, 0
    %p190 = por %p188, %p189
    %p191 = scmp.ne.s32.totalorder %s183, %s185
    %p192 = scmp.eq.s32.totalorder %s21, 1
    %p193 = por %p191, %p192
    %p194 = scmp.ne.s32.totalorder %s185, %s186
    %p195 = scmp.eq.s32.totalorder %s21, 0
    %p196 = por %p194, %p195
    %p197 = scmp.ne.s32.totalorder %s185, %s186
    %p198 = scmp.eq.s32.totalorder %s22, 1
    %p199 = por %p197, %p198
    %p201 = scmp.ne.s32.totalorder %s186, %s200
    %p202 = scmp.eq.s32.totalorder %s22, 0
    %p203 = por %p201, %p202
    %s204 = ssub.s32 %s16, %s23
    %p205 = scmp.eq.s32.totalorder %s204, 0
    %s207 = sadd.s32 %s206, 1
    %s208 = scalar_select %p205, %s206, %s207
    %p211 = pneg %p205
    %p212 = scmp.eq.s32.totalorder %s16, 1
    %p213 = por %p211, %p212
    %p214 = scmp.ne.s32.totalorder %s206, %s209
    %p215 = scmp.eq.s32.totalorder %s16, 0
    %p216 = por %p214, %p215
    %p217 = scmp.ne.s32.totalorder %s206, %s209
    %p218 = scmp.eq.s32.totalorder %s21, 1
    %p219 = por %p217, %p218
    %p220 = scmp.ne.s32.totalorder %s209, %s210
    %p221 = scmp.eq.s32.totalorder %s21, 0
    %p222 = por %p220, %p221
    %p223 = scmp.ne.s32.totalorder %s209, %s210
    %p224 = scmp.eq.s32.totalorder %s22, 1
    %p225 = por %p223, %p224
    %p227 = scmp.ne.s32.totalorder %s210, %s226
    %p228 = scmp.eq.s32.totalorder %s22, 0
    %p229 = por %p227, %p228
    %s230 = ssub.s32 1, %s16
    %s231 = ssub.s32 1, %s23
    %s232 = ssub.s32 %s230, %s231
    %p233 = scmp.eq.s32.totalorder %s232, 0
    %s235 = sadd.s32 %s234, 1
    %s236 = scalar_select %p233, %s234, %s235
    %p239 = pneg %p233
    %p240 = scmp.eq.s32.totalorder %s16, 1
    %p241 = por %p239, %p240
    %p242 = scmp.ne.s32.totalorder %s234, %s237
    %p243 = scmp.eq.s32.totalorder %s16, 0
    %p244 = por %p242, %p243
    %p245 = scmp.ne.s32.totalorder %s234, %s237
    %p246 = scmp.eq.s32.totalorder %s21, 1
    %p247 = por %p245, %p246
    %p248 = scmp.ne.s32.totalorder %s237, %s238
    %p249 = scmp.eq.s32.totalorder %s21, 0
    %p250 = por %p248, %p249
    %p251 = scmp.ne.s32.totalorder %s237, %s238
    %p252 = scmp.eq.s32.totalorder %s22, 1
    %p253 = por %p251, %p252
    %p255 = scmp.ne.s32.totalorder %s238, %s254
    %p256 = scmp.eq.s32.totalorder %s22, 0
    %p257 = por %p255, %p256
    %p258 = scmp.le.s32.totalorder 1, %s16
    %p259 = scmp.lt.s32.totalorder %s16, 3
    %p260 = pnand %p258, %p259
    %p261 = pneg %p260
    // Predicated region
    $region9: #{_lambda_.1} parent=5 // pred_check
      _
    $region10: #{_lambda_.1} parent=5 // pred_check_branch
      %263 = sbr.rel (%p260) target = $region12
    $region11: #{_lambda_.1} parent=5 // pred_region
      %s264 = ssub.s32 %s16, 1
      // Predicated region
      $region13: #{_lambda_.1} parent=11 // pred_check
        %p265 = pneg %p91
      $region14: #{_lambda_.1} parent=11 // pred_check_branch
        %267 = sbr.rel (%p265) target = $region16
      $region15: #{_lambda_.1} parent=11 // pred_region
        _
      $region16: #{_lambda_.1} parent=11 // pred_fallthru
        _
      // Predicated region
      $region17: #{_lambda_.1} parent=11 // pred_check
        %p268 = pneg %p112
      $region18: #{_lambda_.1} parent=11 // pred_check_branch
        %270 = sbr.rel (%p268) target = $region20
      $region19: #{_lambda_.1} parent=11 // pred_region
        _
      $region20: #{_lambda_.1} parent=11 // pred_fallthru
        _
      // Predicated region
      $region21: #{_lambda_.1} parent=11 // pred_check
        %p271 = pneg %p133
      $region22: #{_lambda_.1} parent=11 // pred_check_branch
        %273 = sbr.rel (%p271) target = $region24
      $region23: #{_lambda_.1} parent=11 // pred_region
        _
      $region24: #{_lambda_.1} parent=11 // pred_fallthru
        _
      // Predicated region
      $region25: #{_lambda_.1} parent=11 // pred_check
        %p274 = pneg %p154
      $region26: #{_lambda_.1} parent=11 // pred_check_branch
        %276 = sbr.rel (%p274) target = $region28
      $region27: #{_lambda_.1} parent=11 // pred_region
        _
      $region28: #{_lambda_.1} parent=11 // pred_fallthru
        _
      // Predicated region
      $region29: #{_lambda_.1} parent=11 // pred_check
        %p277 = pneg %p175
      $region30: #{_lambda_.1} parent=11 // pred_check_branch
        %279 = sbr.rel (%p277) target = $region32
      $region31: #{_lambda_.1} parent=11 // pred_region
        _
      $region32: #{_lambda_.1} parent=11 // pred_fallthru
        _
      // Predicated region
      $region33: #{_lambda_.1} parent=11 // pred_check
        %p280 = pneg %p196
      $region34: #{_lambda_.1} parent=11 // pred_check_branch
        %282 = sbr.rel (%p280) target = $region36
      $region35: #{_lambda_.1} parent=11 // pred_region
        _
      $region36: #{_lambda_.1} parent=11 // pred_fallthru
        _
    $region12: #{_lambda_.1} parent=5 // pred_fallthru
      _
    %p283 = scmp.lt.s32.totalorder %s16, 2
    // Predicated region
    $region37: #{_lambda_.1} parent=5 // pred_check
      %p284 = pneg %p283
    $region38: #{_lambda_.1} parent=5 // pred_check_branch
      %286 = sbr.rel (%p284) target = $region40
    $region39: #{_lambda_.1} parent=5 // pred_region
      // Predicated region
      $region41: #{_lambda_.1} parent=39 // pred_check
        %p287 = pneg %p36
      $region42: #{_lambda_.1} parent=39 // pred_check_branch
        %289 = sbr.rel (%p287) target = $region44
      $region43: #{_lambda_.1} parent=39 // pred_region
        %s290 = smul.u32 8, %s16
        %p291 = scmp.lt.s32.totalorder %s290, 15
        %s292 = scalar_select %p291, %s290, 15
        %s293 = smul.addr %s292, 8
        %s294 = scalar_lea.vmem %s0, %s293
        %s295 = smul.u32 8, %s16
      $region44: #{_lambda_.1} parent=39 // pred_fallthru
        _
      // Predicated region
      $region45: #{_lambda_.1} parent=39 // pred_check
        %p296 = pneg %p64
      $region46: #{_lambda_.1} parent=39 // pred_check_branch
        %298 = sbr.rel (%p296) target = $region48
      $region47: #{_lambda_.1} parent=39 // pred_region
        %s299 = ssub.s32 1, %s16
        %s300 = smul.u32 8, %s299
        %p301 = scmp.lt.s32.totalorder %s300, 15
        %s302 = scalar_select %p301, %s300, 15
        %s303 = smul.addr %s302, 8
        %s304 = scalar_lea.vmem %s1, %s303
        %s305 = ssub.s32 1, %s16
        %s306 = smul.u32 8, %s305
      $region48: #{_lambda_.1} parent=39 // pred_fallthru
        _
    $region40: #{_lambda_.1} parent=5 // pred_fallthru
      _
    %p307 = scmp.le.s32.totalorder 1, %s16
    %p308 = scmp.lt.s32.totalorder %s16, 3
    %p309 = pnand %p307, %p308
    %p310 = pneg %p309
    // Predicated region
    $region49: #{_lambda_.1} parent=5 // pred_check
      _
    $region50: #{_lambda_.1} parent=5 // pred_check_branch
      %312 = sbr.rel (%p309) target = $region52
    $region51: #{_lambda_.1} parent=5 // pred_region
      %s313 = ssub.s32 %s16, 1
      %s314 = smul.u32 8, %s21
      %p315 = scmp.lt.s32.totalorder %s314, 15
      %s316 = scalar_select %p315, %s314, 15
      %s317 = smul.addr %s316, 8
      %s318 = scalar_lea.vmem %s0, %s317
      %p319 = pneg %p42
      %p320 = pneg %p39
      %s321 = ssub.s32 1, %s21
      %s322 = smul.u32 8, %s321
      %p323 = scmp.lt.s32.totalorder %s322, 15
      %s324 = scalar_select %p323, %s322, 15
      %s325 = smul.addr %s324, 8
      %s326 = scalar_lea.vmem %s1, %s325
      %p327 = pneg %p70
      %p328 = pneg %p67
      %p329 = pneg %p91
      %p330 = pneg %p88
      %p331 = pneg %p112
      %p332 = pneg %p109
      %p333 = pneg %p133
      %p334 = pneg %p130
      %p335 = pneg %p154
      %p336 = pneg %p151
      %p337 = pneg %p175
      %p338 = pneg %p172
      %p339 = pneg %p196
      %p340 = pneg %p193
      %p341 = pneg %p222
      %p342 = pneg %p219
      %s343 = smul.u32 8, %s21
      %p344 = scmp.lt.s32.totalorder %s343, 15
      %s345 = scalar_select %p344, %s343, 15
      %s346 = smul.addr %s345, 8
      %s347 = scalar_lea.vmem %s8, %s346
      %p348 = pneg %p250
      %p349 = pneg %p247
      %s350 = ssub.s32 1, %s21
      %s351 = smul.u32 8, %s350
      %p352 = scmp.lt.s32.totalorder %s351, 15
      %s353 = scalar_select %p352, %s351, 15
      %s354 = smul.addr %s353, 8
      %s355 = scalar_lea.vmem %s9, %s354
      %s356 = smul.u32 8, %s21
      %p357 = scmp.lt.s32.totalorder %s356, 15
      %s358 = scalar_select %p357, %s356, 15
      %s359 = smul.addr %s358, 8
      %s360 = scalar_lea.vmem %s0, %s359
      %s361 = smul.u32 8, %s21
      %s362 = ssub.s32 1, %s21
      %s363 = smul.u32 8, %s362
      %p364 = scmp.lt.s32.totalorder %s363, 15
      %s365 = scalar_select %p364, %s363, 15
      %s366 = smul.addr %s365, 8
      %s367 = scalar_lea.vmem %s1, %s366
      %s368 = ssub.s32 1, %s21
      %s369 = smul.u32 8, %s368
      %s370 = smul.u32 8, %s21
      %p371 = scmp.lt.s32.totalorder %s370, 15
      %s372 = scalar_select %p371, %s370, 15
      %s373 = smul.addr %s372, 8
      %s374 = scalar_lea.vmem %s8, %s373
      %s375 = smul.u32 8, %s21
      %s376 = ssub.s32 1, %s21
      %s377 = smul.u32 8, %s376
      %p378 = scmp.lt.s32.totalorder %s377, 15
      %s379 = scalar_select %p378, %s377, 15
      %s380 = smul.addr %s379, 8
      %s381 = scalar_lea.vmem %s9, %s380
      %s382 = ssub.s32 1, %s21
      %s383 = smul.u32 8, %s382
      %p384 = scmp.eq.s32.totalorder %s21, 0
      // Predicated region
      $region53: #{_lambda_.1} parent=51 // pred_check
        %p385 = pneg %p384
      $region54: #{_lambda_.1} parent=51 // pred_check_branch
        %387 = sbr.rel (%p385) target = $region56
      $region55: #{_lambda_.1} parent=51 // pred_region
        %v388 = vld [vmem:[%s2] sm:$0xff]
        %389 = vst [vmem:[#allocation2] sm:$0xff] %v388
        %v390 = vld [vmem:[%s2] sm:$0xff]
        %s391 = scalar_lea.vmem [#allocation2], 8
        %392 = vst [vmem:[%s391] sm:$0xff] %v390
      $region56: #{_lambda_.1} parent=51 // pred_fallthru
        _
      %v393 = vld [vmem:[%s3] sm:$0x1]
      %v394 = vld [vmem:[%s360] sm:$0xff]
      %v395 = vld [vmem:[%s360 + $0x8] sm:$0xff]
      %v396 = vld [vmem:[%s360 + $0x10] sm:$0xff]
      %v397 = vld [vmem:[%s360 + $0x18] sm:$0xff]
      %v398 = vld [vmem:[%s360 + $0x20] sm:$0xff]
      %v399 = vld [vmem:[%s360 + $0x28] sm:$0xff]
      %v400 = vld [vmem:[%s360 + $0x30] sm:$0xff]
      %v401 = vld [vmem:[%s360 + $0x38] sm:$0xff]
      %v403 = vlaneseq
      %v404 = vshrl.u32 %v403, 7
      %v405 = vsub.s32 0, %v404
      %v406 = vrot.slane %v393, %v405
      %v408 = vadd.f32 %v394, %v406
      %v409 = vadd.f32 %v395, %v406
      %v410 = vadd.f32 %v396, %v406
      %v411 = vadd.f32 %v397, %v406
      %v412 = vadd.f32 %v398, %v406
      %v413 = vadd.f32 %v399, %v406
      %v414 = vadd.f32 %v400, %v406
      %v415 = vadd.f32 %v401, %v406
      %v416 = vmax.f32 %v408, 0.0
      %v417 = vmax.f32 %v409, 0.0
      %v418 = vmax.f32 %v410, 0.0
      %v419 = vmax.f32 %v411, 0.0
      %v420 = vmax.f32 %v412, 0.0
      %v421 = vmax.f32 %v413, 0.0
      %v422 = vmax.f32 %v414, 0.0
      %v423 = vmax.f32 %v415, 0.0
      %v424 = vld [vmem:[%s4] sm:$0xff]
      %v425 = vld [vmem:[%s4 + $0x8] sm:$0xff]
      %v426 = vld [vmem:[%s4 + $0x10] sm:$0xff]
      %v427 = vld [vmem:[%s4 + $0x18] sm:$0xff]
      %v428 = vld [vmem:[%s4 + $0x20] sm:$0xff]
      %v429 = vld [vmem:[%s4 + $0x28] sm:$0xff]
      %v430 = vld [vmem:[%s4 + $0x30] sm:$0xff]
      %v431 = vld [vmem:[%s4 + $0x38] sm:$0xff]
      %v432 = vld [vmem:[%s4 + $0x40] sm:$0xff]
      %v433 = vld [vmem:[%s4 + $0x48] sm:$0xff]
      %v434 = vld [vmem:[%s4 + $0x50] sm:$0xff]
      %v435 = vld [vmem:[%s4 + $0x58] sm:$0xff]
      %v436 = vld [vmem:[%s4 + $0x60] sm:$0xff]
      %v437 = vld [vmem:[%s4 + $0x68] sm:$0xff]
      %v438 = vld [vmem:[%s4 + $0x70] sm:$0xff]
      %v439 = vld [vmem:[%s4 + $0x78] sm:$0xff]
      %v440 = vld [vmem:[%s4 + $0x80] sm:$0xff]
      %v441 = vld [vmem:[%s4 + $0x88] sm:$0xff]
      %v442 = vld [vmem:[%s4 + $0x90] sm:$0xff]
      %v443 = vld [vmem:[%s4 + $0x98] sm:$0xff]
      %v444 = vld [vmem:[%s4 + $0xa0] sm:$0xff]
      %v445 = vld [vmem:[%s4 + $0xa8] sm:$0xff]
      %v446 = vld [vmem:[%s4 + $0xb0] sm:$0xff]
      %v447 = vld [vmem:[%s4 + $0xb8] sm:$0xff]
      %v448 = vld [vmem:[%s4 + $0xc0] sm:$0xff]
      %v449 = vld [vmem:[%s4 + $0xc8] sm:$0xff]
      %v450 = vld [vmem:[%s4 + $0xd0] sm:$0xff]
      %v451 = vld [vmem:[%s4 + $0xd8] sm:$0xff]
      %v452 = vld [vmem:[%s4 + $0xe0] sm:$0xff]
      %v453 = vld [vmem:[%s4 + $0xe8] sm:$0xff]
      %v454 = vld [vmem:[%s4 + $0xf0] sm:$0xff]
      %v455 = vld [vmem:[%s4 + $0xf8] sm:$0xff]
      %v456 = vld [vmem:[%s4 + $0x100] sm:$0xff]
      %v457 = vld [vmem:[%s4 + $0x108] sm:$0xff]
      %v458 = vld [vmem:[%s4 + $0x110] sm:$0xff]
      %v459 = vld [vmem:[%s4 + $0x118] sm:$0xff]
      %v460 = vld [vmem:[%s4 + $0x120] sm:$0xff]
      %v461 = vld [vmem:[%s4 + $0x128] sm:$0xff]
      %v462 = vld [vmem:[%s4 + $0x130] sm:$0xff]
      %v463 = vld [vmem:[%s4 + $0x138] sm:$0xff]
      %v464 = vld [vmem:[%s4 + $0x140] sm:$0xff]
      %v465 = vld [vmem:[%s4 + $0x148] sm:$0xff]
      %v466 = vld [vmem:[%s4 + $0x150] sm:$0xff]
      %v467 = vld [vmem:[%s4 + $0x158] sm:$0xff]
      %v468 = vld [vmem:[%s4 + $0x160] sm:$0xff]
      %v469 = vld [vmem:[%s4 + $0x168] sm:$0xff]
      %v470 = vld [vmem:[%s4 + $0x170] sm:$0xff]
      %v471 = vld [vmem:[%s4 + $0x178] sm:$0xff]
      %v472 = vld [vmem:[%s5] sm:$0x7]
      %v474 = vlaneseq
      %v475 = vshrl.u32 %v474, 7
      %v476 = vsub.s32 0, %v475
      %v477 = vrot.slane %v472, %v476
      %v478 = vlaneseq
      %v479 = vshrl.u32 %v478, 7
      %v480 = vsub.s32 1, %v479
      %v481 = vrot.slane %v472, %v480
      %v482 = vlaneseq
      %v483 = vshrl.u32 %v482, 7
      %v484 = vsub.s32 2, %v483
      %v485 = vrot.slane %v472, %v484
      %489 = vmatprep.subr.mxu0 %v470
      %490 = vmatpush1.msra.mxu0 %v469
      %491 = vmatprep.subr.mxu0 %v467
      %492 = vmatpush1.msra.mxu0 %v466
      %493 = vmatprep.subr.mxu0 %v464
      %494 = vmatpush1.msra.mxu0 %v463
      %495 = vmatprep.subr.mxu0 %v461
      %496 = vmatpush1.msra.mxu0 %v460
      %497 = vmatprep.subr.mxu0 %v458
      %498 = vmatpush1.msra.mxu0 %v457
      %499 = vmatprep.subr.mxu0 %v455
      %500 = vmatpush1.msra.mxu0 %v454
      %501 = vmatprep.subr.mxu0 %v452
      %502 = vmatpush1.msra.mxu0 %v451
      %503 = vmatprep.subr.mxu0 %v449
      %504 = vmatpush1.msra.mxu0 %v448
      %505 = vmatprep.subr.mxu0 %v446
      %506 = vmatpush1.msra.mxu0 %v445
      %507 = vmatprep.subr.mxu0 %v443
      %508 = vmatpush1.msra.mxu0 %v442
      %509 = vmatprep.subr.mxu0 %v440
      %510 = vmatpush1.msra.mxu0 %v439
      %511 = vmatprep.subr.mxu0 %v437
      %512 = vmatpush1.msra.mxu0 %v436
      %513 = vmatprep.subr.mxu0 %v434
      %514 = vmatpush1.msra.mxu0 %v433
      %515 = vmatprep.subr.mxu0 %v431
      %516 = vmatpush1.msra.mxu0 %v430
      %517 = vmatprep.subr.mxu0 %v428
      %518 = vmatpush1.msra.mxu0 %v427
      %519 = vmatprep.subr.mxu0 %v425
      %520 = vmatpush1.msra.mxu0 %v424
      %521 = vmatprep.subr.mxu0 0.0
      %522 = vmatpush2.msra.mxu0 0.0
      %523 = vmatprep.subr.mxu0 0.0
      %524 = vmatpush2.msra.mxu0 0.0
      %525 = vmatprep.subr.mxu0 0.0
      %526 = vmatpush2.msra.mxu0 0.0
      %527 = vmatprep.subr.mxu0 0.0
      %528 = vmatpush2.msra.mxu0 0.0
      %529 = vmatprep.subr.mxu0 0.0
      %530 = vmatpush2.msra.mxu0 0.0
      %531 = vmatprep.subr.mxu0 0.0
      %532 = vmatpush2.msra.mxu0 0.0
      %533 = vmatprep.subr.mxu0 0.0
      %534 = vmatpush2.msra.mxu0 0.0
      %535 = vmatprep.subr.mxu0 0.0
      %536 = vmatpush2.msra.mxu0 0.0
      %537 = vmatprep.subr.mxu0 0.0
      %538 = vmatpush2.msra.mxu0 0.0
      %539 = vmatprep.subr.mxu0 0.0
      %540 = vmatpush2.msra.mxu0 0.0
      %541 = vmatprep.subr.mxu0 0.0
      %542 = vmatpush2.msra.mxu0 0.0
      %543 = vmatprep.subr.mxu0 0.0
      %544 = vmatpush2.msra.mxu0 0.0
      %545 = vmatprep.subr.mxu0 0.0
      %546 = vmatpush2.msra.mxu0 0.0
      %547 = vmatprep.subr.mxu0 0.0
      %548 = vmatpush2.msra.mxu0 0.0
      %549 = vmatprep.subr.mxu0 0.0
      %550 = vmatpush2.msra.mxu0 0.0
      %551 = vmatprep.subr.mxu0 0.0
      %552 = vmatpush2.msra.mxu0 0.0
      %553 = vmatprep.mubr.f32.mxu0 0.0
      %554 = vmatmul.mubr.f32.gmra.mxu0 %v416
      %v555 = vpop.f32.mrf.mxu0
      %v556 = vadd.f32 %v477, %v555
      %v557 = vpop.f32.mrf.mxu0
      %v558 = vadd.f32 %v481, %v557
      %559 = vmatprep.mubr.f32.mxu0 0.0
      %560 = vmatmul.mubr.f32.gmra.mxu0 %v417
      %v561 = vpop.f32.mrf.mxu0
      %v562 = vadd.f32 %v477, %v561
      %v563 = vpop.f32.mrf.mxu0
      %v564 = vadd.f32 %v481, %v563
      %565 = vmatprep.mubr.f32.mxu0 0.0
      %566 = vmatmul.mubr.f32.gmra.mxu0 %v418
      %v567 = vpop.f32.mrf.mxu0
      %v568 = vadd.f32 %v477, %v567
      %v569 = vpop.f32.mrf.mxu0
      %v570 = vadd.f32 %v481, %v569
      %571 = vmatprep.mubr.f32.mxu0 0.0
      %572 = vmatmul.mubr.f32.gmra.mxu0 %v419
      %v573 = vpop.f32.mrf.mxu0
      %v574 = vadd.f32 %v477, %v573
      %v575 = vpop.f32.mrf.mxu0
      %v576 = vadd.f32 %v481, %v575
      %577 = vmatprep.mubr.f32.mxu0 0.0
      %578 = vmatmul.mubr.f32.gmra.mxu0 %v420
      %v579 = vpop.f32.mrf.mxu0
      %v580 = vadd.f32 %v477, %v579
      %v581 = vpop.f32.mrf.mxu0
      %v582 = vadd.f32 %v481, %v581
      %583 = vmatprep.mubr.f32.mxu0 0.0
      %584 = vmatmul.mubr.f32.gmra.mxu0 %v421
      %v585 = vpop.f32.mrf.mxu0
      %v586 = vadd.f32 %v477, %v585
      %v587 = vpop.f32.mrf.mxu0
      %v588 = vadd.f32 %v481, %v587
      %589 = vmatprep.mubr.f32.mxu0 0.0
      %590 = vmatmul.mubr.f32.gmra.mxu0 %v422
      %v591 = vpop.f32.mrf.mxu0
      %v592 = vadd.f32 %v477, %v591
      %v593 = vpop.f32.mrf.mxu0
      %v594 = vadd.f32 %v481, %v593
      %595 = vmatprep.mubr.f32.mxu0 0.0
      %596 = vmatmul.mubr.f32.gmra.mxu0 %v423
      %v597 = vpop.f32.mrf.mxu0
      %v598 = vadd.f32 %v477, %v597
      %v599 = vpop.f32.mrf.mxu0
      %v600 = vadd.f32 %v481, %v599
      %601 = vdwg.mxu0
      %602 = vmatprep.subr.mxu0 0.0
      %603 = vmatpush1.msra.mxu0 %v471
      %604 = vmatprep.subr.mxu0 0.0
      %605 = vmatpush1.msra.mxu0 %v468
      %606 = vmatprep.subr.mxu0 0.0
      %607 = vmatpush1.msra.mxu0 %v465
      %608 = vmatprep.subr.mxu0 0.0
      %609 = vmatpush1.msra.mxu0 %v462
      %610 = vmatprep.subr.mxu0 0.0
      %611 = vmatpush1.msra.mxu0 %v459
      %612 = vmatprep.subr.mxu0 0.0
      %613 = vmatpush1.msra.mxu0 %v456
      %614 = vmatprep.subr.mxu0 0.0
      %615 = vmatpush1.msra.mxu0 %v453
      %616 = vmatprep.subr.mxu0 0.0
      %617 = vmatpush1.msra.mxu0 %v450
      %618 = vmatprep.subr.mxu0 0.0
      %619 = vmatpush1.msra.mxu0 %v447
      %620 = vmatprep.subr.mxu0 0.0
      %621 = vmatpush1.msra.mxu0 %v444
      %622 = vmatprep.subr.mxu0 0.0
      %623 = vmatpush1.msra.mxu0 %v441
      %624 = vmatprep.subr.mxu0 0.0
      %625 = vmatpush1.msra.mxu0 %v438
      %626 = vmatprep.subr.mxu0 0.0
      %627 = vmatpush1.msra.mxu0 %v435
      %628 = vmatprep.subr.mxu0 0.0
      %629 = vmatpush1.msra.mxu0 %v432
      %630 = vmatprep.subr.mxu0 0.0
      %631 = vmatpush1.msra.mxu0 %v429
      %632 = vmatprep.subr.mxu0 0.0
      %633 = vmatpush1.msra.mxu0 %v426
      %634 = vmatprep.subr.mxu0 0.0
      %635 = vmatpush2.msra.mxu0 0.0
      %636 = vmatprep.subr.mxu0 0.0
      %637 = vmatpush2.msra.mxu0 0.0
      %638 = vmatprep.subr.mxu0 0.0
      %639 = vmatpush2.msra.mxu0 0.0
      %640 = vmatprep.subr.mxu0 0.0
      %641 = vmatpush2.msra.mxu0 0.0
      %642 = vmatprep.subr.mxu0 0.0
      %643 = vmatpush2.msra.mxu0 0.0
      %644 = vmatprep.subr.mxu0 0.0
      %645 = vmatpush2.msra.mxu0 0.0
      %646 = vmatprep.subr.mxu0 0.0
      %647 = vmatpush2.msra.mxu0 0.0
      %648 = vmatprep.subr.mxu0 0.0
      %649 = vmatpush2.msra.mxu0 0.0
      %650 = vmatprep.subr.mxu0 0.0
      %651 = vmatpush2.msra.mxu0 0.0
      %652 = vmatprep.subr.mxu0 0.0
      %653 = vmatpush2.msra.mxu0 0.0
      %654 = vmatprep.subr.mxu0 0.0
      %655 = vmatpush2.msra.mxu0 0.0
      %656 = vmatprep.subr.mxu0 0.0
      %657 = vmatpush2.msra.mxu0 0.0
      %658 = vmatprep.subr.mxu0 0.0
      %659 = vmatpush2.msra.mxu0 0.0
      %660 = vmatprep.subr.mxu0 0.0
      %661 = vmatpush2.msra.mxu0 0.0
      %662 = vmatprep.subr.mxu0 0.0
      %663 = vmatpush2.msra.mxu0 0.0
      %664 = vmatprep.subr.mxu0 0.0
      %665 = vmatpush2.msra.mxu0 0.0
      %666 = vmatprep.mubr.f32.mxu0 0.0
      %667 = vmatmul.mubr.f32.gmra.mxu0 %v416
      %v668 = vpop.f32.mrf.mxu0
      %v669 = vadd.f32 %v485, %v668
      %v670 = vpop.f32.mrf.mxu0
      %671 = vmatprep.mubr.f32.mxu0 0.0
      %672 = vmatmul.mubr.f32.gmra.mxu0 %v417
      %v673 = vpop.f32.mrf.mxu0
      %v674 = vadd.f32 %v485, %v673
      %v675 = vpop.f32.mrf.mxu0
      %676 = vmatprep.mubr.f32.mxu0 0.0
      %677 = vmatmul.mubr.f32.gmra.mxu0 %v418
      %v678 = vpop.f32.mrf.mxu0
      %v679 = vadd.f32 %v485, %v678
      %v680 = vpop.f32.mrf.mxu0
      %681 = vmatprep.mubr.f32.mxu0 0.0
      %682 = vmatmul.mubr.f32.gmra.mxu0 %v419
      %v683 = vpop.f32.mrf.mxu0
      %v684 = vadd.f32 %v485, %v683
      %v685 = vpop.f32.mrf.mxu0
      %686 = vmatprep.mubr.f32.mxu0 0.0
      %687 = vmatmul.mubr.f32.gmra.mxu0 %v420
      %v688 = vpop.f32.mrf.mxu0
      %v689 = vadd.f32 %v485, %v688
      %v690 = vpop.f32.mrf.mxu0
      %691 = vmatprep.mubr.f32.mxu0 0.0
      %692 = vmatmul.mubr.f32.gmra.mxu0 %v421
      %v693 = vpop.f32.mrf.mxu0
      %v694 = vadd.f32 %v485, %v693
      %v695 = vpop.f32.mrf.mxu0
      %696 = vmatprep.mubr.f32.mxu0 0.0
      %697 = vmatmul.mubr.f32.gmra.mxu0 %v422
      %v698 = vpop.f32.mrf.mxu0
      %v699 = vadd.f32 %v485, %v698
      %v700 = vpop.f32.mrf.mxu0
      %701 = vmatprep.mubr.f32.mxu0 0.0
      %702 = vmatmul.mubr.f32.gmra.mxu0 %v423
      %v703 = vpop.f32.mrf.mxu0
      %v704 = vadd.f32 %v485, %v703
      %v705 = vpop.f32.mrf.mxu0
      %706 = vdwg.mxu0
      %707 = vst [vmem:[#allocation3] sm:$0xff] %v556
      %708 = vst [vmem:[#allocation3 + $0x8] sm:$0xff] %v558
      %709 = vst [vmem:[#allocation3 + $0x10] sm:$0xff] %v669
      %710 = vst [vmem:[#allocation3 + $0x18] sm:$0xff] %v562
      %711 = vst [vmem:[#allocation3 + $0x20] sm:$0xff] %v564
      %712 = vst [vmem:[#allocation3 + $0x28] sm:$0xff] %v674
      %713 = vst [vmem:[#allocation3 + $0x30] sm:$0xff] %v568
      %714 = vst [vmem:[#allocation3 + $0x38] sm:$0xff] %v570
      %715 = vst [vmem:[#allocation3 + $0x40] sm:$0xff] %v679
      %716 = vst [vmem:[#allocation3 + $0x48] sm:$0xff] %v574
      %717 = vst [vmem:[#allocation3 + $0x50] sm:$0xff] %v576
      %718 = vst [vmem:[#allocation3 + $0x58] sm:$0xff] %v684
      %719 = vst [vmem:[#allocation3 + $0x60] sm:$0xff] %v580
      %720 = vst [vmem:[#allocation3 + $0x68] sm:$0xff] %v582
      %721 = vst [vmem:[#allocation3 + $0x70] sm:$0xff] %v689
      %722 = vst [vmem:[#allocation3 + $0x78] sm:$0xff] %v586
      %723 = vst [vmem:[#allocation3 + $0x80] sm:$0xff] %v588
      %724 = vst [vmem:[#allocation3 + $0x88] sm:$0xff] %v694
      %725 = vst [vmem:[#allocation3 + $0x90] sm:$0xff] %v592
      %726 = vst [vmem:[#allocation3 + $0x98] sm:$0xff] %v594
      %727 = vst [vmem:[#allocation3 + $0xa0] sm:$0xff] %v699
      %728 = vst [vmem:[#allocation3 + $0xa8] sm:$0xff] %v598
      %729 = vst [vmem:[#allocation3 + $0xb0] sm:$0xff] %v600
      %730 = vst [vmem:[#allocation3 + $0xb8] sm:$0xff] %v704
      %v731 = vld [vmem:[%s367] sm:$0xff]
      %v732 = vld [vmem:[%s367 + $0x8] sm:$0xff]
      %v733 = vld [vmem:[%s367 + $0x10] sm:$0xff]
      %v734 = vld [vmem:[%s367 + $0x18] sm:$0xff]
      %v735 = vld [vmem:[%s367 + $0x20] sm:$0xff]
      %v736 = vld [vmem:[%s367 + $0x28] sm:$0xff]
      %v737 = vld [vmem:[%s367 + $0x30] sm:$0xff]
      %v738 = vld [vmem:[%s367 + $0x38] sm:$0xff]
      %v739 = vadd.f32 %v731, %v406
      %v740 = vadd.f32 %v732, %v406
      %v741 = vadd.f32 %v733, %v406
      %v742 = vadd.f32 %v734, %v406
      %v743 = vadd.f32 %v735, %v406
      %v744 = vadd.f32 %v736, %v406
      %v745 = vadd.f32 %v737, %v406
      %v746 = vadd.f32 %v738, %v406
      %v747 = vmax.f32 %v739, 0.0
      %v748 = vmax.f32 %v740, 0.0
      %v749 = vmax.f32 %v741, 0.0
      %v750 = vmax.f32 %v742, 0.0
      %v751 = vmax.f32 %v743, 0.0
      %v752 = vmax.f32 %v744, 0.0
      %v753 = vmax.f32 %v745, 0.0
      %v754 = vmax.f32 %v746, 0.0
      %s755 = scalar_lea.vmem %s4, 384
      %v756 = vld [vmem:[%s755] sm:$0xff]
      %v757 = vld [vmem:[%s755 + $0x8] sm:$0xff]
      %v758 = vld [vmem:[%s755 + $0x10] sm:$0xff]
      %v759 = vld [vmem:[%s755 + $0x18] sm:$0xff]
      %v760 = vld [vmem:[%s755 + $0x20] sm:$0xff]
      %v761 = vld [vmem:[%s755 + $0x28] sm:$0xff]
      %v762 = vld [vmem:[%s755 + $0x30] sm:$0xff]
      %v763 = vld [vmem:[%s755 + $0x38] sm:$0xff]
      %v764 = vld [vmem:[%s755 + $0x40] sm:$0xff]
      %v765 = vld [vmem:[%s755 + $0x48] sm:$0xff]
      %v766 = vld [vmem:[%s755 + $0x50] sm:$0xff]
      %v767 = vld [vmem:[%s755 + $0x58] sm:$0xff]
      %v768 = vld [vmem:[%s755 + $0x60] sm:$0xff]
      %v769 = vld [vmem:[%s755 + $0x68] sm:$0xff]
      %v770 = vld [vmem:[%s755 + $0x70] sm:$0xff]
      %v771 = vld [vmem:[%s755 + $0x78] sm:$0xff]
      %v772 = vld [vmem:[%s755 + $0x80] sm:$0xff]
      %v773 = vld [vmem:[%s755 + $0x88] sm:$0xff]
      %v774 = vld [vmem:[%s755 + $0x90] sm:$0xff]
      %v775 = vld [vmem:[%s755 + $0x98] sm:$0xff]
      %v776 = vld [vmem:[%s755 + $0xa0] sm:$0xff]
      %v777 = vld [vmem:[%s755 + $0xa8] sm:$0xff]
      %v778 = vld [vmem:[%s755 + $0xb0] sm:$0xff]
      %v779 = vld [vmem:[%s755 + $0xb8] sm:$0xff]
      %v780 = vld [vmem:[%s755 + $0xc0] sm:$0xff]
      %v781 = vld [vmem:[%s755 + $0xc8] sm:$0xff]
      %v782 = vld [vmem:[%s755 + $0xd0] sm:$0xff]
      %v783 = vld [vmem:[%s755 + $0xd8] sm:$0xff]
      %v784 = vld [vmem:[%s755 + $0xe0] sm:$0xff]
      %v785 = vld [vmem:[%s755 + $0xe8] sm:$0xff]
      %v786 = vld [vmem:[%s755 + $0xf0] sm:$0xff]
      %v787 = vld [vmem:[%s755 + $0xf8] sm:$0xff]
      %v788 = vld [vmem:[%s755 + $0x100] sm:$0xff]
      %v789 = vld [vmem:[%s755 + $0x108] sm:$0xff]
      %v790 = vld [vmem:[%s755 + $0x110] sm:$0xff]
      %v791 = vld [vmem:[%s755 + $0x118] sm:$0xff]
      %v792 = vld [vmem:[%s755 + $0x120] sm:$0xff]
      %v793 = vld [vmem:[%s755 + $0x128] sm:$0xff]
      %v794 = vld [vmem:[%s755 + $0x130] sm:$0xff]
      %v795 = vld [vmem:[%s755 + $0x138] sm:$0xff]
      %v796 = vld [vmem:[%s755 + $0x140] sm:$0xff]
      %v797 = vld [vmem:[%s755 + $0x148] sm:$0xff]
      %v798 = vld [vmem:[%s755 + $0x150] sm:$0xff]
      %v799 = vld [vmem:[%s755 + $0x158] sm:$0xff]
      %v800 = vld [vmem:[%s755 + $0x160] sm:$0xff]
      %v801 = vld [vmem:[%s755 + $0x168] sm:$0xff]
      %v802 = vld [vmem:[%s755 + $0x170] sm:$0xff]
      %v803 = vld [vmem:[%s755 + $0x178] sm:$0xff]
      %s804 = scalar_lea.vmem %s5, 3
      %v805 = vld [vmem:[%s804] sm:$0x7]
      %v807 = vlaneseq
      %v808 = vshrl.u32 %v807, 7
      %v809 = vsub.s32 0, %v808
      %v810 = vrot.slane %v805, %v809
      %v811 = vlaneseq
      %v812 = vshrl.u32 %v811, 7
      %v813 = vsub.s32 1, %v812
      %v814 = vrot.slane %v805, %v813
      %v815 = vlaneseq
      %v816 = vshrl.u32 %v815, 7
      %v817 = vsub.s32 2, %v816
      %v818 = vrot.slane %v805, %v817
      %822 = vmatprep.subr.mxu0 %v802
      %823 = vmatpush1.msra.mxu0 %v801
      %824 = vmatprep.subr.mxu0 %v799
      %825 = vmatpush1.msra.mxu0 %v798
      %826 = vmatprep.subr.mxu0 %v796
      %827 = vmatpush1.msra.mxu0 %v795
      %828 = vmatprep.subr.mxu0 %v793
      %829 = vmatpush1.msra.mxu0 %v792
      %830 = vmatprep.subr.mxu0 %v790
      %831 = vmatpush1.msra.mxu0 %v789
      %832 = vmatprep.subr.mxu0 %v787
      %833 = vmatpush1.msra.mxu0 %v786
      %834 = vmatprep.subr.mxu0 %v784
      %835 = vmatpush1.msra.mxu0 %v783
      %836 = vmatprep.subr.mxu0 %v781
      %837 = vmatpush1.msra.mxu0 %v780
      %838 = vmatprep.subr.mxu0 %v778
      %839 = vmatpush1.msra.mxu0 %v777
      %840 = vmatprep.subr.mxu0 %v775
      %841 = vmatpush1.msra.mxu0 %v774
      %842 = vmatprep.subr.mxu0 %v772
      %843 = vmatpush1.msra.mxu0 %v771
      %844 = vmatprep.subr.mxu0 %v769
      %845 = vmatpush1.msra.mxu0 %v768
      %846 = vmatprep.subr.mxu0 %v766
      %847 = vmatpush1.msra.mxu0 %v765
      %848 = vmatprep.subr.mxu0 %v763
      %849 = vmatpush1.msra.mxu0 %v762
      %850 = vmatprep.subr.mxu0 %v760
      %851 = vmatpush1.msra.mxu0 %v759
      %852 = vmatprep.subr.mxu0 %v757
      %853 = vmatpush1.msra.mxu0 %v756
      %854 = vmatprep.subr.mxu0 0.0
      %855 = vmatpush2.msra.mxu0 0.0
      %856 = vmatprep.subr.mxu0 0.0
      %857 = vmatpush2.msra.mxu0 0.0
      %858 = vmatprep.subr.mxu0 0.0
      %859 = vmatpush2.msra.mxu0 0.0
      %860 = vmatprep.subr.mxu0 0.0
      %861 = vmatpush2.msra.mxu0 0.0
      %862 = vmatprep.subr.mxu0 0.0
      %863 = vmatpush2.msra.mxu0 0.0
      %864 = vmatprep.subr.mxu0 0.0
      %865 = vmatpush2.msra.mxu0 0.0
      %866 = vmatprep.subr.mxu0 0.0
      %867 = vmatpush2.msra.mxu0 0.0
      %868 = vmatprep.subr.mxu0 0.0
      %869 = vmatpush2.msra.mxu0 0.0
      %870 = vmatprep.subr.mxu0 0.0
      %871 = vmatpush2.msra.mxu0 0.0
      %872 = vmatprep.subr.mxu0 0.0
      %873 = vmatpush2.msra.mxu0 0.0
      %874 = vmatprep.subr.mxu0 0.0
      %875 = vmatpush2.msra.mxu0 0.0
      %876 = vmatprep.subr.mxu0 0.0
      %877 = vmatpush2.msra.mxu0 0.0
      %878 = vmatprep.subr.mxu0 0.0
      %879 = vmatpush2.msra.mxu0 0.0
      %880 = vmatprep.subr.mxu0 0.0
      %881 = vmatpush2.msra.mxu0 0.0
      %882 = vmatprep.subr.mxu0 0.0
      %883 = vmatpush2.msra.mxu0 0.0
      %884 = vmatprep.subr.mxu0 0.0
      %885 = vmatpush2.msra.mxu0 0.0
      %886 = vmatprep.mubr.f32.mxu0 0.0
      %887 = vmatmul.mubr.f32.gmra.mxu0 %v747
      %v888 = vpop.f32.mrf.mxu0
      %v889 = vadd.f32 %v810, %v888
      %v890 = vpop.f32.mrf.mxu0
      %v891 = vadd.f32 %v814, %v890
      %892 = vmatprep.mubr.f32.mxu0 0.0
      %893 = vmatmul.mubr.f32.gmra.mxu0 %v748
      %v894 = vpop.f32.mrf.mxu0
      %v895 = vadd.f32 %v810, %v894
      %v896 = vpop.f32.mrf.mxu0
      %v897 = vadd.f32 %v814, %v896
      %898 = vmatprep.mubr.f32.mxu0 0.0
      %899 = vmatmul.mubr.f32.gmra.mxu0 %v749
      %v900 = vpop.f32.mrf.mxu0
      %v901 = vadd.f32 %v810, %v900
      %v902 = vpop.f32.mrf.mxu0
      %v903 = vadd.f32 %v814, %v902
      %904 = vmatprep.mubr.f32.mxu0 0.0
      %905 = vmatmul.mubr.f32.gmra.mxu0 %v750
      %v906 = vpop.f32.mrf.mxu0
      %v907 = vadd.f32 %v810, %v906
      %v908 = vpop.f32.mrf.mxu0
      %v909 = vadd.f32 %v814, %v908
      %910 = vmatprep.mubr.f32.mxu0 0.0
      %911 = vmatmul.mubr.f32.gmra.mxu0 %v751
      %v912 = vpop.f32.mrf.mxu0
      %v913 = vadd.f32 %v810, %v912
      %v914 = vpop.f32.mrf.mxu0
      %v915 = vadd.f32 %v814, %v914
      %916 = vmatprep.mubr.f32.mxu0 0.0
      %917 = vmatmul.mubr.f32.gmra.mxu0 %v752
      %v918 = vpop.f32.mrf.mxu0
      %v919 = vadd.f32 %v810, %v918
      %v920 = vpop.f32.mrf.mxu0
      %v921 = vadd.f32 %v814, %v920
      %922 = vmatprep.mubr.f32.mxu0 0.0
      %923 = vmatmul.mubr.f32.gmra.mxu0 %v753
      %v924 = vpop.f32.mrf.mxu0
      %v925 = vadd.f32 %v810, %v924
      %v926 = vpop.f32.mrf.mxu0
      %v927 = vadd.f32 %v814, %v926
      %928 = vmatprep.mubr.f32.mxu0 0.0
      %929 = vmatmul.mubr.f32.gmra.mxu0 %v754
      %v930 = vpop.f32.mrf.mxu0
      %v931 = vadd.f32 %v810, %v930
      %v932 = vpop.f32.mrf.mxu0
      %v933 = vadd.f32 %v814, %v932
      %934 = vdwg.mxu0
      %935 = vmatprep.subr.mxu0 0.0
      %936 = vmatpush1.msra.mxu0 %v803
      %937 = vmatprep.subr.mxu0 0.0
      %938 = vmatpush1.msra.mxu0 %v800
      %939 = vmatprep.subr.mxu0 0.0
      %940 = vmatpush1.msra.mxu0 %v797
      %941 = vmatprep.subr.mxu0 0.0
      %942 = vmatpush1.msra.mxu0 %v794
      %943 = vmatprep.subr.mxu0 0.0
      %944 = vmatpush1.msra.mxu0 %v791
      %945 = vmatprep.subr.mxu0 0.0
      %946 = vmatpush1.msra.mxu0 %v788
      %947 = vmatprep.subr.mxu0 0.0
      %948 = vmatpush1.msra.mxu0 %v785
      %949 = vmatprep.subr.mxu0 0.0
      %950 = vmatpush1.msra.mxu0 %v782
      %951 = vmatprep.subr.mxu0 0.0
      %952 = vmatpush1.msra.mxu0 %v779
      %953 = vmatprep.subr.mxu0 0.0
      %954 = vmatpush1.msra.mxu0 %v776
      %955 = vmatprep.subr.mxu0 0.0
      %956 = vmatpush1.msra.mxu0 %v773
      %957 = vmatprep.subr.mxu0 0.0
      %958 = vmatpush1.msra.mxu0 %v770
      %959 = vmatprep.subr.mxu0 0.0
      %960 = vmatpush1.msra.mxu0 %v767
      %961 = vmatprep.subr.mxu0 0.0
      %962 = vmatpush1.msra.mxu0 %v764
      %963 = vmatprep.subr.mxu0 0.0
      %964 = vmatpush1.msra.mxu0 %v761
      %965 = vmatprep.subr.mxu0 0.0
      %966 = vmatpush1.msra.mxu0 %v758
      %967 = vmatprep.subr.mxu0 0.0
      %968 = vmatpush2.msra.mxu0 0.0
      %969 = vmatprep.subr.mxu0 0.0
      %970 = vmatpush2.msra.mxu0 0.0
      %971 = vmatprep.subr.mxu0 0.0
      %972 = vmatpush2.msra.mxu0 0.0
      %973 = vmatprep.subr.mxu0 0.0
      %974 = vmatpush2.msra.mxu0 0.0
      %975 = vmatprep.subr.mxu0 0.0
      %976 = vmatpush2.msra.mxu0 0.0
      %977 = vmatprep.subr.mxu0 0.0
      %978 = vmatpush2.msra.mxu0 0.0
      %979 = vmatprep.subr.mxu0 0.0
      %980 = vmatpush2.msra.mxu0 0.0
      %981 = vmatprep.subr.mxu0 0.0
      %982 = vmatpush2.msra.mxu0 0.0
      %983 = vmatprep.subr.mxu0 0.0
      %984 = vmatpush2.msra.mxu0 0.0
      %985 = vmatprep.subr.mxu0 0.0
      %986 = vmatpush2.msra.mxu0 0.0
      %987 = vmatprep.subr.mxu0 0.0
      %988 = vmatpush2.msra.mxu0 0.0
      %989 = vmatprep.subr.mxu0 0.0
      %990 = vmatpush2.msra.mxu0 0.0
      %991 = vmatprep.subr.mxu0 0.0
      %992 = vmatpush2.msra.mxu0 0.0
      %993 = vmatprep.subr.mxu0 0.0
      %994 = vmatpush2.msra.mxu0 0.0
      %995 = vmatprep.subr.mxu0 0.0
      %996 = vmatpush2.msra.mxu0 0.0
      %997 = vmatprep.subr.mxu0 0.0
      %998 = vmatpush2.msra.mxu0 0.0
      %999 = vmatprep.mubr.f32.mxu0 0.0
      %1000 = vmatmul.mubr.f32.gmra.mxu0 %v747
      %v1001 = vpop.f32.mrf.mxu0
      %v1002 = vadd.f32 %v818, %v1001
      %v1003 = vpop.f32.mrf.mxu0
      %1004 = vmatprep.mubr.f32.mxu0 0.0
      %1005 = vmatmul.mubr.f32.gmra.mxu0 %v748
      %v1006 = vpop.f32.mrf.mxu0
      %v1007 = vadd.f32 %v818, %v1006
      %v1008 = vpop.f32.mrf.mxu0
      %1009 = vmatprep.mubr.f32.mxu0 0.0
      %1010 = vmatmul.mubr.f32.gmra.mxu0 %v749
      %v1011 = vpop.f32.mrf.mxu0
      %v1012 = vadd.f32 %v818, %v1011
      %v1013 = vpop.f32.mrf.mxu0
      %1014 = vmatprep.mubr.f32.mxu0 0.0
      %1015 = vmatmul.mubr.f32.gmra.mxu0 %v750
      %v1016 = vpop.f32.mrf.mxu0
      %v1017 = vadd.f32 %v818, %v1016
      %v1018 = vpop.f32.mrf.mxu0
      %1019 = vmatprep.mubr.f32.mxu0 0.0
      %1020 = vmatmul.mubr.f32.gmra.mxu0 %v751
      %v1021 = vpop.f32.mrf.mxu0
      %v1022 = vadd.f32 %v818, %v1021
      %v1023 = vpop.f32.mrf.mxu0
      %1024 = vmatprep.mubr.f32.mxu0 0.0
      %1025 = vmatmul.mubr.f32.gmra.mxu0 %v752
      %v1026 = vpop.f32.mrf.mxu0
      %v1027 = vadd.f32 %v818, %v1026
      %v1028 = vpop.f32.mrf.mxu0
      %1029 = vmatprep.mubr.f32.mxu0 0.0
      %1030 = vmatmul.mubr.f32.gmra.mxu0 %v753
      %v1031 = vpop.f32.mrf.mxu0
      %v1032 = vadd.f32 %v818, %v1031
      %v1033 = vpop.f32.mrf.mxu0
      %1034 = vmatprep.mubr.f32.mxu0 0.0
      %1035 = vmatmul.mubr.f32.gmra.mxu0 %v754
      %v1036 = vpop.f32.mrf.mxu0
      %v1037 = vadd.f32 %v818, %v1036
      %v1038 = vpop.f32.mrf.mxu0
      %1039 = vdwg.mxu0
      %s1040 = scalar_lea.vmem [#allocation3], 192
      %1041 = vst [vmem:[%s1040] sm:$0xff] %v889
      %1042 = vst [vmem:[%s1040 + $0x8] sm:$0xff] %v891
      %1043 = vst [vmem:[%s1040 + $0x10] sm:$0xff] %v1002
      %1044 = vst [vmem:[%s1040 + $0x18] sm:$0xff] %v895
      %1045 = vst [vmem:[%s1040 + $0x20] sm:$0xff] %v897
      %1046 = vst [vmem:[%s1040 + $0x28] sm:$0xff] %v1007
      %1047 = vst [vmem:[%s1040 + $0x30] sm:$0xff] %v901
      %1048 = vst [vmem:[%s1040 + $0x38] sm:$0xff] %v903
      %1049 = vst [vmem:[%s1040 + $0x40] sm:$0xff] %v1012
      %1050 = vst [vmem:[%s1040 + $0x48] sm:$0xff] %v907
      %1051 = vst [vmem:[%s1040 + $0x50] sm:$0xff] %v909
      %1052 = vst [vmem:[%s1040 + $0x58] sm:$0xff] %v1017
      %1053 = vst [vmem:[%s1040 + $0x60] sm:$0xff] %v913
      %1054 = vst [vmem:[%s1040 + $0x68] sm:$0xff] %v915
      %1055 = vst [vmem:[%s1040 + $0x70] sm:$0xff] %v1022
      %1056 = vst [vmem:[%s1040 + $0x78] sm:$0xff] %v919
      %1057 = vst [vmem:[%s1040 + $0x80] sm:$0xff] %v921
      %1058 = vst [vmem:[%s1040 + $0x88] sm:$0xff] %v1027
      %1059 = vst [vmem:[%s1040 + $0x90] sm:$0xff] %v925
      %1060 = vst [vmem:[%s1040 + $0x98] sm:$0xff] %v927
      %1061 = vst [vmem:[%s1040 + $0xa0] sm:$0xff] %v1032
      %1062 = vst [vmem:[%s1040 + $0xa8] sm:$0xff] %v931
      %1063 = vst [vmem:[%s1040 + $0xb0] sm:$0xff] %v933
      %1064 = vst [vmem:[%s1040 + $0xb8] sm:$0xff] %v1037
      %v1065 = vld [vmem:[#allocation2] sm:$0xff]
      %v1066 = vld [vmem:[%s6] sm:$0xff]
      %v1067 = vld [vmem:[%s6 + $0x8] sm:$0xff]
      %v1068 = vld [vmem:[%s6 + $0x10] sm:$0xff]
      %v1069 = vld [vmem:[%s6 + $0x18] sm:$0xff]
      %v1070 = vld [vmem:[%s6 + $0x20] sm:$0xff]
      %v1071 = vld [vmem:[%s6 + $0x28] sm:$0xff]
      %v1072 = vld [vmem:[%s6 + $0x30] sm:$0xff]
      %v1073 = vld [vmem:[%s6 + $0x38] sm:$0xff]
      %v1074 = vld [vmem:[%s6 + $0x40] sm:$0xff]
      %v1075 = vld [vmem:[%s6 + $0x48] sm:$0xff]
      %v1076 = vld [vmem:[%s6 + $0x50] sm:$0xff]
      %v1077 = vld [vmem:[%s6 + $0x58] sm:$0xff]
      %v1078 = vld [vmem:[%s6 + $0x60] sm:$0xff]
      %v1079 = vld [vmem:[%s6 + $0x68] sm:$0xff]
      %v1080 = vld [vmem:[%s6 + $0x70] sm:$0xff]
      %v1081 = vld [vmem:[%s6 + $0x78] sm:$0xff]
      %v1082 = vld [vmem:[%s6 + $0x80] sm:$0xff]
      %v1083 = vld [vmem:[%s6 + $0x88] sm:$0xff]
      %v1084 = vld [vmem:[%s6 + $0x90] sm:$0xff]
      %v1085 = vld [vmem:[%s6 + $0x98] sm:$0xff]
      %v1086 = vld [vmem:[%s6 + $0xa0] sm:$0xff]
      %v1087 = vld [vmem:[%s6 + $0xa8] sm:$0xff]
      %v1088 = vld [vmem:[%s6 + $0xb0] sm:$0xff]
      %v1089 = vld [vmem:[%s6 + $0xb8] sm:$0xff]
      %v1090 = vld [vmem:[%s6 + $0xc0] sm:$0xff]
      %v1091 = vld [vmem:[%s6 + $0xc8] sm:$0xff]
      %v1092 = vld [vmem:[%s6 + $0xd0] sm:$0xff]
      %v1093 = vld [vmem:[%s6 + $0xd8] sm:$0xff]
      %v1094 = vld [vmem:[%s6 + $0xe0] sm:$0xff]
      %v1095 = vld [vmem:[%s6 + $0xe8] sm:$0xff]
      %v1096 = vld [vmem:[%s6 + $0xf0] sm:$0xff]
      %v1097 = vld [vmem:[%s6 + $0xf8] sm:$0xff]
      %v1098 = vld [vmem:[%s6 + $0x100] sm:$0xff]
      %v1099 = vld [vmem:[%s6 + $0x108] sm:$0xff]
      %v1100 = vld [vmem:[%s6 + $0x110] sm:$0xff]
      %v1101 = vld [vmem:[%s6 + $0x118] sm:$0xff]
      %v1102 = vld [vmem:[%s6 + $0x120] sm:$0xff]
      %v1103 = vld [vmem:[%s6 + $0x128] sm:$0xff]
      %v1104 = vld [vmem:[%s6 + $0x130] sm:$0xff]
      %v1105 = vld [vmem:[%s6 + $0x138] sm:$0xff]
      %v1106 = vld [vmem:[%s6 + $0x140] sm:$0xff]
      %v1107 = vld [vmem:[%s6 + $0x148] sm:$0xff]
      %v1108 = vld [vmem:[%s6 + $0x150] sm:$0xff]
      %v1109 = vld [vmem:[%s6 + $0x158] sm:$0xff]
      %v1110 = vld [vmem:[%s6 + $0x160] sm:$0xff]
      %v1111 = vld [vmem:[%s6 + $0x168] sm:$0xff]
      %v1112 = vld [vmem:[%s6 + $0x170] sm:$0xff]
      %v1113 = vld [vmem:[%s6 + $0x178] sm:$0xff]
      %v1114 = vld [vmem:[%s7] sm:$0x1]
      %1115 = vmatprep.subr.mxu0 %v1112
      %1116 = vmatpush1.msra.mxu0 %v1111
      %1117 = vmatprep.subr.mxu0 %v1109
      %1118 = vmatpush1.msra.mxu0 %v1108
      %1119 = vmatprep.subr.mxu0 %v1106
      %1120 = vmatpush1.msra.mxu0 %v1105
      %1121 = vmatprep.subr.mxu0 %v1103
      %1122 = vmatpush1.msra.mxu0 %v1102
      %1123 = vmatprep.subr.mxu0 %v1100
      %1124 = vmatpush1.msra.mxu0 %v1099
      %1125 = vmatprep.subr.mxu0 %v1097
      %1126 = vmatpush1.msra.mxu0 %v1096
      %1127 = vmatprep.subr.mxu0 %v1094
      %1128 = vmatpush1.msra.mxu0 %v1093
      %1129 = vmatprep.subr.mxu0 %v1091
      %1130 = vmatpush1.msra.mxu0 %v1090
      %1131 = vmatprep.subr.mxu0 %v1088
      %1132 = vmatpush1.msra.mxu0 %v1087
      %1133 = vmatprep.subr.mxu0 %v1085
      %1134 = vmatpush1.msra.mxu0 %v1084
      %1135 = vmatprep.subr.mxu0 %v1082
      %1136 = vmatpush1.msra.mxu0 %v1081
      %1137 = vmatprep.subr.mxu0 %v1079
      %1138 = vmatpush1.msra.mxu0 %v1078
      %1139 = vmatprep.subr.mxu0 %v1076
      %1140 = vmatpush1.msra.mxu0 %v1075
      %1141 = vmatprep.subr.mxu0 %v1073
      %1142 = vmatpush1.msra.mxu0 %v1072
      %1143 = vmatprep.subr.mxu0 %v1070
      %1144 = vmatpush1.msra.mxu0 %v1069
      %1145 = vmatprep.subr.mxu0 %v1067
      %1146 = vmatpush1.msra.mxu0 %v1066
      %1147 = vmatprep.subr.mxu0 0.0
      %1148 = vmatpush2.msra.mxu0 0.0
      %1149 = vmatprep.subr.mxu0 0.0
      %1150 = vmatpush2.msra.mxu0 0.0
      %1151 = vmatprep.subr.mxu0 0.0
      %1152 = vmatpush2.msra.mxu0 0.0
      %1153 = vmatprep.subr.mxu0 0.0
      %1154 = vmatpush2.msra.mxu0 0.0
      %1155 = vmatprep.subr.mxu0 0.0
      %1156 = vmatpush2.msra.mxu0 0.0
      %1157 = vmatprep.subr.mxu0 0.0
      %1158 = vmatpush2.msra.mxu0 0.0
      %1159 = vmatprep.subr.mxu0 0.0
      %1160 = vmatpush2.msra.mxu0 0.0
      %1161 = vmatprep.subr.mxu0 0.0
      %1162 = vmatpush2.msra.mxu0 0.0
      %1163 = vmatprep.subr.mxu0 0.0
      %1164 = vmatpush2.msra.mxu0 0.0
      %1165 = vmatprep.subr.mxu0 0.0
      %1166 = vmatpush2.msra.mxu0 0.0
      %1167 = vmatprep.subr.mxu0 0.0
      %1168 = vmatpush2.msra.mxu0 0.0
      %1169 = vmatprep.subr.mxu0 0.0
      %1170 = vmatpush2.msra.mxu0 0.0
      %1171 = vmatprep.subr.mxu0 0.0
      %1172 = vmatpush2.msra.mxu0 0.0
      %1173 = vmatprep.subr.mxu0 0.0
      %1174 = vmatpush2.msra.mxu0 0.0
      %1175 = vmatprep.subr.mxu0 0.0
      %1176 = vmatpush2.msra.mxu0 0.0
      %1177 = vmatprep.subr.mxu0 0.0
      %1178 = vmatpush2.msra.mxu0 0.0
      %1179 = vmatprep.mubr.f32.mxu0 0.0
      %1180 = vmatmul.mubr.f32.gmra.mxu0 %v1065
      %v1181 = vpop.f32.mrf.mxu0
      %v1182 = vadd.f32 0.0, %v1181
      %v1183 = vpop.f32.mrf.mxu0
      %v1184 = vadd.f32 0.0, %v1183
      %1185 = vdwg.mxu0
      %1186 = vmatprep.subr.mxu0 0.0
      %1187 = vmatpush1.msra.mxu0 %v1113
      %1188 = vmatprep.subr.mxu0 0.0
      %1189 = vmatpush1.msra.mxu0 %v1110
      %1190 = vmatprep.subr.mxu0 0.0
      %1191 = vmatpush1.msra.mxu0 %v1107
      %1192 = vmatprep.subr.mxu0 0.0
      %1193 = vmatpush1.msra.mxu0 %v1104
      %1194 = vmatprep.subr.mxu0 0.0
      %1195 = vmatpush1.msra.mxu0 %v1101
      %1196 = vmatprep.subr.mxu0 0.0
      %1197 = vmatpush1.msra.mxu0 %v1098
      %1198 = vmatprep.subr.mxu0 0.0
      %1199 = vmatpush1.msra.mxu0 %v1095
      %1200 = vmatprep.subr.mxu0 0.0
      %1201 = vmatpush1.msra.mxu0 %v1092
      %1202 = vmatprep.subr.mxu0 0.0
      %1203 = vmatpush1.msra.mxu0 %v1089
      %1204 = vmatprep.subr.mxu0 0.0
      %1205 = vmatpush1.msra.mxu0 %v1086
      %1206 = vmatprep.subr.mxu0 0.0
      %1207 = vmatpush1.msra.mxu0 %v1083
      %1208 = vmatprep.subr.mxu0 0.0
      %1209 = vmatpush1.msra.mxu0 %v1080
      %1210 = vmatprep.subr.mxu0 0.0
      %1211 = vmatpush1.msra.mxu0 %v1077
      %1212 = vmatprep.subr.mxu0 0.0
      %1213 = vmatpush1.msra.mxu0 %v1074
      %1214 = vmatprep.subr.mxu0 0.0
      %1215 = vmatpush1.msra.mxu0 %v1071
      %1216 = vmatprep.subr.mxu0 0.0
      %1217 = vmatpush1.msra.mxu0 %v1068
      %1218 = vmatprep.subr.mxu0 0.0
      %1219 = vmatpush2.msra.mxu0 0.0
      %1220 = vmatprep.subr.mxu0 0.0
      %1221 = vmatpush2.msra.mxu0 0.0
      %1222 = vmatprep.subr.mxu0 0.0
      %1223 = vmatpush2.msra.mxu0 0.0
      %1224 = vmatprep.subr.mxu0 0.0
      %1225 = vmatpush2.msra.mxu0 0.0
      %1226 = vmatprep.subr.mxu0 0.0
      %1227 = vmatpush2.msra.mxu0 0.0
      %1228 = vmatprep.subr.mxu0 0.0
      %1229 = vmatpush2.msra.mxu0 0.0
      %1230 = vmatprep.subr.mxu0 0.0
      %1231 = vmatpush2.msra.mxu0 0.0
      %1232 = vmatprep.subr.mxu0 0.0
      %1233 = vmatpush2.msra.mxu0 0.0
      %1234 = vmatprep.subr.mxu0 0.0
      %1235 = vmatpush2.msra.mxu0 0.0
      %1236 = vmatprep.subr.mxu0 0.0
      %1237 = vmatpush2.msra.mxu0 0.0
      %1238 = vmatprep.subr.mxu0 0.0
      %1239 = vmatpush2.msra.mxu0 0.0
      %1240 = vmatprep.subr.mxu0 0.0
      %1241 = vmatpush2.msra.mxu0 0.0
      %1242 = vmatprep.subr.mxu0 0.0
      %1243 = vmatpush2.msra.mxu0 0.0
      %1244 = vmatprep.subr.mxu0 0.0
      %1245 = vmatpush2.msra.mxu0 0.0
      %1246 = vmatprep.subr.mxu0 0.0
      %1247 = vmatpush2.msra.mxu0 0.0
      %1248 = vmatprep.subr.mxu0 0.0
      %1249 = vmatpush2.msra.mxu0 0.0
      %1250 = vmatprep.mubr.f32.mxu0 0.0
      %1251 = vmatmul.mubr.f32.gmra.mxu0 %v1065
      %v1252 = vpop.f32.mrf.mxu0
      %v1253 = vadd.f32 0.0, %v1252
      %v1254 = vpop.f32.mrf.mxu0
      %1255 = vdwg.mxu0
      %v1256 = vld [vmem:[#allocation3] sm:$0xff]
      %v1257 = vadd.f32 %v1256, %v1182
      %v1258 = vxor.u32 %v1257, 2147483648
      %v1259 = vmul.f32 %v1258, 1.442695
      %v1260 = vpow.pop %v1259
      %v1261 = vadd.f32 %v1260, 1.0
      %v1262 = vrcp.pop %v1261
      %v1263 = vmul.f32 1.0, %v1262
      %v1264 = vld [vmem:[#allocation3 + $0x8] sm:$0xff]
      %v1265 = vadd.f32 %v1264, %v1184
      %v1266 = vxor.u32 %v1265, 2147483648
      %v1267 = vmul.f32 %v1266, 1.442695
      %v1268 = vpow.pop %v1267
      %v1269 = vadd.f32 %v1268, 1.0
      %v1270 = vrcp.pop %v1269
      %v1271 = vmul.f32 1.0, %v1270
      %v1272 = vld [vmem:[#allocation3 + $0x10] sm:$0xff]
      %v1274 = vlaneseq
      %v1275 = vshrl.u32 %v1274, 7
      %v1276 = vsub.s32 0, %v1275
      %v1277 = vrot.slane %v1114, %v1276
      %v1279 = vadd.f32 %v1253, %v1277
      %v1280 = vmul.f32 %v1263, %v1279
      %v1281 = vadd.f32 %v1272, %v1280
      %v1282 = vtanh.pop %v1281
      %v1283 = vsub.f32 1.0, %v1271
      %v1284 = vmul.f32 %v1283, %v1282
      %v1285 = vmul.f32 %v1271, %v1065
      %v1286 = vadd.f32 %v1284, %v1285
      %1287 = vst [vmem:[%s374] sm:$0xff] %v1286
      %1288 = vmatprep.subr.mxu0 %v1112
      %1289 = vmatpush1.msra.mxu0 %v1111
      %1290 = vmatprep.subr.mxu0 %v1109
      %1291 = vmatpush1.msra.mxu0 %v1108
      %1292 = vmatprep.subr.mxu0 %v1106
      %1293 = vmatpush1.msra.mxu0 %v1105
      %1294 = vmatprep.subr.mxu0 %v1103
      %1295 = vmatpush1.msra.mxu0 %v1102
      %1296 = vmatprep.subr.mxu0 %v1100
      %1297 = vmatpush1.msra.mxu0 %v1099
      %1298 = vmatprep.subr.mxu0 %v1097
      %1299 = vmatpush1.msra.mxu0 %v1096
      %1300 = vmatprep.subr.mxu0 %v1094
      %1301 = vmatpush1.msra.mxu0 %v1093
      %1302 = vmatprep.subr.mxu0 %v1091
      %1303 = vmatpush1.msra.mxu0 %v1090
      %1304 = vmatprep.subr.mxu0 %v1088
      %1305 = vmatpush1.msra.mxu0 %v1087
      %1306 = vmatprep.subr.mxu0 %v1085
      %1307 = vmatpush1.msra.mxu0 %v1084
      %1308 = vmatprep.subr.mxu0 %v1082
      %1309 = vmatpush1.msra.mxu0 %v1081
      %1310 = vmatprep.subr.mxu0 %v1079
      %1311 = vmatpush1.msra.mxu0 %v1078
      %1312 = vmatprep.subr.mxu0 %v1076
      %1313 = vmatpush1.msra.mxu0 %v1075
      %1314 = vmatprep.subr.mxu0 %v1073
      %1315 = vmatpush1.msra.mxu0 %v1072
      %1316 = vmatprep.subr.mxu0 %v1070
      %1317 = vmatpush1.msra.mxu0 %v1069
      %1318 = vmatprep.subr.mxu0 %v1067
      %1319 = vmatpush1.msra.mxu0 %v1066
      %1320 = vmatprep.subr.mxu0 0.0
      %1321 = vmatpush2.msra.mxu0 0.0
      %1322 = vmatprep.subr.mxu0 0.0
      %1323 = vmatpush2.msra.mxu0 0.0
      %1324 = vmatprep.subr.mxu0 0.0
      %1325 = vmatpush2.msra.mxu0 0.0
      %1326 = vmatprep.subr.mxu0 0.0
      %1327 = vmatpush2.msra.mxu0 0.0
      %1328 = vmatprep.subr.mxu0 0.0
      %1329 = vmatpush2.msra.mxu0 0.0
      %1330 = vmatprep.subr.mxu0 0.0
      %1331 = vmatpush2.msra.mxu0 0.0
      %1332 = vmatprep.subr.mxu0 0.0
      %1333 = vmatpush2.msra.mxu0 0.0
      %1334 = vmatprep.subr.mxu0 0.0
      %1335 = vmatpush2.msra.mxu0 0.0
      %1336 = vmatprep.subr.mxu0 0.0
      %1337 = vmatpush2.msra.mxu0 0.0
      %1338 = vmatprep.subr.mxu0 0.0
      %1339 = vmatpush2.msra.mxu0 0.0
      %1340 = vmatprep.subr.mxu0 0.0
      %1341 = vmatpush2.msra.mxu0 0.0
      %1342 = vmatprep.subr.mxu0 0.0
      %1343 = vmatpush2.msra.mxu0 0.0
      %1344 = vmatprep.subr.mxu0 0.0
      %1345 = vmatpush2.msra.mxu0 0.0
      %1346 = vmatprep.subr.mxu0 0.0
      %1347 = vmatpush2.msra.mxu0 0.0
      %1348 = vmatprep.subr.mxu0 0.0
      %1349 = vmatpush2.msra.mxu0 0.0
      %1350 = vmatprep.subr.mxu0 0.0
      %1351 = vmatpush2.msra.mxu0 0.0
      %1352 = vmatprep.mubr.f32.mxu0 0.0
      %1353 = vmatmul.mubr.f32.gmra.mxu0 %v1286
      %v1354 = vpop.f32.mrf.mxu0
      %v1355 = vadd.f32 0.0, %v1354
      %v1356 = vpop.f32.mrf.mxu0
      %v1357 = vadd.f32 0.0, %v1356
      %1358 = vdwg.mxu0
      %1359 = vmatprep.subr.mxu0 0.0
      %1360 = vmatpush1.msra.mxu0 %v1113
      %1361 = vmatprep.subr.mxu0 0.0
      %1362 = vmatpush1.msra.mxu0 %v1110
      %1363 = vmatprep.subr.mxu0 0.0
      %1364 = vmatpush1.msra.mxu0 %v1107
      %1365 = vmatprep.subr.mxu0 0.0
      %1366 = vmatpush1.msra.mxu0 %v1104
      %1367 = vmatprep.subr.mxu0 0.0
      %1368 = vmatpush1.msra.mxu0 %v1101
      %1369 = vmatprep.subr.mxu0 0.0
      %1370 = vmatpush1.msra.mxu0 %v1098
      %1371 = vmatprep.subr.mxu0 0.0
      %1372 = vmatpush1.msra.mxu0 %v1095
      %1373 = vmatprep.subr.mxu0 0.0
      %1374 = vmatpush1.msra.mxu0 %v1092
      %1375 = vmatprep.subr.mxu0 0.0
      %1376 = vmatpush1.msra.mxu0 %v1089
      %1377 = vmatprep.subr.mxu0 0.0
      %1378 = vmatpush1.msra.mxu0 %v1086
      %1379 = vmatprep.subr.mxu0 0.0
      %1380 = vmatpush1.msra.mxu0 %v1083
      %1381 = vmatprep.subr.mxu0 0.0
      %1382 = vmatpush1.msra.mxu0 %v1080
      %1383 = vmatprep.subr.mxu0 0.0
      %1384 = vmatpush1.msra.mxu0 %v1077
      %1385 = vmatprep.subr.mxu0 0.0
      %1386 = vmatpush1.msra.mxu0 %v1074
      %1387 = vmatprep.subr.mxu0 0.0
      %1388 = vmatpush1.msra.mxu0 %v1071
      %1389 = vmatprep.subr.mxu0 0.0
      %1390 = vmatpush1.msra.mxu0 %v1068
      %1391 = vmatprep.subr.mxu0 0.0
      %1392 = vmatpush2.msra.mxu0 0.0
      %1393 = vmatprep.subr.mxu0 0.0
      %1394 = vmatpush2.msra.mxu0 0.0
      %1395 = vmatprep.subr.mxu0 0.0
      %1396 = vmatpush2.msra.mxu0 0.0
      %1397 = vmatprep.subr.mxu0 0.0
      %1398 = vmatpush2.msra.mxu0 0.0
      %1399 = vmatprep.subr.mxu0 0.0
      %1400 = vmatpush2.msra.mxu0 0.0
      %1401 = vmatprep.subr.mxu0 0.0
      %1402 = vmatpush2.msra.mxu0 0.0
      %1403 = vmatprep.subr.mxu0 0.0
      %1404 = vmatpush2.msra.mxu0 0.0
      %1405 = vmatprep.subr.mxu0 0.0
      %1406 = vmatpush2.msra.mxu0 0.0
      %1407 = vmatprep.subr.mxu0 0.0
      %1408 = vmatpush2.msra.mxu0 0.0
      %1409 = vmatprep.subr.mxu0 0.0
      %1410 = vmatpush2.msra.mxu0 0.0
      %1411 = vmatprep.subr.mxu0 0.0
      %1412 = vmatpush2.msra.mxu0 0.0
      %1413 = vmatprep.subr.mxu0 0.0
      %1414 = vmatpush2.msra.mxu0 0.0
      %1415 = vmatprep.subr.mxu0 0.0
      %1416 = vmatpush2.msra.mxu0 0.0
      %1417 = vmatprep.subr.mxu0 0.0
      %1418 = vmatpush2.msra.mxu0 0.0
      %1419 = vmatprep.subr.mxu0 0.0
      %1420 = vmatpush2.msra.mxu0 0.0
      %1421 = vmatprep.subr.mxu0 0.0
      %1422 = vmatpush2.msra.mxu0 0.0
      %1423 = vmatprep.mubr.f32.mxu0 0.0
      %1424 = vmatmul.mubr.f32.gmra.mxu0 %v1286
      %v1425 = vpop.f32.mrf.mxu0
      %v1426 = vadd.f32 0.0, %v1425
      %v1427 = vpop.f32.mrf.mxu0
      %1428 = vdwg.mxu0
      %v1429 = vld [vmem:[#allocation3 + $0x18] sm:$0xff]
      %v1430 = vadd.f32 %v1429, %v1355
      %v1431 = vxor.u32 %v1430, 2147483648
      %v1432 = vmul.f32 %v1431, 1.442695
      %v1433 = vpow.pop %v1432
      %v1434 = vadd.f32 %v1433, 1.0
      %v1435 = vrcp.pop %v1434
      %v1436 = vmul.f32 1.0, %v1435
      %v1437 = vld [vmem:[#allocation3 + $0x20] sm:$0xff]
      %v1438 = vadd.f32 %v1437, %v1357
      %v1439 = vxor.u32 %v1438, 2147483648
      %v1440 = vmul.f32 %v1439, 1.442695
      %v1441 = vpow.pop %v1440
      %v1442 = vadd.f32 %v1441, 1.0
      %v1443 = vrcp.pop %v1442
      %v1444 = vmul.f32 1.0, %v1443
      %v1445 = vld [vmem:[#allocation3 + $0x28] sm:$0xff]
      %v1446 = vadd.f32 %v1426, %v1277
      %v1447 = vmul.f32 %v1436, %v1446
      %v1448 = vadd.f32 %v1445, %v1447
      %v1449 = vtanh.pop %v1448
      %v1450 = vsub.f32 1.0, %v1444
      %v1451 = vmul.f32 %v1450, %v1449
      %v1452 = vmul.f32 %v1444, %v1286
      %v1453 = vadd.f32 %v1451, %v1452
      %1454 = vst [vmem:[%s374 + $0x8] sm:$0xff] %v1453
      %1455 = vmatprep.subr.mxu0 %v1112
      %1456 = vmatpush1.msra.mxu0 %v1111
      %1457 = vmatprep.subr.mxu0 %v1109
      %1458 = vmatpush1.msra.mxu0 %v1108
      %1459 = vmatprep.subr.mxu0 %v1106
      %1460 = vmatpush1.msra.mxu0 %v1105
      %1461 = vmatprep.subr.mxu0 %v1103
      %1462 = vmatpush1.msra.mxu0 %v1102
      %1463 = vmatprep.subr.mxu0 %v1100
      %1464 = vmatpush1.msra.mxu0 %v1099
      %1465 = vmatprep.subr.mxu0 %v1097
      %1466 = vmatpush1.msra.mxu0 %v1096
      %1467 = vmatprep.subr.mxu0 %v1094
      %1468 = vmatpush1.msra.mxu0 %v1093
      %1469 = vmatprep.subr.mxu0 %v1091
      %1470 = vmatpush1.msra.mxu0 %v1090
      %1471 = vmatprep.subr.mxu0 %v1088
      %1472 = vmatpush1.msra.mxu0 %v1087
      %1473 = vmatprep.subr.mxu0 %v1085
      %1474 = vmatpush1.msra.mxu0 %v1084
      %1475 = vmatprep.subr.mxu0 %v1082
      %1476 = vmatpush1.msra.mxu0 %v1081
      %1477 = vmatprep.subr.mxu0 %v1079
      %1478 = vmatpush1.msra.mxu0 %v1078
      %1479 = vmatprep.subr.mxu0 %v1076
      %1480 = vmatpush1.msra.mxu0 %v1075
      %1481 = vmatprep.subr.mxu0 %v1073
      %1482 = vmatpush1.msra.mxu0 %v1072
      %1483 = vmatprep.subr.mxu0 %v1070
      %1484 = vmatpush1.msra.mxu0 %v1069
      %1485 = vmatprep.subr.mxu0 %v1067
      %1486 = vmatpush1.msra.mxu0 %v1066
      %1487 = vmatprep.subr.mxu0 0.0
      %1488 = vmatpush2.msra.mxu0 0.0
      %1489 = vmatprep.subr.mxu0 0.0
      %1490 = vmatpush2.msra.mxu0 0.0
      %1491 = vmatprep.subr.mxu0 0.0
      %1492 = vmatpush2.msra.mxu0 0.0
      %1493 = vmatprep.subr.mxu0 0.0
      %1494 = vmatpush2.msra.mxu0 0.0
      %1495 = vmatprep.subr.mxu0 0.0
      %1496 = vmatpush2.msra.mxu0 0.0
      %1497 = vmatprep.subr.mxu0 0.0
      %1498 = vmatpush2.msra.mxu0 0.0
      %1499 = vmatprep.subr.mxu0 0.0
      %1500 = vmatpush2.msra.mxu0 0.0
      %1501 = vmatprep.subr.mxu0 0.0
      %1502 = vmatpush2.msra.mxu0 0.0
      %1503 = vmatprep.subr.mxu0 0.0
      %1504 = vmatpush2.msra.mxu0 0.0
      %1505 = vmatprep.subr.mxu0 0.0
      %1506 = vmatpush2.msra.mxu0 0.0
      %1507 = vmatprep.subr.mxu0 0.0
      %1508 = vmatpush2.msra.mxu0 0.0
      %1509 = vmatprep.subr.mxu0 0.0
      %1510 = vmatpush2.msra.mxu0 0.0
      %1511 = vmatprep.subr.mxu0 0.0
      %1512 = vmatpush2.msra.mxu0 0.0
      %1513 = vmatprep.subr.mxu0 0.0
      %1514 = vmatpush2.msra.mxu0 0.0
      %1515 = vmatprep.subr.mxu0 0.0
      %1516 = vmatpush2.msra.mxu0 0.0
      %1517 = vmatprep.subr.mxu0 0.0
      %1518 = vmatpush2.msra.mxu0 0.0
      %1519 = vmatprep.mubr.f32.mxu0 0.0
      %1520 = vmatmul.mubr.f32.gmra.mxu0 %v1453
      %v1521 = vpop.f32.mrf.mxu0
      %v1522 = vadd.f32 0.0, %v1521
      %v1523 = vpop.f32.mrf.mxu0
      %v1524 = vadd.f32 0.0, %v1523
      %1525 = vdwg.mxu0
      %1526 = vmatprep.subr.mxu0 0.0
      %1527 = vmatpush1.msra.mxu0 %v1113
      %1528 = vmatprep.subr.mxu0 0.0
      %1529 = vmatpush1.msra.mxu0 %v1110
      %1530 = vmatprep.subr.mxu0 0.0
      %1531 = vmatpush1.msra.mxu0 %v1107
      %1532 = vmatprep.subr.mxu0 0.0
      %1533 = vmatpush1.msra.mxu0 %v1104
      %1534 = vmatprep.subr.mxu0 0.0
      %1535 = vmatpush1.msra.mxu0 %v1101
      %1536 = vmatprep.subr.mxu0 0.0
      %1537 = vmatpush1.msra.mxu0 %v1098
      %1538 = vmatprep.subr.mxu0 0.0
      %1539 = vmatpush1.msra.mxu0 %v1095
      %1540 = vmatprep.subr.mxu0 0.0
      %1541 = vmatpush1.msra.mxu0 %v1092
      %1542 = vmatprep.subr.mxu0 0.0
      %1543 = vmatpush1.msra.mxu0 %v1089
      %1544 = vmatprep.subr.mxu0 0.0
      %1545 = vmatpush1.msra.mxu0 %v1086
      %1546 = vmatprep.subr.mxu0 0.0
      %1547 = vmatpush1.msra.mxu0 %v1083
      %1548 = vmatprep.subr.mxu0 0.0
      %1549 = vmatpush1.msra.mxu0 %v1080
      %1550 = vmatprep.subr.mxu0 0.0
      %1551 = vmatpush1.msra.mxu0 %v1077
      %1552 = vmatprep.subr.mxu0 0.0
      %1553 = vmatpush1.msra.mxu0 %v1074
      %1554 = vmatprep.subr.mxu0 0.0
      %1555 = vmatpush1.msra.mxu0 %v1071
      %1556 = vmatprep.subr.mxu0 0.0
      %1557 = vmatpush1.msra.mxu0 %v1068
      %1558 = vmatprep.subr.mxu0 0.0
      %1559 = vmatpush2.msra.mxu0 0.0
      %1560 = vmatprep.subr.mxu0 0.0
      %1561 = vmatpush2.msra.mxu0 0.0
      %1562 = vmatprep.subr.mxu0 0.0
      %1563 = vmatpush2.msra.mxu0 0.0
      %1564 = vmatprep.subr.mxu0 0.0
      %1565 = vmatpush2.msra.mxu0 0.0
      %1566 = vmatprep.subr.mxu0 0.0
      %1567 = vmatpush2.msra.mxu0 0.0
      %1568 = vmatprep.subr.mxu0 0.0
      %1569 = vmatpush2.msra.mxu0 0.0
      %1570 = vmatprep.subr.mxu0 0.0
      %1571 = vmatpush2.msra.mxu0 0.0
      %1572 = vmatprep.subr.mxu0 0.0
      %1573 = vmatpush2.msra.mxu0 0.0
      %1574 = vmatprep.subr.mxu0 0.0
      %1575 = vmatpush2.msra.mxu0 0.0
      %1576 = vmatprep.subr.mxu0 0.0
      %1577 = vmatpush2.msra.mxu0 0.0
      %1578 = vmatprep.subr.mxu0 0.0
      %1579 = vmatpush2.msra.mxu0 0.0
      %1580 = vmatprep.subr.mxu0 0.0
      %1581 = vmatpush2.msra.mxu0 0.0
      %1582 = vmatprep.subr.mxu0 0.0
      %1583 = vmatpush2.msra.mxu0 0.0
      %1584 = vmatprep.subr.mxu0 0.0
      %1585 = vmatpush2.msra.mxu0 0.0
      %1586 = vmatprep.subr.mxu0 0.0
      %1587 = vmatpush2.msra.mxu0 0.0
      %1588 = vmatprep.subr.mxu0 0.0
      %1589 = vmatpush2.msra.mxu0 0.0
      %1590 = vmatprep.mubr.f32.mxu0 0.0
      %1591 = vmatmul.mubr.f32.gmra.mxu0 %v1453
      %v1592 = vpop.f32.mrf.mxu0
      %v1593 = vadd.f32 0.0, %v1592
      %v1594 = vpop.f32.mrf.mxu0
      %1595 = vdwg.mxu0
      %v1596 = vld [vmem:[#allocation3 + $0x30] sm:$0xff]
      %v1597 = vadd.f32 %v1596, %v1522
      %v1598 = vxor.u32 %v1597, 2147483648
      %v1599 = vmul.f32 %v1598, 1.442695
      %v1600 = vpow.pop %v1599
      %v1601 = vadd.f32 %v1600, 1.0
      %v1602 = vrcp.pop %v1601
      %v1603 = vmul.f32 1.0, %v1602
      %v1604 = vld [vmem:[#allocation3 + $0x38] sm:$0xff]
      %v1605 = vadd.f32 %v1604, %v1524
      %v1606 = vxor.u32 %v1605, 2147483648
      %v1607 = vmul.f32 %v1606, 1.442695
      %v1608 = vpow.pop %v1607
      %v1609 = vadd.f32 %v1608, 1.0
      %v1610 = vrcp.pop %v1609
      %v1611 = vmul.f32 1.0, %v1610
      %v1612 = vld [vmem:[#allocation3 + $0x40] sm:$0xff]
      %v1613 = vadd.f32 %v1593, %v1277
      %v1614 = vmul.f32 %v1603, %v1613
      %v1615 = vadd.f32 %v1612, %v1614
      %v1616 = vtanh.pop %v1615
      %v1617 = vsub.f32 1.0, %v1611
      %v1618 = vmul.f32 %v1617, %v1616
      %v1619 = vmul.f32 %v1611, %v1453
      %v1620 = vadd.f32 %v1618, %v1619
      %1621 = vst [vmem:[%s374 + $0x10] sm:$0xff] %v1620
      %1622 = vmatprep.subr.mxu0 %v1112
      %1623 = vmatpush1.msra.mxu0 %v1111
      %1624 = vmatprep.subr.mxu0 %v1109
      %1625 = vmatpush1.msra.mxu0 %v1108
      %1626 = vmatprep.subr.mxu0 %v1106
      %1627 = vmatpush1.msra.mxu0 %v1105
      %1628 = vmatprep.subr.mxu0 %v1103
      %1629 = vmatpush1.msra.mxu0 %v1102
      %1630 = vmatprep.subr.mxu0 %v1100
      %1631 = vmatpush1.msra.mxu0 %v1099
      %1632 = vmatprep.subr.mxu0 %v1097
      %1633 = vmatpush1.msra.mxu0 %v1096
      %1634 = vmatprep.subr.mxu0 %v1094
      %1635 = vmatpush1.msra.mxu0 %v1093
      %1636 = vmatprep.subr.mxu0 %v1091
      %1637 = vmatpush1.msra.mxu0 %v1090
      %1638 = vmatprep.subr.mxu0 %v1088
      %1639 = vmatpush1.msra.mxu0 %v1087
      %1640 = vmatprep.subr.mxu0 %v1085
      %1641 = vmatpush1.msra.mxu0 %v1084
      %1642 = vmatprep.subr.mxu0 %v1082
      %1643 = vmatpush1.msra.mxu0 %v1081
      %1644 = vmatprep.subr.mxu0 %v1079
      %1645 = vmatpush1.msra.mxu0 %v1078
      %1646 = vmatprep.subr.mxu0 %v1076
      %1647 = vmatpush1.msra.mxu0 %v1075
      %1648 = vmatprep.subr.mxu0 %v1073
      %1649 = vmatpush1.msra.mxu0 %v1072
      %1650 = vmatprep.subr.mxu0 %v1070
      %1651 = vmatpush1.msra.mxu0 %v1069
      %1652 = vmatprep.subr.mxu0 %v1067
      %1653 = vmatpush1.msra.mxu0 %v1066
      %1654 = vmatprep.subr.mxu0 0.0
      %1655 = vmatpush2.msra.mxu0 0.0
      %1656 = vmatprep.subr.mxu0 0.0
      %1657 = vmatpush2.msra.mxu0 0.0
      %1658 = vmatprep.subr.mxu0 0.0
      %1659 = vmatpush2.msra.mxu0 0.0
      %1660 = vmatprep.subr.mxu0 0.0
      %1661 = vmatpush2.msra.mxu0 0.0
      %1662 = vmatprep.subr.mxu0 0.0
      %1663 = vmatpush2.msra.mxu0 0.0
      %1664 = vmatprep.subr.mxu0 0.0
      %1665 = vmatpush2.msra.mxu0 0.0
      %1666 = vmatprep.subr.mxu0 0.0
      %1667 = vmatpush2.msra.mxu0 0.0
      %1668 = vmatprep.subr.mxu0 0.0
      %1669 = vmatpush2.msra.mxu0 0.0
      %1670 = vmatprep.subr.mxu0 0.0
      %1671 = vmatpush2.msra.mxu0 0.0
      %1672 = vmatprep.subr.mxu0 0.0
      %1673 = vmatpush2.msra.mxu0 0.0
      %1674 = vmatprep.subr.mxu0 0.0
      %1675 = vmatpush2.msra.mxu0 0.0
      %1676 = vmatprep.subr.mxu0 0.0
      %1677 = vmatpush2.msra.mxu0 0.0
      %1678 = vmatprep.subr.mxu0 0.0
      %1679 = vmatpush2.msra.mxu0 0.0
      %1680 = vmatprep.subr.mxu0 0.0
      %1681 = vmatpush2.msra.mxu0 0.0
      %1682 = vmatprep.subr.mxu0 0.0
      %1683 = vmatpush2.msra.mxu0 0.0
      %1684 = vmatprep.subr.mxu0 0.0
      %1685 = vmatpush2.msra.mxu0 0.0
      %1686 = vmatprep.mubr.f32.mxu0 0.0
      %1687 = vmatmul.mubr.f32.gmra.mxu0 %v1620
      %v1688 = vpop.f32.mrf.mxu0
      %v1689 = vadd.f32 0.0, %v1688
      %v1690 = vpop.f32.mrf.mxu0
      %v1691 = vadd.f32 0.0, %v1690
      %1692 = vdwg.mxu0
      %1693 = vmatprep.subr.mxu0 0.0
      %1694 = vmatpush1.msra.mxu0 %v1113
      %1695 = vmatprep.subr.mxu0 0.0
      %1696 = vmatpush1.msra.mxu0 %v1110
      %1697 = vmatprep.subr.mxu0 0.0
      %1698 = vmatpush1.msra.mxu0 %v1107
      %1699 = vmatprep.subr.mxu0 0.0
      %1700 = vmatpush1.msra.mxu0 %v1104
      %1701 = vmatprep.subr.mxu0 0.0
      %1702 = vmatpush1.msra.mxu0 %v1101
      %1703 = vmatprep.subr.mxu0 0.0
      %1704 = vmatpush1.msra.mxu0 %v1098
      %1705 = vmatprep.subr.mxu0 0.0
      %1706 = vmatpush1.msra.mxu0 %v1095
      %1707 = vmatprep.subr.mxu0 0.0
      %1708 = vmatpush1.msra.mxu0 %v1092
      %1709 = vmatprep.subr.mxu0 0.0
      %1710 = vmatpush1.msra.mxu0 %v1089
      %1711 = vmatprep.subr.mxu0 0.0
      %1712 = vmatpush1.msra.mxu0 %v1086
      %1713 = vmatprep.subr.mxu0 0.0
      %1714 = vmatpush1.msra.mxu0 %v1083
      %1715 = vmatprep.subr.mxu0 0.0
      %1716 = vmatpush1.msra.mxu0 %v1080
      %1717 = vmatprep.subr.mxu0 0.0
      %1718 = vmatpush1.msra.mxu0 %v1077
      %1719 = vmatprep.subr.mxu0 0.0
      %1720 = vmatpush1.msra.mxu0 %v1074
      %1721 = vmatprep.subr.mxu0 0.0
      %1722 = vmatpush1.msra.mxu0 %v1071
      %1723 = vmatprep.subr.mxu0 0.0
      %1724 = vmatpush1.msra.mxu0 %v1068
      %1725 = vmatprep.subr.mxu0 0.0
      %1726 = vmatpush2.msra.mxu0 0.0
      %1727 = vmatprep.subr.mxu0 0.0
      %1728 = vmatpush2.msra.mxu0 0.0
      %1729 = vmatprep.subr.mxu0 0.0
      %1730 = vmatpush2.msra.mxu0 0.0
      %1731 = vmatprep.subr.mxu0 0.0
      %1732 = vmatpush2.msra.mxu0 0.0
      %1733 = vmatprep.subr.mxu0 0.0
      %1734 = vmatpush2.msra.mxu0 0.0
      %1735 = vmatprep.subr.mxu0 0.0
      %1736 = vmatpush2.msra.mxu0 0.0
      %1737 = vmatprep.subr.mxu0 0.0
      %1738 = vmatpush2.msra.mxu0 0.0
      %1739 = vmatprep.subr.mxu0 0.0
      %1740 = vmatpush2.msra.mxu0 0.0
      %1741 = vmatprep.subr.mxu0 0.0
      %1742 = vmatpush2.msra.mxu0 0.0
      %1743 = vmatprep.subr.mxu0 0.0
      %1744 = vmatpush2.msra.mxu0 0.0
      %1745 = vmatprep.subr.mxu0 0.0
      %1746 = vmatpush2.msra.mxu0 0.0
      %1747 = vmatprep.subr.mxu0 0.0
      %1748 = vmatpush2.msra.mxu0 0.0
      %1749 = vmatprep.subr.mxu0 0.0
      %1750 = vmatpush2.msra.mxu0 0.0
      %1751 = vmatprep.subr.mxu0 0.0
      %1752 = vmatpush2.msra.mxu0 0.0
      %1753 = vmatprep.subr.mxu0 0.0
      %1754 = vmatpush2.msra.mxu0 0.0
      %1755 = vmatprep.subr.mxu0 0.0
      %1756 = vmatpush2.msra.mxu0 0.0
      %1757 = vmatprep.mubr.f32.mxu0 0.0
      %1758 = vmatmul.mubr.f32.gmra.mxu0 %v1620
      %v1759 = vpop.f32.mrf.mxu0
      %v1760 = vadd.f32 0.0, %v1759
      %v1761 = vpop.f32.mrf.mxu0
      %1762 = vdwg.mxu0
      %v1763 = vld [vmem:[#allocation3 + $0x48] sm:$0xff]
      %v1764 = vadd.f32 %v1763, %v1689
      %v1765 = vxor.u32 %v1764, 2147483648
      %v1766 = vmul.f32 %v1765, 1.442695
      %v1767 = vpow.pop %v1766
      %v1768 = vadd.f32 %v1767, 1.0
      %v1769 = vrcp.pop %v1768
      %v1770 = vmul.f32 1.0, %v1769
      %v1771 = vld [vmem:[#allocation3 + $0x50] sm:$0xff]
      %v1772 = vadd.f32 %v1771, %v1691
      %v1773 = vxor.u32 %v1772, 2147483648
      %v1774 = vmul.f32 %v1773, 1.442695
      %v1775 = vpow.pop %v1774
      %v1776 = vadd.f32 %v1775, 1.0
      %v1777 = vrcp.pop %v1776
      %v1778 = vmul.f32 1.0, %v1777
      %v1779 = vld [vmem:[#allocation3 + $0x58] sm:$0xff]
      %v1780 = vadd.f32 %v1760, %v1277
      %v1781 = vmul.f32 %v1770, %v1780
      %v1782 = vadd.f32 %v1779, %v1781
      %v1783 = vtanh.pop %v1782
      %v1784 = vsub.f32 1.0, %v1778
      %v1785 = vmul.f32 %v1784, %v1783
      %v1786 = vmul.f32 %v1778, %v1620
      %v1787 = vadd.f32 %v1785, %v1786
      %1788 = vst [vmem:[%s374 + $0x18] sm:$0xff] %v1787
      %1789 = vmatprep.subr.mxu0 %v1112
      %1790 = vmatpush1.msra.mxu0 %v1111
      %1791 = vmatprep.subr.mxu0 %v1109
      %1792 = vmatpush1.msra.mxu0 %v1108
      %1793 = vmatprep.subr.mxu0 %v1106
      %1794 = vmatpush1.msra.mxu0 %v1105
      %1795 = vmatprep.subr.mxu0 %v1103
      %1796 = vmatpush1.msra.mxu0 %v1102
      %1797 = vmatprep.subr.mxu0 %v1100
      %1798 = vmatpush1.msra.mxu0 %v1099
      %1799 = vmatprep.subr.mxu0 %v1097
      %1800 = vmatpush1.msra.mxu0 %v1096
      %1801 = vmatprep.subr.mxu0 %v1094
      %1802 = vmatpush1.msra.mxu0 %v1093
      %1803 = vmatprep.subr.mxu0 %v1091
      %1804 = vmatpush1.msra.mxu0 %v1090
      %1805 = vmatprep.subr.mxu0 %v1088
      %1806 = vmatpush1.msra.mxu0 %v1087
      %1807 = vmatprep.subr.mxu0 %v1085
      %1808 = vmatpush1.msra.mxu0 %v1084
      %1809 = vmatprep.subr.mxu0 %v1082
      %1810 = vmatpush1.msra.mxu0 %v1081
      %1811 = vmatprep.subr.mxu0 %v1079
      %1812 = vmatpush1.msra.mxu0 %v1078
      %1813 = vmatprep.subr.mxu0 %v1076
      %1814 = vmatpush1.msra.mxu0 %v1075
      %1815 = vmatprep.subr.mxu0 %v1073
      %1816 = vmatpush1.msra.mxu0 %v1072
      %1817 = vmatprep.subr.mxu0 %v1070
      %1818 = vmatpush1.msra.mxu0 %v1069
      %1819 = vmatprep.subr.mxu0 %v1067
      %1820 = vmatpush1.msra.mxu0 %v1066
      %1821 = vmatprep.subr.mxu0 0.0
      %1822 = vmatpush2.msra.mxu0 0.0
      %1823 = vmatprep.subr.mxu0 0.0
      %1824 = vmatpush2.msra.mxu0 0.0
      %1825 = vmatprep.subr.mxu0 0.0
      %1826 = vmatpush2.msra.mxu0 0.0
      %1827 = vmatprep.subr.mxu0 0.0
      %1828 = vmatpush2.msra.mxu0 0.0
      %1829 = vmatprep.subr.mxu0 0.0
      %1830 = vmatpush2.msra.mxu0 0.0
      %1831 = vmatprep.subr.mxu0 0.0
      %1832 = vmatpush2.msra.mxu0 0.0
      %1833 = vmatprep.subr.mxu0 0.0
      %1834 = vmatpush2.msra.mxu0 0.0
      %1835 = vmatprep.subr.mxu0 0.0
      %1836 = vmatpush2.msra.mxu0 0.0
      %1837 = vmatprep.subr.mxu0 0.0
      %1838 = vmatpush2.msra.mxu0 0.0
      %1839 = vmatprep.subr.mxu0 0.0
      %1840 = vmatpush2.msra.mxu0 0.0
      %1841 = vmatprep.subr.mxu0 0.0
      %1842 = vmatpush2.msra.mxu0 0.0
      %1843 = vmatprep.subr.mxu0 0.0
      %1844 = vmatpush2.msra.mxu0 0.0
      %1845 = vmatprep.subr.mxu0 0.0
      %1846 = vmatpush2.msra.mxu0 0.0
      %1847 = vmatprep.subr.mxu0 0.0
      %1848 = vmatpush2.msra.mxu0 0.0
      %1849 = vmatprep.subr.mxu0 0.0
      %1850 = vmatpush2.msra.mxu0 0.0
      %1851 = vmatprep.subr.mxu0 0.0
      %1852 = vmatpush2.msra.mxu0 0.0
      %1853 = vmatprep.mubr.f32.mxu0 0.0
      %1854 = vmatmul.mubr.f32.gmra.mxu0 %v1787
      %v1855 = vpop.f32.mrf.mxu0
      %v1856 = vadd.f32 0.0, %v1855
      %v1857 = vpop.f32.mrf.mxu0
      %v1858 = vadd.f32 0.0, %v1857
      %1859 = vdwg.mxu0
      %1860 = vmatprep.subr.mxu0 0.0
      %1861 = vmatpush1.msra.mxu0 %v1113
      %1862 = vmatprep.subr.mxu0 0.0
      %1863 = vmatpush1.msra.mxu0 %v1110
      %1864 = vmatprep.subr.mxu0 0.0
      %1865 = vmatpush1.msra.mxu0 %v1107
      %1866 = vmatprep.subr.mxu0 0.0
      %1867 = vmatpush1.msra.mxu0 %v1104
      %1868 = vmatprep.subr.mxu0 0.0
      %1869 = vmatpush1.msra.mxu0 %v1101
      %1870 = vmatprep.subr.mxu0 0.0
      %1871 = vmatpush1.msra.mxu0 %v1098
      %1872 = vmatprep.subr.mxu0 0.0
      %1873 = vmatpush1.msra.mxu0 %v1095
      %1874 = vmatprep.subr.mxu0 0.0
      %1875 = vmatpush1.msra.mxu0 %v1092
      %1876 = vmatprep.subr.mxu0 0.0
      %1877 = vmatpush1.msra.mxu0 %v1089
      %1878 = vmatprep.subr.mxu0 0.0
      %1879 = vmatpush1.msra.mxu0 %v1086
      %1880 = vmatprep.subr.mxu0 0.0
      %1881 = vmatpush1.msra.mxu0 %v1083
      %1882 = vmatprep.subr.mxu0 0.0
      %1883 = vmatpush1.msra.mxu0 %v1080
      %1884 = vmatprep.subr.mxu0 0.0
      %1885 = vmatpush1.msra.mxu0 %v1077
      %1886 = vmatprep.subr.mxu0 0.0
      %1887 = vmatpush1.msra.mxu0 %v1074
      %1888 = vmatprep.subr.mxu0 0.0
      %1889 = vmatpush1.msra.mxu0 %v1071
      %1890 = vmatprep.subr.mxu0 0.0
      %1891 = vmatpush1.msra.mxu0 %v1068
      %1892 = vmatprep.subr.mxu0 0.0
      %1893 = vmatpush2.msra.mxu0 0.0
      %1894 = vmatprep.subr.mxu0 0.0
      %1895 = vmatpush2.msra.mxu0 0.0
      %1896 = vmatprep.subr.mxu0 0.0
      %1897 = vmatpush2.msra.mxu0 0.0
      %1898 = vmatprep.subr.mxu0 0.0
      %1899 = vmatpush2.msra.mxu0 0.0
      %1900 = vmatprep.subr.mxu0 0.0
      %1901 = vmatpush2.msra.mxu0 0.0
      %1902 = vmatprep.subr.mxu0 0.0
      %1903 = vmatpush2.msra.mxu0 0.0
      %1904 = vmatprep.subr.mxu0 0.0
      %1905 = vmatpush2.msra.mxu0 0.0
      %1906 = vmatprep.subr.mxu0 0.0
      %1907 = vmatpush2.msra.mxu0 0.0
      %1908 = vmatprep.subr.mxu0 0.0
      %1909 = vmatpush2.msra.mxu0 0.0
      %1910 = vmatprep.subr.mxu0 0.0
      %1911 = vmatpush2.msra.mxu0 0.0
      %1912 = vmatprep.subr.mxu0 0.0
      %1913 = vmatpush2.msra.mxu0 0.0
      %1914 = vmatprep.subr.mxu0 0.0
      %1915 = vmatpush2.msra.mxu0 0.0
      %1916 = vmatprep.subr.mxu0 0.0
      %1917 = vmatpush2.msra.mxu0 0.0
      %1918 = vmatprep.subr.mxu0 0.0
      %1919 = vmatpush2.msra.mxu0 0.0
      %1920 = vmatprep.subr.mxu0 0.0
      %1921 = vmatpush2.msra.mxu0 0.0
      %1922 = vmatprep.subr.mxu0 0.0
      %1923 = vmatpush2.msra.mxu0 0.0
      %1924 = vmatprep.mubr.f32.mxu0 0.0
      %1925 = vmatmul.mubr.f32.gmra.mxu0 %v1787
      %v1926 = vpop.f32.mrf.mxu0
      %v1927 = vadd.f32 0.0, %v1926
      %v1928 = vpop.f32.mrf.mxu0
      %1929 = vdwg.mxu0
      %v1930 = vld [vmem:[#allocation3 + $0x60] sm:$0xff]
      %v1931 = vadd.f32 %v1930, %v1856
      %v1932 = vxor.u32 %v1931, 2147483648
      %v1933 = vmul.f32 %v1932, 1.442695
      %v1934 = vpow.pop %v1933
      %v1935 = vadd.f32 %v1934, 1.0
      %v1936 = vrcp.pop %v1935
      %v1937 = vmul.f32 1.0, %v1936
      %v1938 = vld [vmem:[#allocation3 + $0x68] sm:$0xff]
      %v1939 = vadd.f32 %v1938, %v1858
      %v1940 = vxor.u32 %v1939, 2147483648
      %v1941 = vmul.f32 %v1940, 1.442695
      %v1942 = vpow.pop %v1941
      %v1943 = vadd.f32 %v1942, 1.0
      %v1944 = vrcp.pop %v1943
      %v1945 = vmul.f32 1.0, %v1944
      %v1946 = vld [vmem:[#allocation3 + $0x70] sm:$0xff]
      %v1947 = vadd.f32 %v1927, %v1277
      %v1948 = vmul.f32 %v1937, %v1947
      %v1949 = vadd.f32 %v1946, %v1948
      %v1950 = vtanh.pop %v1949
      %v1951 = vsub.f32 1.0, %v1945
      %v1952 = vmul.f32 %v1951, %v1950
      %v1953 = vmul.f32 %v1945, %v1787
      %v1954 = vadd.f32 %v1952, %v1953
      %1955 = vst [vmem:[%s374 + $0x20] sm:$0xff] %v1954
      %1956 = vmatprep.subr.mxu0 %v1112
      %1957 = vmatpush1.msra.mxu0 %v1111
      %1958 = vmatprep.subr.mxu0 %v1109
      %1959 = vmatpush1.msra.mxu0 %v1108
      %1960 = vmatprep.subr.mxu0 %v1106
      %1961 = vmatpush1.msra.mxu0 %v1105
      %1962 = vmatprep.subr.mxu0 %v1103
      %1963 = vmatpush1.msra.mxu0 %v1102
      %1964 = vmatprep.subr.mxu0 %v1100
      %1965 = vmatpush1.msra.mxu0 %v1099
      %1966 = vmatprep.subr.mxu0 %v1097
      %1967 = vmatpush1.msra.mxu0 %v1096
      %1968 = vmatprep.subr.mxu0 %v1094
      %1969 = vmatpush1.msra.mxu0 %v1093
      %1970 = vmatprep.subr.mxu0 %v1091
      %1971 = vmatpush1.msra.mxu0 %v1090
      %1972 = vmatprep.subr.mxu0 %v1088
      %1973 = vmatpush1.msra.mxu0 %v1087
      %1974 = vmatprep.subr.mxu0 %v1085
      %1975 = vmatpush1.msra.mxu0 %v1084
      %1976 = vmatprep.subr.mxu0 %v1082
      %1977 = vmatpush1.msra.mxu0 %v1081
      %1978 = vmatprep.subr.mxu0 %v1079
      %1979 = vmatpush1.msra.mxu0 %v1078
      %1980 = vmatprep.subr.mxu0 %v1076
      %1981 = vmatpush1.msra.mxu0 %v1075
      %1982 = vmatprep.subr.mxu0 %v1073
      %1983 = vmatpush1.msra.mxu0 %v1072
      %1984 = vmatprep.subr.mxu0 %v1070
      %1985 = vmatpush1.msra.mxu0 %v1069
      %1986 = vmatprep.subr.mxu0 %v1067
      %1987 = vmatpush1.msra.mxu0 %v1066
      %1988 = vmatprep.subr.mxu0 0.0
      %1989 = vmatpush2.msra.mxu0 0.0
      %1990 = vmatprep.subr.mxu0 0.0
      %1991 = vmatpush2.msra.mxu0 0.0
      %1992 = vmatprep.subr.mxu0 0.0
      %1993 = vmatpush2.msra.mxu0 0.0
      %1994 = vmatprep.subr.mxu0 0.0
      %1995 = vmatpush2.msra.mxu0 0.0
      %1996 = vmatprep.subr.mxu0 0.0
      %1997 = vmatpush2.msra.mxu0 0.0
      %1998 = vmatprep.subr.mxu0 0.0
      %1999 = vmatpush2.msra.mxu0 0.0
      %2000 = vmatprep.subr.mxu0 0.0
      %2001 = vmatpush2.msra.mxu0 0.0
      %2002 = vmatprep.subr.mxu0 0.0
      %2003 = vmatpush2.msra.mxu0 0.0
      %2004 = vmatprep.subr.mxu0 0.0
      %2005 = vmatpush2.msra.mxu0 0.0
      %2006 = vmatprep.subr.mxu0 0.0
      %2007 = vmatpush2.msra.mxu0 0.0
      %2008 = vmatprep.subr.mxu0 0.0
      %2009 = vmatpush2.msra.mxu0 0.0
      %2010 = vmatprep.subr.mxu0 0.0
      %2011 = vmatpush2.msra.mxu0 0.0
      %2012 = vmatprep.subr.mxu0 0.0
      %2013 = vmatpush2.msra.mxu0 0.0
      %2014 = vmatprep.subr.mxu0 0.0
      %2015 = vmatpush2.msra.mxu0 0.0
      %2016 = vmatprep.subr.mxu0 0.0
      %2017 = vmatpush2.msra.mxu0 0.0
      %2018 = vmatprep.subr.mxu0 0.0
      %2019 = vmatpush2.msra.mxu0 0.0
      %2020 = vmatprep.mubr.f32.mxu0 0.0
      %2021 = vmatmul.mubr.f32.gmra.mxu0 %v1954
      %v2022 = vpop.f32.mrf.mxu0
      %v2023 = vadd.f32 0.0, %v2022
      %v2024 = vpop.f32.mrf.mxu0
      %v2025 = vadd.f32 0.0, %v2024
      %2026 = vdwg.mxu0
      %2027 = vmatprep.subr.mxu0 0.0
      %2028 = vmatpush1.msra.mxu0 %v1113
      %2029 = vmatprep.subr.mxu0 0.0
      %2030 = vmatpush1.msra.mxu0 %v1110
      %2031 = vmatprep.subr.mxu0 0.0
      %2032 = vmatpush1.msra.mxu0 %v1107
      %2033 = vmatprep.subr.mxu0 0.0
      %2034 = vmatpush1.msra.mxu0 %v1104
      %2035 = vmatprep.subr.mxu0 0.0
      %2036 = vmatpush1.msra.mxu0 %v1101
      %2037 = vmatprep.subr.mxu0 0.0
      %2038 = vmatpush1.msra.mxu0 %v1098
      %2039 = vmatprep.subr.mxu0 0.0
      %2040 = vmatpush1.msra.mxu0 %v1095
      %2041 = vmatprep.subr.mxu0 0.0
      %2042 = vmatpush1.msra.mxu0 %v1092
      %2043 = vmatprep.subr.mxu0 0.0
      %2044 = vmatpush1.msra.mxu0 %v1089
      %2045 = vmatprep.subr.mxu0 0.0
      %2046 = vmatpush1.msra.mxu0 %v1086
      %2047 = vmatprep.subr.mxu0 0.0
      %2048 = vmatpush1.msra.mxu0 %v1083
      %2049 = vmatprep.subr.mxu0 0.0
      %2050 = vmatpush1.msra.mxu0 %v1080
      %2051 = vmatprep.subr.mxu0 0.0
      %2052 = vmatpush1.msra.mxu0 %v1077
      %2053 = vmatprep.subr.mxu0 0.0
      %2054 = vmatpush1.msra.mxu0 %v1074
      %2055 = vmatprep.subr.mxu0 0.0
      %2056 = vmatpush1.msra.mxu0 %v1071
      %2057 = vmatprep.subr.mxu0 0.0
      %2058 = vmatpush1.msra.mxu0 %v1068
      %2059 = vmatprep.subr.mxu0 0.0
      %2060 = vmatpush2.msra.mxu0 0.0
      %2061 = vmatprep.subr.mxu0 0.0
      %2062 = vmatpush2.msra.mxu0 0.0
      %2063 = vmatprep.subr.mxu0 0.0
      %2064 = vmatpush2.msra.mxu0 0.0
      %2065 = vmatprep.subr.mxu0 0.0
      %2066 = vmatpush2.msra.mxu0 0.0
      %2067 = vmatprep.subr.mxu0 0.0
      %2068 = vmatpush2.msra.mxu0 0.0
      %2069 = vmatprep.subr.mxu0 0.0
      %2070 = vmatpush2.msra.mxu0 0.0
      %2071 = vmatprep.subr.mxu0 0.0
      %2072 = vmatpush2.msra.mxu0 0.0
      %2073 = vmatprep.subr.mxu0 0.0
      %2074 = vmatpush2.msra.mxu0 0.0
      %2075 = vmatprep.subr.mxu0 0.0
      %2076 = vmatpush2.msra.mxu0 0.0
      %2077 = vmatprep.subr.mxu0 0.0
      %2078 = vmatpush2.msra.mxu0 0.0
      %2079 = vmatprep.subr.mxu0 0.0
      %2080 = vmatpush2.msra.mxu0 0.0
      %2081 = vmatprep.subr.mxu0 0.0
      %2082 = vmatpush2.msra.mxu0 0.0
      %2083 = vmatprep.subr.mxu0 0.0
      %2084 = vmatpush2.msra.mxu0 0.0
      %2085 = vmatprep.subr.mxu0 0.0
      %2086 = vmatpush2.msra.mxu0 0.0
      %2087 = vmatprep.subr.mxu0 0.0
      %2088 = vmatpush2.msra.mxu0 0.0
      %2089 = vmatprep.subr.mxu0 0.0
      %2090 = vmatpush2.msra.mxu0 0.0
      %2091 = vmatprep.mubr.f32.mxu0 0.0
      %2092 = vmatmul.mubr.f32.gmra.mxu0 %v1954
      %v2093 = vpop.f32.mrf.mxu0
      %v2094 = vadd.f32 0.0, %v2093
      %v2095 = vpop.f32.mrf.mxu0
      %2096 = vdwg.mxu0
      %v2097 = vld [vmem:[#allocation3 + $0x78] sm:$0xff]
      %v2098 = vadd.f32 %v2097, %v2023
      %v2099 = vxor.u32 %v2098, 2147483648
      %v2100 = vmul.f32 %v2099, 1.442695
      %v2101 = vpow.pop %v2100
      %v2102 = vadd.f32 %v2101, 1.0
      %v2103 = vrcp.pop %v2102
      %v2104 = vmul.f32 1.0, %v2103
      %v2105 = vld [vmem:[#allocation3 + $0x80] sm:$0xff]
      %v2106 = vadd.f32 %v2105, %v2025
      %v2107 = vxor.u32 %v2106, 2147483648
      %v2108 = vmul.f32 %v2107, 1.442695
      %v2109 = vpow.pop %v2108
      %v2110 = vadd.f32 %v2109, 1.0
      %v2111 = vrcp.pop %v2110
      %v2112 = vmul.f32 1.0, %v2111
      %v2113 = vld [vmem:[#allocation3 + $0x88] sm:$0xff]
      %v2114 = vadd.f32 %v2094, %v1277
      %v2115 = vmul.f32 %v2104, %v2114
      %v2116 = vadd.f32 %v2113, %v2115
      %v2117 = vtanh.pop %v2116
      %v2118 = vsub.f32 1.0, %v2112
      %v2119 = vmul.f32 %v2118, %v2117
      %v2120 = vmul.f32 %v2112, %v1954
      %v2121 = vadd.f32 %v2119, %v2120
      %2122 = vst [vmem:[%s374 + $0x28] sm:$0xff] %v2121
      %2123 = vmatprep.subr.mxu0 %v1112
      %2124 = vmatpush1.msra.mxu0 %v1111
      %2125 = vmatprep.subr.mxu0 %v1109
      %2126 = vmatpush1.msra.mxu0 %v1108
      %2127 = vmatprep.subr.mxu0 %v1106
      %2128 = vmatpush1.msra.mxu0 %v1105
      %2129 = vmatprep.subr.mxu0 %v1103
      %2130 = vmatpush1.msra.mxu0 %v1102
      %2131 = vmatprep.subr.mxu0 %v1100
      %2132 = vmatpush1.msra.mxu0 %v1099
      %2133 = vmatprep.subr.mxu0 %v1097
      %2134 = vmatpush1.msra.mxu0 %v1096
      %2135 = vmatprep.subr.mxu0 %v1094
      %2136 = vmatpush1.msra.mxu0 %v1093
      %2137 = vmatprep.subr.mxu0 %v1091
      %2138 = vmatpush1.msra.mxu0 %v1090
      %2139 = vmatprep.subr.mxu0 %v1088
      %2140 = vmatpush1.msra.mxu0 %v1087
      %2141 = vmatprep.subr.mxu0 %v1085
      %2142 = vmatpush1.msra.mxu0 %v1084
      %2143 = vmatprep.subr.mxu0 %v1082
      %2144 = vmatpush1.msra.mxu0 %v1081
      %2145 = vmatprep.subr.mxu0 %v1079
      %2146 = vmatpush1.msra.mxu0 %v1078
      %2147 = vmatprep.subr.mxu0 %v1076
      %2148 = vmatpush1.msra.mxu0 %v1075
      %2149 = vmatprep.subr.mxu0 %v1073
      %2150 = vmatpush1.msra.mxu0 %v1072
      %2151 = vmatprep.subr.mxu0 %v1070
      %2152 = vmatpush1.msra.mxu0 %v1069
      %2153 = vmatprep.subr.mxu0 %v1067
      %2154 = vmatpush1.msra.mxu0 %v1066
      %2155 = vmatprep.subr.mxu0 0.0
      %2156 = vmatpush2.msra.mxu0 0.0
      %2157 = vmatprep.subr.mxu0 0.0
      %2158 = vmatpush2.msra.mxu0 0.0
      %2159 = vmatprep.subr.mxu0 0.0
      %2160 = vmatpush2.msra.mxu0 0.0
      %2161 = vmatprep.subr.mxu0 0.0
      %2162 = vmatpush2.msra.mxu0 0.0
      %2163 = vmatprep.subr.mxu0 0.0
      %2164 = vmatpush2.msra.mxu0 0.0
      %2165 = vmatprep.subr.mxu0 0.0
      %2166 = vmatpush2.msra.mxu0 0.0
      %2167 = vmatprep.subr.mxu0 0.0
      %2168 = vmatpush2.msra.mxu0 0.0
      %2169 = vmatprep.subr.mxu0 0.0
      %2170 = vmatpush2.msra.mxu0 0.0
      %2171 = vmatprep.subr.mxu0 0.0
      %2172 = vmatpush2.msra.mxu0 0.0
      %2173 = vmatprep.subr.mxu0 0.0
      %2174 = vmatpush2.msra.mxu0 0.0
      %2175 = vmatprep.subr.mxu0 0.0
      %2176 = vmatpush2.msra.mxu0 0.0
      %2177 = vmatprep.subr.mxu0 0.0
      %2178 = vmatpush2.msra.mxu0 0.0
      %2179 = vmatprep.subr.mxu0 0.0
      %2180 = vmatpush2.msra.mxu0 0.0
      %2181 = vmatprep.subr.mxu0 0.0
      %2182 = vmatpush2.msra.mxu0 0.0
      %2183 = vmatprep.subr.mxu0 0.0
      %2184 = vmatpush2.msra.mxu0 0.0
      %2185 = vmatprep.subr.mxu0 0.0
      %2186 = vmatpush2.msra.mxu0 0.0
      %2187 = vmatprep.mubr.f32.mxu0 0.0
      %2188 = vmatmul.mubr.f32.gmra.mxu0 %v2121
      %v2189 = vpop.f32.mrf.mxu0
      %v2190 = vadd.f32 0.0, %v2189
      %v2191 = vpop.f32.mrf.mxu0
      %v2192 = vadd.f32 0.0, %v2191
      %2193 = vdwg.mxu0
      %2194 = vmatprep.subr.mxu0 0.0
      %2195 = vmatpush1.msra.mxu0 %v1113
      %2196 = vmatprep.subr.mxu0 0.0
      %2197 = vmatpush1.msra.mxu0 %v1110
      %2198 = vmatprep.subr.mxu0 0.0
      %2199 = vmatpush1.msra.mxu0 %v1107
      %2200 = vmatprep.subr.mxu0 0.0
      %2201 = vmatpush1.msra.mxu0 %v1104
      %2202 = vmatprep.subr.mxu0 0.0
      %2203 = vmatpush1.msra.mxu0 %v1101
      %2204 = vmatprep.subr.mxu0 0.0
      %2205 = vmatpush1.msra.mxu0 %v1098
      %2206 = vmatprep.subr.mxu0 0.0
      %2207 = vmatpush1.msra.mxu0 %v1095
      %2208 = vmatprep.subr.mxu0 0.0
      %2209 = vmatpush1.msra.mxu0 %v1092
      %2210 = vmatprep.subr.mxu0 0.0
      %2211 = vmatpush1.msra.mxu0 %v1089
      %2212 = vmatprep.subr.mxu0 0.0
      %2213 = vmatpush1.msra.mxu0 %v1086
      %2214 = vmatprep.subr.mxu0 0.0
      %2215 = vmatpush1.msra.mxu0 %v1083
      %2216 = vmatprep.subr.mxu0 0.0
      %2217 = vmatpush1.msra.mxu0 %v1080
      %2218 = vmatprep.subr.mxu0 0.0
      %2219 = vmatpush1.msra.mxu0 %v1077
      %2220 = vmatprep.subr.mxu0 0.0
      %2221 = vmatpush1.msra.mxu0 %v1074
      %2222 = vmatprep.subr.mxu0 0.0
      %2223 = vmatpush1.msra.mxu0 %v1071
      %2224 = vmatprep.subr.mxu0 0.0
      %2225 = vmatpush1.msra.mxu0 %v1068
      %2226 = vmatprep.subr.mxu0 0.0
      %2227 = vmatpush2.msra.mxu0 0.0
      %2228 = vmatprep.subr.mxu0 0.0
      %2229 = vmatpush2.msra.mxu0 0.0
      %2230 = vmatprep.subr.mxu0 0.0
      %2231 = vmatpush2.msra.mxu0 0.0
      %2232 = vmatprep.subr.mxu0 0.0
      %2233 = vmatpush2.msra.mxu0 0.0
      %2234 = vmatprep.subr.mxu0 0.0
      %2235 = vmatpush2.msra.mxu0 0.0
      %2236 = vmatprep.subr.mxu0 0.0
      %2237 = vmatpush2.msra.mxu0 0.0
      %2238 = vmatprep.subr.mxu0 0.0
      %2239 = vmatpush2.msra.mxu0 0.0
      %2240 = vmatprep.subr.mxu0 0.0
      %2241 = vmatpush2.msra.mxu0 0.0
      %2242 = vmatprep.subr.mxu0 0.0
      %2243 = vmatpush2.msra.mxu0 0.0
      %2244 = vmatprep.subr.mxu0 0.0
      %2245 = vmatpush2.msra.mxu0 0.0
      %2246 = vmatprep.subr.mxu0 0.0
      %2247 = vmatpush2.msra.mxu0 0.0
      %2248 = vmatprep.subr.mxu0 0.0
      %2249 = vmatpush2.msra.mxu0 0.0
      %2250 = vmatprep.subr.mxu0 0.0
      %2251 = vmatpush2.msra.mxu0 0.0
      %2252 = vmatprep.subr.mxu0 0.0
      %2253 = vmatpush2.msra.mxu0 0.0
      %2254 = vmatprep.subr.mxu0 0.0
      %2255 = vmatpush2.msra.mxu0 0.0
      %2256 = vmatprep.subr.mxu0 0.0
      %2257 = vmatpush2.msra.mxu0 0.0
      %2258 = vmatprep.mubr.f32.mxu0 0.0
      %2259 = vmatmul.mubr.f32.gmra.mxu0 %v2121
      %v2260 = vpop.f32.mrf.mxu0
      %v2261 = vadd.f32 0.0, %v2260
      %v2262 = vpop.f32.mrf.mxu0
      %2263 = vdwg.mxu0
      %v2264 = vld [vmem:[#allocation3 + $0x90] sm:$0xff]
      %v2265 = vadd.f32 %v2264, %v2190
      %v2266 = vxor.u32 %v2265, 2147483648
      %v2267 = vmul.f32 %v2266, 1.442695
      %v2268 = vpow.pop %v2267
      %v2269 = vadd.f32 %v2268, 1.0
      %v2270 = vrcp.pop %v2269
      %v2271 = vmul.f32 1.0, %v2270
      %v2272 = vld [vmem:[#allocation3 + $0x98] sm:$0xff]
      %v2273 = vadd.f32 %v2272, %v2192
      %v2274 = vxor.u32 %v2273, 2147483648
      %v2275 = vmul.f32 %v2274, 1.442695
      %v2276 = vpow.pop %v2275
      %v2277 = vadd.f32 %v2276, 1.0
      %v2278 = vrcp.pop %v2277
      %v2279 = vmul.f32 1.0, %v2278
      %v2280 = vld [vmem:[#allocation3 + $0xa0] sm:$0xff]
      %v2281 = vadd.f32 %v2261, %v1277
      %v2282 = vmul.f32 %v2271, %v2281
      %v2283 = vadd.f32 %v2280, %v2282
      %v2284 = vtanh.pop %v2283
      %v2285 = vsub.f32 1.0, %v2279
      %v2286 = vmul.f32 %v2285, %v2284
      %v2287 = vmul.f32 %v2279, %v2121
      %v2288 = vadd.f32 %v2286, %v2287
      %2289 = vst [vmem:[%s374 + $0x30] sm:$0xff] %v2288
      %2290 = vmatprep.subr.mxu0 %v1112
      %2291 = vmatpush1.msra.mxu0 %v1111
      %2292 = vmatprep.subr.mxu0 %v1109
      %2293 = vmatpush1.msra.mxu0 %v1108
      %2294 = vmatprep.subr.mxu0 %v1106
      %2295 = vmatpush1.msra.mxu0 %v1105
      %2296 = vmatprep.subr.mxu0 %v1103
      %2297 = vmatpush1.msra.mxu0 %v1102
      %2298 = vmatprep.subr.mxu0 %v1100
      %2299 = vmatpush1.msra.mxu0 %v1099
      %2300 = vmatprep.subr.mxu0 %v1097
      %2301 = vmatpush1.msra.mxu0 %v1096
      %2302 = vmatprep.subr.mxu0 %v1094
      %2303 = vmatpush1.msra.mxu0 %v1093
      %2304 = vmatprep.subr.mxu0 %v1091
      %2305 = vmatpush1.msra.mxu0 %v1090
      %2306 = vmatprep.subr.mxu0 %v1088
      %2307 = vmatpush1.msra.mxu0 %v1087
      %2308 = vmatprep.subr.mxu0 %v1085
      %2309 = vmatpush1.msra.mxu0 %v1084
      %2310 = vmatprep.subr.mxu0 %v1082
      %2311 = vmatpush1.msra.mxu0 %v1081
      %2312 = vmatprep.subr.mxu0 %v1079
      %2313 = vmatpush1.msra.mxu0 %v1078
      %2314 = vmatprep.subr.mxu0 %v1076
      %2315 = vmatpush1.msra.mxu0 %v1075
      %2316 = vmatprep.subr.mxu0 %v1073
      %2317 = vmatpush1.msra.mxu0 %v1072
      %2318 = vmatprep.subr.mxu0 %v1070
      %2319 = vmatpush1.msra.mxu0 %v1069
      %2320 = vmatprep.subr.mxu0 %v1067
      %2321 = vmatpush1.msra.mxu0 %v1066
      %2322 = vmatprep.subr.mxu0 0.0
      %2323 = vmatpush2.msra.mxu0 0.0
      %2324 = vmatprep.subr.mxu0 0.0
      %2325 = vmatpush2.msra.mxu0 0.0
      %2326 = vmatprep.subr.mxu0 0.0
      %2327 = vmatpush2.msra.mxu0 0.0
      %2328 = vmatprep.subr.mxu0 0.0
      %2329 = vmatpush2.msra.mxu0 0.0
      %2330 = vmatprep.subr.mxu0 0.0
      %2331 = vmatpush2.msra.mxu0 0.0
      %2332 = vmatprep.subr.mxu0 0.0
      %2333 = vmatpush2.msra.mxu0 0.0
      %2334 = vmatprep.subr.mxu0 0.0
      %2335 = vmatpush2.msra.mxu0 0.0
      %2336 = vmatprep.subr.mxu0 0.0
      %2337 = vmatpush2.msra.mxu0 0.0
      %2338 = vmatprep.subr.mxu0 0.0
      %2339 = vmatpush2.msra.mxu0 0.0
      %2340 = vmatprep.subr.mxu0 0.0
      %2341 = vmatpush2.msra.mxu0 0.0
      %2342 = vmatprep.subr.mxu0 0.0
      %2343 = vmatpush2.msra.mxu0 0.0
      %2344 = vmatprep.subr.mxu0 0.0
      %2345 = vmatpush2.msra.mxu0 0.0
      %2346 = vmatprep.subr.mxu0 0.0
      %2347 = vmatpush2.msra.mxu0 0.0
      %2348 = vmatprep.subr.mxu0 0.0
      %2349 = vmatpush2.msra.mxu0 0.0
      %2350 = vmatprep.subr.mxu0 0.0
      %2351 = vmatpush2.msra.mxu0 0.0
      %2352 = vmatprep.subr.mxu0 0.0
      %2353 = vmatpush2.msra.mxu0 0.0
      %2354 = vmatprep.mubr.f32.mxu0 0.0
      %2355 = vmatmul.mubr.f32.gmra.mxu0 %v2288
      %v2356 = vpop.f32.mrf.mxu0
      %v2357 = vadd.f32 0.0, %v2356
      %v2358 = vpop.f32.mrf.mxu0
      %v2359 = vadd.f32 0.0, %v2358
      %2360 = vdwg.mxu0
      %2361 = vmatprep.subr.mxu0 0.0
      %2362 = vmatpush1.msra.mxu0 %v1113
      %2363 = vmatprep.subr.mxu0 0.0
      %2364 = vmatpush1.msra.mxu0 %v1110
      %2365 = vmatprep.subr.mxu0 0.0
      %2366 = vmatpush1.msra.mxu0 %v1107
      %2367 = vmatprep.subr.mxu0 0.0
      %2368 = vmatpush1.msra.mxu0 %v1104
      %2369 = vmatprep.subr.mxu0 0.0
      %2370 = vmatpush1.msra.mxu0 %v1101
      %2371 = vmatprep.subr.mxu0 0.0
      %2372 = vmatpush1.msra.mxu0 %v1098
      %2373 = vmatprep.subr.mxu0 0.0
      %2374 = vmatpush1.msra.mxu0 %v1095
      %2375 = vmatprep.subr.mxu0 0.0
      %2376 = vmatpush1.msra.mxu0 %v1092
      %2377 = vmatprep.subr.mxu0 0.0
      %2378 = vmatpush1.msra.mxu0 %v1089
      %2379 = vmatprep.subr.mxu0 0.0
      %2380 = vmatpush1.msra.mxu0 %v1086
      %2381 = vmatprep.subr.mxu0 0.0
      %2382 = vmatpush1.msra.mxu0 %v1083
      %2383 = vmatprep.subr.mxu0 0.0
      %2384 = vmatpush1.msra.mxu0 %v1080
      %2385 = vmatprep.subr.mxu0 0.0
      %2386 = vmatpush1.msra.mxu0 %v1077
      %2387 = vmatprep.subr.mxu0 0.0
      %2388 = vmatpush1.msra.mxu0 %v1074
      %2389 = vmatprep.subr.mxu0 0.0
      %2390 = vmatpush1.msra.mxu0 %v1071
      %2391 = vmatprep.subr.mxu0 0.0
      %2392 = vmatpush1.msra.mxu0 %v1068
      %2393 = vmatprep.subr.mxu0 0.0
      %2394 = vmatpush2.msra.mxu0 0.0
      %2395 = vmatprep.subr.mxu0 0.0
      %2396 = vmatpush2.msra.mxu0 0.0
      %2397 = vmatprep.subr.mxu0 0.0
      %2398 = vmatpush2.msra.mxu0 0.0
      %2399 = vmatprep.subr.mxu0 0.0
      %2400 = vmatpush2.msra.mxu0 0.0
      %2401 = vmatprep.subr.mxu0 0.0
      %2402 = vmatpush2.msra.mxu0 0.0
      %2403 = vmatprep.subr.mxu0 0.0
      %2404 = vmatpush2.msra.mxu0 0.0
      %2405 = vmatprep.subr.mxu0 0.0
      %2406 = vmatpush2.msra.mxu0 0.0
      %2407 = vmatprep.subr.mxu0 0.0
      %2408 = vmatpush2.msra.mxu0 0.0
      %2409 = vmatprep.subr.mxu0 0.0
      %2410 = vmatpush2.msra.mxu0 0.0
      %2411 = vmatprep.subr.mxu0 0.0
      %2412 = vmatpush2.msra.mxu0 0.0
      %2413 = vmatprep.subr.mxu0 0.0
      %2414 = vmatpush2.msra.mxu0 0.0
      %2415 = vmatprep.subr.mxu0 0.0
      %2416 = vmatpush2.msra.mxu0 0.0
      %2417 = vmatprep.subr.mxu0 0.0
      %2418 = vmatpush2.msra.mxu0 0.0
      %2419 = vmatprep.subr.mxu0 0.0
      %2420 = vmatpush2.msra.mxu0 0.0
      %2421 = vmatprep.subr.mxu0 0.0
      %2422 = vmatpush2.msra.mxu0 0.0
      %2423 = vmatprep.subr.mxu0 0.0
      %2424 = vmatpush2.msra.mxu0 0.0
      %2425 = vmatprep.mubr.f32.mxu0 0.0
      %2426 = vmatmul.mubr.f32.gmra.mxu0 %v2288
      %v2427 = vpop.f32.mrf.mxu0
      %v2428 = vadd.f32 0.0, %v2427
      %v2429 = vpop.f32.mrf.mxu0
      %2430 = vdwg.mxu0
      %v2431 = vld [vmem:[#allocation3 + $0xa8] sm:$0xff]
      %v2432 = vadd.f32 %v2431, %v2357
      %v2433 = vxor.u32 %v2432, 2147483648
      %v2434 = vmul.f32 %v2433, 1.442695
      %v2435 = vpow.pop %v2434
      %v2436 = vadd.f32 %v2435, 1.0
      %v2437 = vrcp.pop %v2436
      %v2438 = vmul.f32 1.0, %v2437
      %v2439 = vld [vmem:[#allocation3 + $0xb0] sm:$0xff]
      %v2440 = vadd.f32 %v2439, %v2359
      %v2441 = vxor.u32 %v2440, 2147483648
      %v2442 = vmul.f32 %v2441, 1.442695
      %v2443 = vpow.pop %v2442
      %v2444 = vadd.f32 %v2443, 1.0
      %v2445 = vrcp.pop %v2444
      %v2446 = vmul.f32 1.0, %v2445
      %v2447 = vld [vmem:[#allocation3 + $0xb8] sm:$0xff]
      %v2448 = vadd.f32 %v2428, %v1277
      %v2449 = vmul.f32 %v2438, %v2448
      %v2450 = vadd.f32 %v2447, %v2449
      %v2451 = vtanh.pop %v2450
      %v2452 = vsub.f32 1.0, %v2446
      %v2453 = vmul.f32 %v2452, %v2451
      %v2454 = vmul.f32 %v2446, %v2288
      %v2455 = vadd.f32 %v2453, %v2454
      %2456 = vst [vmem:[%s374 + $0x38] sm:$0xff] %v2455
      %2457 = vst [vmem:[#allocation2] sm:$0xff] %v2455
      %s2458 = scalar_lea.vmem [#allocation2], 8
      %v2459 = vld [vmem:[%s2458] sm:$0xff]
      %s2460 = scalar_lea.vmem %s6, 384
      %v2461 = vld [vmem:[%s2460] sm:$0xff]
      %v2462 = vld [vmem:[%s2460 + $0x8] sm:$0xff]
      %v2463 = vld [vmem:[%s2460 + $0x10] sm:$0xff]
      %v2464 = vld [vmem:[%s2460 + $0x18] sm:$0xff]
      %v2465 = vld [vmem:[%s2460 + $0x20] sm:$0xff]
      %v2466 = vld [vmem:[%s2460 + $0x28] sm:$0xff]
      %v2467 = vld [vmem:[%s2460 + $0x30] sm:$0xff]
      %v2468 = vld [vmem:[%s2460 + $0x38] sm:$0xff]
      %v2469 = vld [vmem:[%s2460 + $0x40] sm:$0xff]
      %v2470 = vld [vmem:[%s2460 + $0x48] sm:$0xff]
      %v2471 = vld [vmem:[%s2460 + $0x50] sm:$0xff]
      %v2472 = vld [vmem:[%s2460 + $0x58] sm:$0xff]
      %v2473 = vld [vmem:[%s2460 + $0x60] sm:$0xff]
      %v2474 = vld [vmem:[%s2460 + $0x68] sm:$0xff]
      %v2475 = vld [vmem:[%s2460 + $0x70] sm:$0xff]
      %v2476 = vld [vmem:[%s2460 + $0x78] sm:$0xff]
      %v2477 = vld [vmem:[%s2460 + $0x80] sm:$0xff]
      %v2478 = vld [vmem:[%s2460 + $0x88] sm:$0xff]
      %v2479 = vld [vmem:[%s2460 + $0x90] sm:$0xff]
      %v2480 = vld [vmem:[%s2460 + $0x98] sm:$0xff]
      %v2481 = vld [vmem:[%s2460 + $0xa0] sm:$0xff]
      %v2482 = vld [vmem:[%s2460 + $0xa8] sm:$0xff]
      %v2483 = vld [vmem:[%s2460 + $0xb0] sm:$0xff]
      %v2484 = vld [vmem:[%s2460 + $0xb8] sm:$0xff]
      %v2485 = vld [vmem:[%s2460 + $0xc0] sm:$0xff]
      %v2486 = vld [vmem:[%s2460 + $0xc8] sm:$0xff]
      %v2487 = vld [vmem:[%s2460 + $0xd0] sm:$0xff]
      %v2488 = vld [vmem:[%s2460 + $0xd8] sm:$0xff]
      %v2489 = vld [vmem:[%s2460 + $0xe0] sm:$0xff]
      %v2490 = vld [vmem:[%s2460 + $0xe8] sm:$0xff]
      %v2491 = vld [vmem:[%s2460 + $0xf0] sm:$0xff]
      %v2492 = vld [vmem:[%s2460 + $0xf8] sm:$0xff]
      %v2493 = vld [vmem:[%s2460 + $0x100] sm:$0xff]
      %v2494 = vld [vmem:[%s2460 + $0x108] sm:$0xff]
      %v2495 = vld [vmem:[%s2460 + $0x110] sm:$0xff]
      %v2496 = vld [vmem:[%s2460 + $0x118] sm:$0xff]
      %v2497 = vld [vmem:[%s2460 + $0x120] sm:$0xff]
      %v2498 = vld [vmem:[%s2460 + $0x128] sm:$0xff]
      %v2499 = vld [vmem:[%s2460 + $0x130] sm:$0xff]
      %v2500 = vld [vmem:[%s2460 + $0x138] sm:$0xff]
      %v2501 = vld [vmem:[%s2460 + $0x140] sm:$0xff]
      %v2502 = vld [vmem:[%s2460 + $0x148] sm:$0xff]
      %v2503 = vld [vmem:[%s2460 + $0x150] sm:$0xff]
      %v2504 = vld [vmem:[%s2460 + $0x158] sm:$0xff]
      %v2505 = vld [vmem:[%s2460 + $0x160] sm:$0xff]
      %v2506 = vld [vmem:[%s2460 + $0x168] sm:$0xff]
      %v2507 = vld [vmem:[%s2460 + $0x170] sm:$0xff]
      %v2508 = vld [vmem:[%s2460 + $0x178] sm:$0xff]
      %s2509 = scalar_lea.vmem %s7, 1
      %v2510 = vld [vmem:[%s2509] sm:$0x1]
      %2511 = vmatprep.subr.mxu0 %v2507
      %2512 = vmatpush1.msra.mxu0 %v2506
      %2513 = vmatprep.subr.mxu0 %v2504
      %2514 = vmatpush1.msra.mxu0 %v2503
      %2515 = vmatprep.subr.mxu0 %v2501
      %2516 = vmatpush1.msra.mxu0 %v2500
      %2517 = vmatprep.subr.mxu0 %v2498
      %2518 = vmatpush1.msra.mxu0 %v2497
      %2519 = vmatprep.subr.mxu0 %v2495
      %2520 = vmatpush1.msra.mxu0 %v2494
      %2521 = vmatprep.subr.mxu0 %v2492
      %2522 = vmatpush1.msra.mxu0 %v2491
      %2523 = vmatprep.subr.mxu0 %v2489
      %2524 = vmatpush1.msra.mxu0 %v2488
      %2525 = vmatprep.subr.mxu0 %v2486
      %2526 = vmatpush1.msra.mxu0 %v2485
      %2527 = vmatprep.subr.mxu0 %v2483
      %2528 = vmatpush1.msra.mxu0 %v2482
      %2529 = vmatprep.subr.mxu0 %v2480
      %2530 = vmatpush1.msra.mxu0 %v2479
      %2531 = vmatprep.subr.mxu0 %v2477
      %2532 = vmatpush1.msra.mxu0 %v2476
      %2533 = vmatprep.subr.mxu0 %v2474
      %2534 = vmatpush1.msra.mxu0 %v2473
      %2535 = vmatprep.subr.mxu0 %v2471
      %2536 = vmatpush1.msra.mxu0 %v2470
      %2537 = vmatprep.subr.mxu0 %v2468
      %2538 = vmatpush1.msra.mxu0 %v2467
      %2539 = vmatprep.subr.mxu0 %v2465
      %2540 = vmatpush1.msra.mxu0 %v2464
      %2541 = vmatprep.subr.mxu0 %v2462
      %2542 = vmatpush1.msra.mxu0 %v2461
      %2543 = vmatprep.subr.mxu0 0.0
      %2544 = vmatpush2.msra.mxu0 0.0
      %2545 = vmatprep.subr.mxu0 0.0
      %2546 = vmatpush2.msra.mxu0 0.0
      %2547 = vmatprep.subr.mxu0 0.0
      %2548 = vmatpush2.msra.mxu0 0.0
      %2549 = vmatprep.subr.mxu0 0.0
      %2550 = vmatpush2.msra.mxu0 0.0
      %2551 = vmatprep.subr.mxu0 0.0
      %2552 = vmatpush2.msra.mxu0 0.0
      %2553 = vmatprep.subr.mxu0 0.0
      %2554 = vmatpush2.msra.mxu0 0.0
      %2555 = vmatprep.subr.mxu0 0.0
      %2556 = vmatpush2.msra.mxu0 0.0
      %2557 = vmatprep.subr.mxu0 0.0
      %2558 = vmatpush2.msra.mxu0 0.0
      %2559 = vmatprep.subr.mxu0 0.0
      %2560 = vmatpush2.msra.mxu0 0.0
      %2561 = vmatprep.subr.mxu0 0.0
      %2562 = vmatpush2.msra.mxu0 0.0
      %2563 = vmatprep.subr.mxu0 0.0
      %2564 = vmatpush2.msra.mxu0 0.0
      %2565 = vmatprep.subr.mxu0 0.0
      %2566 = vmatpush2.msra.mxu0 0.0
      %2567 = vmatprep.subr.mxu0 0.0
      %2568 = vmatpush2.msra.mxu0 0.0
      %2569 = vmatprep.subr.mxu0 0.0
      %2570 = vmatpush2.msra.mxu0 0.0
      %2571 = vmatprep.subr.mxu0 0.0
      %2572 = vmatpush2.msra.mxu0 0.0
      %2573 = vmatprep.subr.mxu0 0.0
      %2574 = vmatpush2.msra.mxu0 0.0
      %2575 = vmatprep.mubr.f32.mxu0 0.0
      %2576 = vmatmul.mubr.f32.gmra.mxu0 %v2459
      %v2577 = vpop.f32.mrf.mxu0
      %v2578 = vadd.f32 0.0, %v2577
      %v2579 = vpop.f32.mrf.mxu0
      %v2580 = vadd.f32 0.0, %v2579
      %2581 = vdwg.mxu0
      %2582 = vmatprep.subr.mxu0 0.0
      %2583 = vmatpush1.msra.mxu0 %v2508
      %2584 = vmatprep.subr.mxu0 0.0
      %2585 = vmatpush1.msra.mxu0 %v2505
      %2586 = vmatprep.subr.mxu0 0.0
      %2587 = vmatpush1.msra.mxu0 %v2502
      %2588 = vmatprep.subr.mxu0 0.0
      %2589 = vmatpush1.msra.mxu0 %v2499
      %2590 = vmatprep.subr.mxu0 0.0
      %2591 = vmatpush1.msra.mxu0 %v2496
      %2592 = vmatprep.subr.mxu0 0.0
      %2593 = vmatpush1.msra.mxu0 %v2493
      %2594 = vmatprep.subr.mxu0 0.0
      %2595 = vmatpush1.msra.mxu0 %v2490
      %2596 = vmatprep.subr.mxu0 0.0
      %2597 = vmatpush1.msra.mxu0 %v2487
      %2598 = vmatprep.subr.mxu0 0.0
      %2599 = vmatpush1.msra.mxu0 %v2484
      %2600 = vmatprep.subr.mxu0 0.0
      %2601 = vmatpush1.msra.mxu0 %v2481
      %2602 = vmatprep.subr.mxu0 0.0
      %2603 = vmatpush1.msra.mxu0 %v2478
      %2604 = vmatprep.subr.mxu0 0.0
      %2605 = vmatpush1.msra.mxu0 %v2475
      %2606 = vmatprep.subr.mxu0 0.0
      %2607 = vmatpush1.msra.mxu0 %v2472
      %2608 = vmatprep.subr.mxu0 0.0
      %2609 = vmatpush1.msra.mxu0 %v2469
      %2610 = vmatprep.subr.mxu0 0.0
      %2611 = vmatpush1.msra.mxu0 %v2466
      %2612 = vmatprep.subr.mxu0 0.0
      %2613 = vmatpush1.msra.mxu0 %v2463
      %2614 = vmatprep.subr.mxu0 0.0
      %2615 = vmatpush2.msra.mxu0 0.0
      %2616 = vmatprep.subr.mxu0 0.0
      %2617 = vmatpush2.msra.mxu0 0.0
      %2618 = vmatprep.subr.mxu0 0.0
      %2619 = vmatpush2.msra.mxu0 0.0
      %2620 = vmatprep.subr.mxu0 0.0
      %2621 = vmatpush2.msra.mxu0 0.0
      %2622 = vmatprep.subr.mxu0 0.0
      %2623 = vmatpush2.msra.mxu0 0.0
      %2624 = vmatprep.subr.mxu0 0.0
      %2625 = vmatpush2.msra.mxu0 0.0
      %2626 = vmatprep.subr.mxu0 0.0
      %2627 = vmatpush2.msra.mxu0 0.0
      %2628 = vmatprep.subr.mxu0 0.0
      %2629 = vmatpush2.msra.mxu0 0.0
      %2630 = vmatprep.subr.mxu0 0.0
      %2631 = vmatpush2.msra.mxu0 0.0
      %2632 = vmatprep.subr.mxu0 0.0
      %2633 = vmatpush2.msra.mxu0 0.0
      %2634 = vmatprep.subr.mxu0 0.0
      %2635 = vmatpush2.msra.mxu0 0.0
      %2636 = vmatprep.subr.mxu0 0.0
      %2637 = vmatpush2.msra.mxu0 0.0
      %2638 = vmatprep.subr.mxu0 0.0
      %2639 = vmatpush2.msra.mxu0 0.0
      %2640 = vmatprep.subr.mxu0 0.0
      %2641 = vmatpush2.msra.mxu0 0.0
      %2642 = vmatprep.subr.mxu0 0.0
      %2643 = vmatpush2.msra.mxu0 0.0
      %2644 = vmatprep.subr.mxu0 0.0
      %2645 = vmatpush2.msra.mxu0 0.0
      %2646 = vmatprep.mubr.f32.mxu0 0.0
      %2647 = vmatmul.mubr.f32.gmra.mxu0 %v2459
      %v2648 = vpop.f32.mrf.mxu0
      %v2649 = vadd.f32 0.0, %v2648
      %v2650 = vpop.f32.mrf.mxu0
      %2651 = vdwg.mxu0
      %v2652 = vld [vmem:[%s1040 + $0xa8] sm:$0xff]
      %v2653 = vadd.f32 %v2652, %v2578
      %v2654 = vxor.u32 %v2653, 2147483648
      %v2655 = vmul.f32 %v2654, 1.442695
      %v2656 = vpow.pop %v2655
      %v2657 = vadd.f32 %v2656, 1.0
      %v2658 = vrcp.pop %v2657
      %v2659 = vmul.f32 1.0, %v2658
      %v2660 = vld [vmem:[%s1040 + $0xb0] sm:$0xff]
      %v2661 = vadd.f32 %v2660, %v2580
      %v2662 = vxor.u32 %v2661, 2147483648
      %v2663 = vmul.f32 %v2662, 1.442695
      %v2664 = vpow.pop %v2663
      %v2665 = vadd.f32 %v2664, 1.0
      %v2666 = vrcp.pop %v2665
      %v2667 = vmul.f32 1.0, %v2666
      %v2668 = vld [vmem:[%s1040 + $0xb8] sm:$0xff]
      %v2670 = vlaneseq
      %v2671 = vshrl.u32 %v2670, 7
      %v2672 = vsub.s32 0, %v2671
      %v2673 = vrot.slane %v2510, %v2672
      %v2675 = vadd.f32 %v2649, %v2673
      %v2676 = vmul.f32 %v2659, %v2675
      %v2677 = vadd.f32 %v2668, %v2676
      %v2678 = vtanh.pop %v2677
      %v2679 = vsub.f32 1.0, %v2667
      %v2680 = vmul.f32 %v2679, %v2678
      %v2681 = vmul.f32 %v2667, %v2459
      %v2682 = vadd.f32 %v2680, %v2681
      %2683 = vst [vmem:[%s381 + $0x38] sm:$0xff] %v2682
      %p2684 = scmp.gt.s32.totalorder %s21, 0
      %s2685 = scalar_select %p2684, 1, 0
      %s2686 = scvt.s32.f32 %s2685
      %v2687 = vstv %s2686
      %v2688 = vmul.f32 %v2687, %v2682
      %s2689 = ssub.f32 1.0, %s2686
      %v2690 = vstv %s2689
      %v2691 = vmul.f32 %v2690, %v2459
      %v2692 = vadd.f32 %v2688, %v2691
      %2693 = vmatprep.subr.mxu0 %v2507
      %2694 = vmatpush1.msra.mxu0 %v2506
      %2695 = vmatprep.subr.mxu0 %v2504
      %2696 = vmatpush1.msra.mxu0 %v2503
      %2697 = vmatprep.subr.mxu0 %v2501
      %2698 = vmatpush1.msra.mxu0 %v2500
      %2699 = vmatprep.subr.mxu0 %v2498
      %2700 = vmatpush1.msra.mxu0 %v2497
      %2701 = vmatprep.subr.mxu0 %v2495
      %2702 = vmatpush1.msra.mxu0 %v2494
      %2703 = vmatprep.subr.mxu0 %v2492
      %2704 = vmatpush1.msra.mxu0 %v2491
      %2705 = vmatprep.subr.mxu0 %v2489
      %2706 = vmatpush1.msra.mxu0 %v2488
      %2707 = vmatprep.subr.mxu0 %v2486
      %2708 = vmatpush1.msra.mxu0 %v2485
      %2709 = vmatprep.subr.mxu0 %v2483
      %2710 = vmatpush1.msra.mxu0 %v2482
      %2711 = vmatprep.subr.mxu0 %v2480
      %2712 = vmatpush1.msra.mxu0 %v2479
      %2713 = vmatprep.subr.mxu0 %v2477
      %2714 = vmatpush1.msra.mxu0 %v2476
      %2715 = vmatprep.subr.mxu0 %v2474
      %2716 = vmatpush1.msra.mxu0 %v2473
      %2717 = vmatprep.subr.mxu0 %v2471
      %2718 = vmatpush1.msra.mxu0 %v2470
      %2719 = vmatprep.subr.mxu0 %v2468
      %2720 = vmatpush1.msra.mxu0 %v2467
      %2721 = vmatprep.subr.mxu0 %v2465
      %2722 = vmatpush1.msra.mxu0 %v2464
      %2723 = vmatprep.subr.mxu0 %v2462
      %2724 = vmatpush1.msra.mxu0 %v2461
      %2725 = vmatprep.subr.mxu0 0.0
      %2726 = vmatpush2.msra.mxu0 0.0
      %2727 = vmatprep.subr.mxu0 0.0
      %2728 = vmatpush2.msra.mxu0 0.0
      %2729 = vmatprep.subr.mxu0 0.0
      %2730 = vmatpush2.msra.mxu0 0.0
      %2731 = vmatprep.subr.mxu0 0.0
      %2732 = vmatpush2.msra.mxu0 0.0
      %2733 = vmatprep.subr.mxu0 0.0
      %2734 = vmatpush2.msra.mxu0 0.0
      %2735 = vmatprep.subr.mxu0 0.0
      %2736 = vmatpush2.msra.mxu0 0.0
      %2737 = vmatprep.subr.mxu0 0.0
      %2738 = vmatpush2.msra.mxu0 0.0
      %2739 = vmatprep.subr.mxu0 0.0
      %2740 = vmatpush2.msra.mxu0 0.0
      %2741 = vmatprep.subr.mxu0 0.0
      %2742 = vmatpush2.msra.mxu0 0.0
      %2743 = vmatprep.subr.mxu0 0.0
      %2744 = vmatpush2.msra.mxu0 0.0
      %2745 = vmatprep.subr.mxu0 0.0
      %2746 = vmatpush2.msra.mxu0 0.0
      %2747 = vmatprep.subr.mxu0 0.0
      %2748 = vmatpush2.msra.mxu0 0.0
      %2749 = vmatprep.subr.mxu0 0.0
      %2750 = vmatpush2.msra.mxu0 0.0
      %2751 = vmatprep.subr.mxu0 0.0
      %2752 = vmatpush2.msra.mxu0 0.0
      %2753 = vmatprep.subr.mxu0 0.0
      %2754 = vmatpush2.msra.mxu0 0.0
      %2755 = vmatprep.subr.mxu0 0.0
      %2756 = vmatpush2.msra.mxu0 0.0
      %2757 = vmatprep.mubr.f32.mxu0 0.0
      %2758 = vmatmul.mubr.f32.gmra.mxu0 %v2692
      %v2759 = vpop.f32.mrf.mxu0
      %v2760 = vadd.f32 0.0, %v2759
      %v2761 = vpop.f32.mrf.mxu0
      %v2762 = vadd.f32 0.0, %v2761
      %2763 = vdwg.mxu0
      %2764 = vmatprep.subr.mxu0 0.0
      %2765 = vmatpush1.msra.mxu0 %v2508
      %2766 = vmatprep.subr.mxu0 0.0
      %2767 = vmatpush1.msra.mxu0 %v2505
      %2768 = vmatprep.subr.mxu0 0.0
      %2769 = vmatpush1.msra.mxu0 %v2502
      %2770 = vmatprep.subr.mxu0 0.0
      %2771 = vmatpush1.msra.mxu0 %v2499
      %2772 = vmatprep.subr.mxu0 0.0
      %2773 = vmatpush1.msra.mxu0 %v2496
      %2774 = vmatprep.subr.mxu0 0.0
      %2775 = vmatpush1.msra.mxu0 %v2493
      %2776 = vmatprep.subr.mxu0 0.0
      %2777 = vmatpush1.msra.mxu0 %v2490
      %2778 = vmatprep.subr.mxu0 0.0
      %2779 = vmatpush1.msra.mxu0 %v2487
      %2780 = vmatprep.subr.mxu0 0.0
      %2781 = vmatpush1.msra.mxu0 %v2484
      %2782 = vmatprep.subr.mxu0 0.0
      %2783 = vmatpush1.msra.mxu0 %v2481
      %2784 = vmatprep.subr.mxu0 0.0
      %2785 = vmatpush1.msra.mxu0 %v2478
      %2786 = vmatprep.subr.mxu0 0.0
      %2787 = vmatpush1.msra.mxu0 %v2475
      %2788 = vmatprep.subr.mxu0 0.0
      %2789 = vmatpush1.msra.mxu0 %v2472
      %2790 = vmatprep.subr.mxu0 0.0
      %2791 = vmatpush1.msra.mxu0 %v2469
      %2792 = vmatprep.subr.mxu0 0.0
      %2793 = vmatpush1.msra.mxu0 %v2466
      %2794 = vmatprep.subr.mxu0 0.0
      %2795 = vmatpush1.msra.mxu0 %v2463
      %2796 = vmatprep.subr.mxu0 0.0
      %2797 = vmatpush2.msra.mxu0 0.0
      %2798 = vmatprep.subr.mxu0 0.0
      %2799 = vmatpush2.msra.mxu0 0.0
      %2800 = vmatprep.subr.mxu0 0.0
      %2801 = vmatpush2.msra.mxu0 0.0
      %2802 = vmatprep.subr.mxu0 0.0
      %2803 = vmatpush2.msra.mxu0 0.0
      %2804 = vmatprep.subr.mxu0 0.0
      %2805 = vmatpush2.msra.mxu0 0.0
      %2806 = vmatprep.subr.mxu0 0.0
      %2807 = vmatpush2.msra.mxu0 0.0
      %2808 = vmatprep.subr.mxu0 0.0
      %2809 = vmatpush2.msra.mxu0 0.0
      %2810 = vmatprep.subr.mxu0 0.0
      %2811 = vmatpush2.msra.mxu0 0.0
      %2812 = vmatprep.subr.mxu0 0.0
      %2813 = vmatpush2.msra.mxu0 0.0
      %2814 = vmatprep.subr.mxu0 0.0
      %2815 = vmatpush2.msra.mxu0 0.0
      %2816 = vmatprep.subr.mxu0 0.0
      %2817 = vmatpush2.msra.mxu0 0.0
      %2818 = vmatprep.subr.mxu0 0.0
      %2819 = vmatpush2.msra.mxu0 0.0
      %2820 = vmatprep.subr.mxu0 0.0
      %2821 = vmatpush2.msra.mxu0 0.0
      %2822 = vmatprep.subr.mxu0 0.0
      %2823 = vmatpush2.msra.mxu0 0.0
      %2824 = vmatprep.subr.mxu0 0.0
      %2825 = vmatpush2.msra.mxu0 0.0
      %2826 = vmatprep.subr.mxu0 0.0
      %2827 = vmatpush2.msra.mxu0 0.0
      %2828 = vmatprep.mubr.f32.mxu0 0.0
      %2829 = vmatmul.mubr.f32.gmra.mxu0 %v2692
      %v2830 = vpop.f32.mrf.mxu0
      %v2831 = vadd.f32 0.0, %v2830
      %v2832 = vpop.f32.mrf.mxu0
      %2833 = vdwg.mxu0
      %v2834 = vld [vmem:[%s1040 + $0x90] sm:$0xff]
      %v2835 = vadd.f32 %v2834, %v2760
      %v2836 = vxor.u32 %v2835, 2147483648
      %v2837 = vmul.f32 %v2836, 1.442695
      %v2838 = vpow.pop %v2837
      %v2839 = vadd.f32 %v2838, 1.0
      %v2840 = vrcp.pop %v2839
      %v2841 = vmul.f32 1.0, %v2840
      %v2842 = vld [vmem:[%s1040 + $0x98] sm:$0xff]
      %v2843 = vadd.f32 %v2842, %v2762
      %v2844 = vxor.u32 %v2843, 2147483648
      %v2845 = vmul.f32 %v2844, 1.442695
      %v2846 = vpow.pop %v2845
      %v2847 = vadd.f32 %v2846, 1.0
      %v2848 = vrcp.pop %v2847
      %v2849 = vmul.f32 1.0, %v2848
      %v2850 = vld [vmem:[%s1040 + $0xa0] sm:$0xff]
      %v2851 = vadd.f32 %v2831, %v2673
      %v2852 = vmul.f32 %v2841, %v2851
      %v2853 = vadd.f32 %v2850, %v2852
      %v2854 = vtanh.pop %v2853
      %v2855 = vsub.f32 1.0, %v2849
      %v2856 = vmul.f32 %v2855, %v2854
      %v2857 = vmul.f32 %v2849, %v2692
      %v2858 = vadd.f32 %v2856, %v2857
      %2859 = vst [vmem:[%s381 + $0x30] sm:$0xff] %v2858
      %v2860 = vmul.f32 %v2687, %v2858
      %v2861 = vmul.f32 %v2690, %v2692
      %v2862 = vadd.f32 %v2860, %v2861
      %2863 = vmatprep.subr.mxu0 %v2507
      %2864 = vmatpush1.msra.mxu0 %v2506
      %2865 = vmatprep.subr.mxu0 %v2504
      %2866 = vmatpush1.msra.mxu0 %v2503
      %2867 = vmatprep.subr.mxu0 %v2501
      %2868 = vmatpush1.msra.mxu0 %v2500
      %2869 = vmatprep.subr.mxu0 %v2498
      %2870 = vmatpush1.msra.mxu0 %v2497
      %2871 = vmatprep.subr.mxu0 %v2495
      %2872 = vmatpush1.msra.mxu0 %v2494
      %2873 = vmatprep.subr.mxu0 %v2492
      %2874 = vmatpush1.msra.mxu0 %v2491
      %2875 = vmatprep.subr.mxu0 %v2489
      %2876 = vmatpush1.msra.mxu0 %v2488
      %2877 = vmatprep.subr.mxu0 %v2486
      %2878 = vmatpush1.msra.mxu0 %v2485
      %2879 = vmatprep.subr.mxu0 %v2483
      %2880 = vmatpush1.msra.mxu0 %v2482
      %2881 = vmatprep.subr.mxu0 %v2480
      %2882 = vmatpush1.msra.mxu0 %v2479
      %2883 = vmatprep.subr.mxu0 %v2477
      %2884 = vmatpush1.msra.mxu0 %v2476
      %2885 = vmatprep.subr.mxu0 %v2474
      %2886 = vmatpush1.msra.mxu0 %v2473
      %2887 = vmatprep.subr.mxu0 %v2471
      %2888 = vmatpush1.msra.mxu0 %v2470
      %2889 = vmatprep.subr.mxu0 %v2468
      %2890 = vmatpush1.msra.mxu0 %v2467
      %2891 = vmatprep.subr.mxu0 %v2465
      %2892 = vmatpush1.msra.mxu0 %v2464
      %2893 = vmatprep.subr.mxu0 %v2462
      %2894 = vmatpush1.msra.mxu0 %v2461
      %2895 = vmatprep.subr.mxu0 0.0
      %2896 = vmatpush2.msra.mxu0 0.0
      %2897 = vmatprep.subr.mxu0 0.0
      %2898 = vmatpush2.msra.mxu0 0.0
      %2899 = vmatprep.subr.mxu0 0.0
      %2900 = vmatpush2.msra.mxu0 0.0
      %2901 = vmatprep.subr.mxu0 0.0
      %2902 = vmatpush2.msra.mxu0 0.0
      %2903 = vmatprep.subr.mxu0 0.0
      %2904 = vmatpush2.msra.mxu0 0.0
      %2905 = vmatprep.subr.mxu0 0.0
      %2906 = vmatpush2.msra.mxu0 0.0
      %2907 = vmatprep.subr.mxu0 0.0
      %2908 = vmatpush2.msra.mxu0 0.0
      %2909 = vmatprep.subr.mxu0 0.0
      %2910 = vmatpush2.msra.mxu0 0.0
      %2911 = vmatprep.subr.mxu0 0.0
      %2912 = vmatpush2.msra.mxu0 0.0
      %2913 = vmatprep.subr.mxu0 0.0
      %2914 = vmatpush2.msra.mxu0 0.0
      %2915 = vmatprep.subr.mxu0 0.0
      %2916 = vmatpush2.msra.mxu0 0.0
      %2917 = vmatprep.subr.mxu0 0.0
      %2918 = vmatpush2.msra.mxu0 0.0
      %2919 = vmatprep.subr.mxu0 0.0
      %2920 = vmatpush2.msra.mxu0 0.0
      %2921 = vmatprep.subr.mxu0 0.0
      %2922 = vmatpush2.msra.mxu0 0.0
      %2923 = vmatprep.subr.mxu0 0.0
      %2924 = vmatpush2.msra.mxu0 0.0
      %2925 = vmatprep.subr.mxu0 0.0
      %2926 = vmatpush2.msra.mxu0 0.0
      %2927 = vmatprep.mubr.f32.mxu0 0.0
      %2928 = vmatmul.mubr.f32.gmra.mxu0 %v2862
      %v2929 = vpop.f32.mrf.mxu0
      %v2930 = vadd.f32 0.0, %v2929
      %v2931 = vpop.f32.mrf.mxu0
      %v2932 = vadd.f32 0.0, %v2931
      %2933 = vdwg.mxu0
      %2934 = vmatprep.subr.mxu0 0.0
      %2935 = vmatpush1.msra.mxu0 %v2508
      %2936 = vmatprep.subr.mxu0 0.0
      %2937 = vmatpush1.msra.mxu0 %v2505
      %2938 = vmatprep.subr.mxu0 0.0
      %2939 = vmatpush1.msra.mxu0 %v2502
      %2940 = vmatprep.subr.mxu0 0.0
      %2941 = vmatpush1.msra.mxu0 %v2499
      %2942 = vmatprep.subr.mxu0 0.0
      %2943 = vmatpush1.msra.mxu0 %v2496
      %2944 = vmatprep.subr.mxu0 0.0
      %2945 = vmatpush1.msra.mxu0 %v2493
      %2946 = vmatprep.subr.mxu0 0.0
      %2947 = vmatpush1.msra.mxu0 %v2490
      %2948 = vmatprep.subr.mxu0 0.0
      %2949 = vmatpush1.msra.mxu0 %v2487
      %2950 = vmatprep.subr.mxu0 0.0
      %2951 = vmatpush1.msra.mxu0 %v2484
      %2952 = vmatprep.subr.mxu0 0.0
      %2953 = vmatpush1.msra.mxu0 %v2481
      %2954 = vmatprep.subr.mxu0 0.0
      %2955 = vmatpush1.msra.mxu0 %v2478
      %2956 = vmatprep.subr.mxu0 0.0
      %2957 = vmatpush1.msra.mxu0 %v2475
      %2958 = vmatprep.subr.mxu0 0.0
      %2959 = vmatpush1.msra.mxu0 %v2472
      %2960 = vmatprep.subr.mxu0 0.0
      %2961 = vmatpush1.msra.mxu0 %v2469
      %2962 = vmatprep.subr.mxu0 0.0
      %2963 = vmatpush1.msra.mxu0 %v2466
      %2964 = vmatprep.subr.mxu0 0.0
      %2965 = vmatpush1.msra.mxu0 %v2463
      %2966 = vmatprep.subr.mxu0 0.0
      %2967 = vmatpush2.msra.mxu0 0.0
      %2968 = vmatprep.subr.mxu0 0.0
      %2969 = vmatpush2.msra.mxu0 0.0
      %2970 = vmatprep.subr.mxu0 0.0
      %2971 = vmatpush2.msra.mxu0 0.0
      %2972 = vmatprep.subr.mxu0 0.0
      %2973 = vmatpush2.msra.mxu0 0.0
      %2974 = vmatprep.subr.mxu0 0.0
      %2975 = vmatpush2.msra.mxu0 0.0
      %2976 = vmatprep.subr.mxu0 0.0
      %2977 = vmatpush2.msra.mxu0 0.0
      %2978 = vmatprep.subr.mxu0 0.0
      %2979 = vmatpush2.msra.mxu0 0.0
      %2980 = vmatprep.subr.mxu0 0.0
      %2981 = vmatpush2.msra.mxu0 0.0
      %2982 = vmatprep.subr.mxu0 0.0
      %2983 = vmatpush2.msra.mxu0 0.0
      %2984 = vmatprep.subr.mxu0 0.0
      %2985 = vmatpush2.msra.mxu0 0.0
      %2986 = vmatprep.subr.mxu0 0.0
      %2987 = vmatpush2.msra.mxu0 0.0
      %2988 = vmatprep.subr.mxu0 0.0
      %2989 = vmatpush2.msra.mxu0 0.0
      %2990 = vmatprep.subr.mxu0 0.0
      %2991 = vmatpush2.msra.mxu0 0.0
      %2992 = vmatprep.subr.mxu0 0.0
      %2993 = vmatpush2.msra.mxu0 0.0
      %2994 = vmatprep.subr.mxu0 0.0
      %2995 = vmatpush2.msra.mxu0 0.0
      %2996 = vmatprep.subr.mxu0 0.0
      %2997 = vmatpush2.msra.mxu0 0.0
      %2998 = vmatprep.mubr.f32.mxu0 0.0
      %2999 = vmatmul.mubr.f32.gmra.mxu0 %v2862
      %v3000 = vpop.f32.mrf.mxu0
      %v3001 = vadd.f32 0.0, %v3000
      %v3002 = vpop.f32.mrf.mxu0
      %3003 = vdwg.mxu0
      %v3004 = vld [vmem:[%s1040 + $0x78] sm:$0xff]
      %v3005 = vadd.f32 %v3004, %v2930
      %v3006 = vxor.u32 %v3005, 2147483648
      %v3007 = vmul.f32 %v3006, 1.442695
      %v3008 = vpow.pop %v3007
      %v3009 = vadd.f32 %v3008, 1.0
      %v3010 = vrcp.pop %v3009
      %v3011 = vmul.f32 1.0, %v3010
      %v3012 = vld [vmem:[%s1040 + $0x80] sm:$0xff]
      %v3013 = vadd.f32 %v3012, %v2932
      %v3014 = vxor.u32 %v3013, 2147483648
      %v3015 = vmul.f32 %v3014, 1.442695
      %v3016 = vpow.pop %v3015
      %v3017 = vadd.f32 %v3016, 1.0
      %v3018 = vrcp.pop %v3017
      %v3019 = vmul.f32 1.0, %v3018
      %v3020 = vld [vmem:[%s1040 + $0x88] sm:$0xff]
      %v3021 = vadd.f32 %v3001, %v2673
      %v3022 = vmul.f32 %v3011, %v3021
      %v3023 = vadd.f32 %v3020, %v3022
      %v3024 = vtanh.pop %v3023
      %v3025 = vsub.f32 1.0, %v3019
      %v3026 = vmul.f32 %v3025, %v3024
      %v3027 = vmul.f32 %v3019, %v2862
      %v3028 = vadd.f32 %v3026, %v3027
      %3029 = vst [vmem:[%s381 + $0x28] sm:$0xff] %v3028
      %v3030 = vmul.f32 %v2687, %v3028
      %v3031 = vmul.f32 %v2690, %v2862
      %v3032 = vadd.f32 %v3030, %v3031
      %3033 = vmatprep.subr.mxu0 %v2507
      %3034 = vmatpush1.msra.mxu0 %v2506
      %3035 = vmatprep.subr.mxu0 %v2504
      %3036 = vmatpush1.msra.mxu0 %v2503
      %3037 = vmatprep.subr.mxu0 %v2501
      %3038 = vmatpush1.msra.mxu0 %v2500
      %3039 = vmatprep.subr.mxu0 %v2498
      %3040 = vmatpush1.msra.mxu0 %v2497
      %3041 = vmatprep.subr.mxu0 %v2495
      %3042 = vmatpush1.msra.mxu0 %v2494
      %3043 = vmatprep.subr.mxu0 %v2492
      %3044 = vmatpush1.msra.mxu0 %v2491
      %3045 = vmatprep.subr.mxu0 %v2489
      %3046 = vmatpush1.msra.mxu0 %v2488
      %3047 = vmatprep.subr.mxu0 %v2486
      %3048 = vmatpush1.msra.mxu0 %v2485
      %3049 = vmatprep.subr.mxu0 %v2483
      %3050 = vmatpush1.msra.mxu0 %v2482
      %3051 = vmatprep.subr.mxu0 %v2480
      %3052 = vmatpush1.msra.mxu0 %v2479
      %3053 = vmatprep.subr.mxu0 %v2477
      %3054 = vmatpush1.msra.mxu0 %v2476
      %3055 = vmatprep.subr.mxu0 %v2474
      %3056 = vmatpush1.msra.mxu0 %v2473
      %3057 = vmatprep.subr.mxu0 %v2471
      %3058 = vmatpush1.msra.mxu0 %v2470
      %3059 = vmatprep.subr.mxu0 %v2468
      %3060 = vmatpush1.msra.mxu0 %v2467
      %3061 = vmatprep.subr.mxu0 %v2465
      %3062 = vmatpush1.msra.mxu0 %v2464
      %3063 = vmatprep.subr.mxu0 %v2462
      %3064 = vmatpush1.msra.mxu0 %v2461
      %3065 = vmatprep.subr.mxu0 0.0
      %3066 = vmatpush2.msra.mxu0 0.0
      %3067 = vmatprep.subr.mxu0 0.0
      %3068 = vmatpush2.msra.mxu0 0.0
      %3069 = vmatprep.subr.mxu0 0.0
      %3070 = vmatpush2.msra.mxu0 0.0
      %3071 = vmatprep.subr.mxu0 0.0
      %3072 = vmatpush2.msra.mxu0 0.0
      %3073 = vmatprep.subr.mxu0 0.0
      %3074 = vmatpush2.msra.mxu0 0.0
      %3075 = vmatprep.subr.mxu0 0.0
      %3076 = vmatpush2.msra.mxu0 0.0
      %3077 = vmatprep.subr.mxu0 0.0
      %3078 = vmatpush2.msra.mxu0 0.0
      %3079 = vmatprep.subr.mxu0 0.0
      %3080 = vmatpush2.msra.mxu0 0.0
      %3081 = vmatprep.subr.mxu0 0.0
      %3082 = vmatpush2.msra.mxu0 0.0
      %3083 = vmatprep.subr.mxu0 0.0
      %3084 = vmatpush2.msra.mxu0 0.0
      %3085 = vmatprep.subr.mxu0 0.0
      %3086 = vmatpush2.msra.mxu0 0.0
      %3087 = vmatprep.subr.mxu0 0.0
      %3088 = vmatpush2.msra.mxu0 0.0
      %3089 = vmatprep.subr.mxu0 0.0
      %3090 = vmatpush2.msra.mxu0 0.0
      %3091 = vmatprep.subr.mxu0 0.0
      %3092 = vmatpush2.msra.mxu0 0.0
      %3093 = vmatprep.subr.mxu0 0.0
      %3094 = vmatpush2.msra.mxu0 0.0
      %3095 = vmatprep.subr.mxu0 0.0
      %3096 = vmatpush2.msra.mxu0 0.0
      %3097 = vmatprep.mubr.f32.mxu0 0.0
      %3098 = vmatmul.mubr.f32.gmra.mxu0 %v3032
      %v3099 = vpop.f32.mrf.mxu0
      %v3100 = vadd.f32 0.0, %v3099
      %v3101 = vpop.f32.mrf.mxu0
      %v3102 = vadd.f32 0.0, %v3101
      %3103 = vdwg.mxu0
      %3104 = vmatprep.subr.mxu0 0.0
      %3105 = vmatpush1.msra.mxu0 %v2508
      %3106 = vmatprep.subr.mxu0 0.0
      %3107 = vmatpush1.msra.mxu0 %v2505
      %3108 = vmatprep.subr.mxu0 0.0
      %3109 = vmatpush1.msra.mxu0 %v2502
      %3110 = vmatprep.subr.mxu0 0.0
      %3111 = vmatpush1.msra.mxu0 %v2499
      %3112 = vmatprep.subr.mxu0 0.0
      %3113 = vmatpush1.msra.mxu0 %v2496
      %3114 = vmatprep.subr.mxu0 0.0
      %3115 = vmatpush1.msra.mxu0 %v2493
      %3116 = vmatprep.subr.mxu0 0.0
      %3117 = vmatpush1.msra.mxu0 %v2490
      %3118 = vmatprep.subr.mxu0 0.0
      %3119 = vmatpush1.msra.mxu0 %v2487
      %3120 = vmatprep.subr.mxu0 0.0
      %3121 = vmatpush1.msra.mxu0 %v2484
      %3122 = vmatprep.subr.mxu0 0.0
      %3123 = vmatpush1.msra.mxu0 %v2481
      %3124 = vmatprep.subr.mxu0 0.0
      %3125 = vmatpush1.msra.mxu0 %v2478
      %3126 = vmatprep.subr.mxu0 0.0
      %3127 = vmatpush1.msra.mxu0 %v2475
      %3128 = vmatprep.subr.mxu0 0.0
      %3129 = vmatpush1.msra.mxu0 %v2472
      %3130 = vmatprep.subr.mxu0 0.0
      %3131 = vmatpush1.msra.mxu0 %v2469
      %3132 = vmatprep.subr.mxu0 0.0
      %3133 = vmatpush1.msra.mxu0 %v2466
      %3134 = vmatprep.subr.mxu0 0.0
      %3135 = vmatpush1.msra.mxu0 %v2463
      %3136 = vmatprep.subr.mxu0 0.0
      %3137 = vmatpush2.msra.mxu0 0.0
      %3138 = vmatprep.subr.mxu0 0.0
      %3139 = vmatpush2.msra.mxu0 0.0
      %3140 = vmatprep.subr.mxu0 0.0
      %3141 = vmatpush2.msra.mxu0 0.0
      %3142 = vmatprep.subr.mxu0 0.0
      %3143 = vmatpush2.msra.mxu0 0.0
      %3144 = vmatprep.subr.mxu0 0.0
      %3145 = vmatpush2.msra.mxu0 0.0
      %3146 = vmatprep.subr.mxu0 0.0
      %3147 = vmatpush2.msra.mxu0 0.0
      %3148 = vmatprep.subr.mxu0 0.0
      %3149 = vmatpush2.msra.mxu0 0.0
      %3150 = vmatprep.subr.mxu0 0.0
      %3151 = vmatpush2.msra.mxu0 0.0
      %3152 = vmatprep.subr.mxu0 0.0
      %3153 = vmatpush2.msra.mxu0 0.0
      %3154 = vmatprep.subr.mxu0 0.0
      %3155 = vmatpush2.msra.mxu0 0.0
      %3156 = vmatprep.subr.mxu0 0.0
      %3157 = vmatpush2.msra.mxu0 0.0
      %3158 = vmatprep.subr.mxu0 0.0
      %3159 = vmatpush2.msra.mxu0 0.0
      %3160 = vmatprep.subr.mxu0 0.0
      %3161 = vmatpush2.msra.mxu0 0.0
      %3162 = vmatprep.subr.mxu0 0.0
      %3163 = vmatpush2.msra.mxu0 0.0
      %3164 = vmatprep.subr.mxu0 0.0
      %3165 = vmatpush2.msra.mxu0 0.0
      %3166 = vmatprep.subr.mxu0 0.0
      %3167 = vmatpush2.msra.mxu0 0.0
      %3168 = vmatprep.mubr.f32.mxu0 0.0
      %3169 = vmatmul.mubr.f32.gmra.mxu0 %v3032
      %v3170 = vpop.f32.mrf.mxu0
      %v3171 = vadd.f32 0.0, %v3170
      %v3172 = vpop.f32.mrf.mxu0
      %3173 = vdwg.mxu0
      %v3174 = vld [vmem:[%s1040 + $0x60] sm:$0xff]
      %v3175 = vadd.f32 %v3174, %v3100
      %v3176 = vxor.u32 %v3175, 2147483648
      %v3177 = vmul.f32 %v3176, 1.442695
      %v3178 = vpow.pop %v3177
      %v3179 = vadd.f32 %v3178, 1.0
      %v3180 = vrcp.pop %v3179
      %v3181 = vmul.f32 1.0, %v3180
      %v3182 = vld [vmem:[%s1040 + $0x68] sm:$0xff]
      %v3183 = vadd.f32 %v3182, %v3102
      %v3184 = vxor.u32 %v3183, 2147483648
      %v3185 = vmul.f32 %v3184, 1.442695
      %v3186 = vpow.pop %v3185
      %v3187 = vadd.f32 %v3186, 1.0
      %v3188 = vrcp.pop %v3187
      %v3189 = vmul.f32 1.0, %v3188
      %v3190 = vld [vmem:[%s1040 + $0x70] sm:$0xff]
      %v3191 = vadd.f32 %v3171, %v2673
      %v3192 = vmul.f32 %v3181, %v3191
      %v3193 = vadd.f32 %v3190, %v3192
      %v3194 = vtanh.pop %v3193
      %v3195 = vsub.f32 1.0, %v3189
      %v3196 = vmul.f32 %v3195, %v3194
      %v3197 = vmul.f32 %v3189, %v3032
      %v3198 = vadd.f32 %v3196, %v3197
      %3199 = vst [vmem:[%s381 + $0x20] sm:$0xff] %v3198
      %v3200 = vmul.f32 %v2687, %v3198
      %v3201 = vmul.f32 %v2690, %v3032
      %v3202 = vadd.f32 %v3200, %v3201
      %3203 = vmatprep.subr.mxu0 %v2507
      %3204 = vmatpush1.msra.mxu0 %v2506
      %3205 = vmatprep.subr.mxu0 %v2504
      %3206 = vmatpush1.msra.mxu0 %v2503
      %3207 = vmatprep.subr.mxu0 %v2501
      %3208 = vmatpush1.msra.mxu0 %v2500
      %3209 = vmatprep.subr.mxu0 %v2498
      %3210 = vmatpush1.msra.mxu0 %v2497
      %3211 = vmatprep.subr.mxu0 %v2495
      %3212 = vmatpush1.msra.mxu0 %v2494
      %3213 = vmatprep.subr.mxu0 %v2492
      %3214 = vmatpush1.msra.mxu0 %v2491
      %3215 = vmatprep.subr.mxu0 %v2489
      %3216 = vmatpush1.msra.mxu0 %v2488
      %3217 = vmatprep.subr.mxu0 %v2486
      %3218 = vmatpush1.msra.mxu0 %v2485
      %3219 = vmatprep.subr.mxu0 %v2483
      %3220 = vmatpush1.msra.mxu0 %v2482
      %3221 = vmatprep.subr.mxu0 %v2480
      %3222 = vmatpush1.msra.mxu0 %v2479
      %3223 = vmatprep.subr.mxu0 %v2477
      %3224 = vmatpush1.msra.mxu0 %v2476
      %3225 = vmatprep.subr.mxu0 %v2474
      %3226 = vmatpush1.msra.mxu0 %v2473
      %3227 = vmatprep.subr.mxu0 %v2471
      %3228 = vmatpush1.msra.mxu0 %v2470
      %3229 = vmatprep.subr.mxu0 %v2468
      %3230 = vmatpush1.msra.mxu0 %v2467
      %3231 = vmatprep.subr.mxu0 %v2465
      %3232 = vmatpush1.msra.mxu0 %v2464
      %3233 = vmatprep.subr.mxu0 %v2462
      %3234 = vmatpush1.msra.mxu0 %v2461
      %3235 = vmatprep.subr.mxu0 0.0
      %3236 = vmatpush2.msra.mxu0 0.0
      %3237 = vmatprep.subr.mxu0 0.0
      %3238 = vmatpush2.msra.mxu0 0.0
      %3239 = vmatprep.subr.mxu0 0.0
      %3240 = vmatpush2.msra.mxu0 0.0
      %3241 = vmatprep.subr.mxu0 0.0
      %3242 = vmatpush2.msra.mxu0 0.0
      %3243 = vmatprep.subr.mxu0 0.0
      %3244 = vmatpush2.msra.mxu0 0.0
      %3245 = vmatprep.subr.mxu0 0.0
      %3246 = vmatpush2.msra.mxu0 0.0
      %3247 = vmatprep.subr.mxu0 0.0
      %3248 = vmatpush2.msra.mxu0 0.0
      %3249 = vmatprep.subr.mxu0 0.0
      %3250 = vmatpush2.msra.mxu0 0.0
      %3251 = vmatprep.subr.mxu0 0.0
      %3252 = vmatpush2.msra.mxu0 0.0
      %3253 = vmatprep.subr.mxu0 0.0
      %3254 = vmatpush2.msra.mxu0 0.0
      %3255 = vmatprep.subr.mxu0 0.0
      %3256 = vmatpush2.msra.mxu0 0.0
      %3257 = vmatprep.subr.mxu0 0.0
      %3258 = vmatpush2.msra.mxu0 0.0
      %3259 = vmatprep.subr.mxu0 0.0
      %3260 = vmatpush2.msra.mxu0 0.0
      %3261 = vmatprep.subr.mxu0 0.0
      %3262 = vmatpush2.msra.mxu0 0.0
      %3263 = vmatprep.subr.mxu0 0.0
      %3264 = vmatpush2.msra.mxu0 0.0
      %3265 = vmatprep.subr.mxu0 0.0
      %3266 = vmatpush2.msra.mxu0 0.0
      %3267 = vmatprep.mubr.f32.mxu0 0.0
      %3268 = vmatmul.mubr.f32.gmra.mxu0 %v3202
      %v3269 = vpop.f32.mrf.mxu0
      %v3270 = vadd.f32 0.0, %v3269
      %v3271 = vpop.f32.mrf.mxu0
      %v3272 = vadd.f32 0.0, %v3271
      %3273 = vdwg.mxu0
      %3274 = vmatprep.subr.mxu0 0.0
      %3275 = vmatpush1.msra.mxu0 %v2508
      %3276 = vmatprep.subr.mxu0 0.0
      %3277 = vmatpush1.msra.mxu0 %v2505
      %3278 = vmatprep.subr.mxu0 0.0
      %3279 = vmatpush1.msra.mxu0 %v2502
      %3280 = vmatprep.subr.mxu0 0.0
      %3281 = vmatpush1.msra.mxu0 %v2499
      %3282 = vmatprep.subr.mxu0 0.0
      %3283 = vmatpush1.msra.mxu0 %v2496
      %3284 = vmatprep.subr.mxu0 0.0
      %3285 = vmatpush1.msra.mxu0 %v2493
      %3286 = vmatprep.subr.mxu0 0.0
      %3287 = vmatpush1.msra.mxu0 %v2490
      %3288 = vmatprep.subr.mxu0 0.0
      %3289 = vmatpush1.msra.mxu0 %v2487
      %3290 = vmatprep.subr.mxu0 0.0
      %3291 = vmatpush1.msra.mxu0 %v2484
      %3292 = vmatprep.subr.mxu0 0.0
      %3293 = vmatpush1.msra.mxu0 %v2481
      %3294 = vmatprep.subr.mxu0 0.0
      %3295 = vmatpush1.msra.mxu0 %v2478
      %3296 = vmatprep.subr.mxu0 0.0
      %3297 = vmatpush1.msra.mxu0 %v2475
      %3298 = vmatprep.subr.mxu0 0.0
      %3299 = vmatpush1.msra.mxu0 %v2472
      %3300 = vmatprep.subr.mxu0 0.0
      %3301 = vmatpush1.msra.mxu0 %v2469
      %3302 = vmatprep.subr.mxu0 0.0
      %3303 = vmatpush1.msra.mxu0 %v2466
      %3304 = vmatprep.subr.mxu0 0.0
      %3305 = vmatpush1.msra.mxu0 %v2463
      %3306 = vmatprep.subr.mxu0 0.0
      %3307 = vmatpush2.msra.mxu0 0.0
      %3308 = vmatprep.subr.mxu0 0.0
      %3309 = vmatpush2.msra.mxu0 0.0
      %3310 = vmatprep.subr.mxu0 0.0
      %3311 = vmatpush2.msra.mxu0 0.0
      %3312 = vmatprep.subr.mxu0 0.0
      %3313 = vmatpush2.msra.mxu0 0.0
      %3314 = vmatprep.subr.mxu0 0.0
      %3315 = vmatpush2.msra.mxu0 0.0
      %3316 = vmatprep.subr.mxu0 0.0
      %3317 = vmatpush2.msra.mxu0 0.0
      %3318 = vmatprep.subr.mxu0 0.0
      %3319 = vmatpush2.msra.mxu0 0.0
      %3320 = vmatprep.subr.mxu0 0.0
      %3321 = vmatpush2.msra.mxu0 0.0
      %3322 = vmatprep.subr.mxu0 0.0
      %3323 = vmatpush2.msra.mxu0 0.0
      %3324 = vmatprep.subr.mxu0 0.0
      %3325 = vmatpush2.msra.mxu0 0.0
      %3326 = vmatprep.subr.mxu0 0.0
      %3327 = vmatpush2.msra.mxu0 0.0
      %3328 = vmatprep.subr.mxu0 0.0
      %3329 = vmatpush2.msra.mxu0 0.0
      %3330 = vmatprep.subr.mxu0 0.0
      %3331 = vmatpush2.msra.mxu0 0.0
      %3332 = vmatprep.subr.mxu0 0.0
      %3333 = vmatpush2.msra.mxu0 0.0
      %3334 = vmatprep.subr.mxu0 0.0
      %3335 = vmatpush2.msra.mxu0 0.0
      %3336 = vmatprep.subr.mxu0 0.0
      %3337 = vmatpush2.msra.mxu0 0.0
      %3338 = vmatprep.mubr.f32.mxu0 0.0
      %3339 = vmatmul.mubr.f32.gmra.mxu0 %v3202
      %v3340 = vpop.f32.mrf.mxu0
      %v3341 = vadd.f32 0.0, %v3340
      %v3342 = vpop.f32.mrf.mxu0
      %3343 = vdwg.mxu0
      %v3344 = vld [vmem:[%s1040 + $0x48] sm:$0xff]
      %v3345 = vadd.f32 %v3344, %v3270
      %v3346 = vxor.u32 %v3345, 2147483648
      %v3347 = vmul.f32 %v3346, 1.442695
      %v3348 = vpow.pop %v3347
      %v3349 = vadd.f32 %v3348, 1.0
      %v3350 = vrcp.pop %v3349
      %v3351 = vmul.f32 1.0, %v3350
      %v3352 = vld [vmem:[%s1040 + $0x50] sm:$0xff]
      %v3353 = vadd.f32 %v3352, %v3272
      %v3354 = vxor.u32 %v3353, 2147483648
      %v3355 = vmul.f32 %v3354, 1.442695
      %v3356 = vpow.pop %v3355
      %v3357 = vadd.f32 %v3356, 1.0
      %v3358 = vrcp.pop %v3357
      %v3359 = vmul.f32 1.0, %v3358
      %v3360 = vld [vmem:[%s1040 + $0x58] sm:$0xff]
      %v3361 = vadd.f32 %v3341, %v2673
      %v3362 = vmul.f32 %v3351, %v3361
      %v3363 = vadd.f32 %v3360, %v3362
      %v3364 = vtanh.pop %v3363
      %v3365 = vsub.f32 1.0, %v3359
      %v3366 = vmul.f32 %v3365, %v3364
      %v3367 = vmul.f32 %v3359, %v3202
      %v3368 = vadd.f32 %v3366, %v3367
      %3369 = vst [vmem:[%s381 + $0x18] sm:$0xff] %v3368
      %v3370 = vmul.f32 %v2687, %v3368
      %v3371 = vmul.f32 %v2690, %v3202
      %v3372 = vadd.f32 %v3370, %v3371
      %3373 = vmatprep.subr.mxu0 %v2507
      %3374 = vmatpush1.msra.mxu0 %v2506
      %3375 = vmatprep.subr.mxu0 %v2504
      %3376 = vmatpush1.msra.mxu0 %v2503
      %3377 = vmatprep.subr.mxu0 %v2501
      %3378 = vmatpush1.msra.mxu0 %v2500
      %3379 = vmatprep.subr.mxu0 %v2498
      %3380 = vmatpush1.msra.mxu0 %v2497
      %3381 = vmatprep.subr.mxu0 %v2495
      %3382 = vmatpush1.msra.mxu0 %v2494
      %3383 = vmatprep.subr.mxu0 %v2492
      %3384 = vmatpush1.msra.mxu0 %v2491
      %3385 = vmatprep.subr.mxu0 %v2489
      %3386 = vmatpush1.msra.mxu0 %v2488
      %3387 = vmatprep.subr.mxu0 %v2486
      %3388 = vmatpush1.msra.mxu0 %v2485
      %3389 = vmatprep.subr.mxu0 %v2483
      %3390 = vmatpush1.msra.mxu0 %v2482
      %3391 = vmatprep.subr.mxu0 %v2480
      %3392 = vmatpush1.msra.mxu0 %v2479
      %3393 = vmatprep.subr.mxu0 %v2477
      %3394 = vmatpush1.msra.mxu0 %v2476
      %3395 = vmatprep.subr.mxu0 %v2474
      %3396 = vmatpush1.msra.mxu0 %v2473
      %3397 = vmatprep.subr.mxu0 %v2471
      %3398 = vmatpush1.msra.mxu0 %v2470
      %3399 = vmatprep.subr.mxu0 %v2468
      %3400 = vmatpush1.msra.mxu0 %v2467
      %3401 = vmatprep.subr.mxu0 %v2465
      %3402 = vmatpush1.msra.mxu0 %v2464
      %3403 = vmatprep.subr.mxu0 %v2462
      %3404 = vmatpush1.msra.mxu0 %v2461
      %3405 = vmatprep.subr.mxu0 0.0
      %3406 = vmatpush2.msra.mxu0 0.0
      %3407 = vmatprep.subr.mxu0 0.0
      %3408 = vmatpush2.msra.mxu0 0.0
      %3409 = vmatprep.subr.mxu0 0.0
      %3410 = vmatpush2.msra.mxu0 0.0
      %3411 = vmatprep.subr.mxu0 0.0
      %3412 = vmatpush2.msra.mxu0 0.0
      %3413 = vmatprep.subr.mxu0 0.0
      %3414 = vmatpush2.msra.mxu0 0.0
      %3415 = vmatprep.subr.mxu0 0.0
      %3416 = vmatpush2.msra.mxu0 0.0
      %3417 = vmatprep.subr.mxu0 0.0
      %3418 = vmatpush2.msra.mxu0 0.0
      %3419 = vmatprep.subr.mxu0 0.0
      %3420 = vmatpush2.msra.mxu0 0.0
      %3421 = vmatprep.subr.mxu0 0.0
      %3422 = vmatpush2.msra.mxu0 0.0
      %3423 = vmatprep.subr.mxu0 0.0
      %3424 = vmatpush2.msra.mxu0 0.0
      %3425 = vmatprep.subr.mxu0 0.0
      %3426 = vmatpush2.msra.mxu0 0.0
      %3427 = vmatprep.subr.mxu0 0.0
      %3428 = vmatpush2.msra.mxu0 0.0
      %3429 = vmatprep.subr.mxu0 0.0
      %3430 = vmatpush2.msra.mxu0 0.0
      %3431 = vmatprep.subr.mxu0 0.0
      %3432 = vmatpush2.msra.mxu0 0.0
      %3433 = vmatprep.subr.mxu0 0.0
      %3434 = vmatpush2.msra.mxu0 0.0
      %3435 = vmatprep.subr.mxu0 0.0
      %3436 = vmatpush2.msra.mxu0 0.0
      %3437 = vmatprep.mubr.f32.mxu0 0.0
      %3438 = vmatmul.mubr.f32.gmra.mxu0 %v3372
      %v3439 = vpop.f32.mrf.mxu0
      %v3440 = vadd.f32 0.0, %v3439
      %v3441 = vpop.f32.mrf.mxu0
      %v3442 = vadd.f32 0.0, %v3441
      %3443 = vdwg.mxu0
      %3444 = vmatprep.subr.mxu0 0.0
      %3445 = vmatpush1.msra.mxu0 %v2508
      %3446 = vmatprep.subr.mxu0 0.0
      %3447 = vmatpush1.msra.mxu0 %v2505
      %3448 = vmatprep.subr.mxu0 0.0
      %3449 = vmatpush1.msra.mxu0 %v2502
      %3450 = vmatprep.subr.mxu0 0.0
      %3451 = vmatpush1.msra.mxu0 %v2499
      %3452 = vmatprep.subr.mxu0 0.0
      %3453 = vmatpush1.msra.mxu0 %v2496
      %3454 = vmatprep.subr.mxu0 0.0
      %3455 = vmatpush1.msra.mxu0 %v2493
      %3456 = vmatprep.subr.mxu0 0.0
      %3457 = vmatpush1.msra.mxu0 %v2490
      %3458 = vmatprep.subr.mxu0 0.0
      %3459 = vmatpush1.msra.mxu0 %v2487
      %3460 = vmatprep.subr.mxu0 0.0
      %3461 = vmatpush1.msra.mxu0 %v2484
      %3462 = vmatprep.subr.mxu0 0.0
      %3463 = vmatpush1.msra.mxu0 %v2481
      %3464 = vmatprep.subr.mxu0 0.0
      %3465 = vmatpush1.msra.mxu0 %v2478
      %3466 = vmatprep.subr.mxu0 0.0
      %3467 = vmatpush1.msra.mxu0 %v2475
      %3468 = vmatprep.subr.mxu0 0.0
      %3469 = vmatpush1.msra.mxu0 %v2472
      %3470 = vmatprep.subr.mxu0 0.0
      %3471 = vmatpush1.msra.mxu0 %v2469
      %3472 = vmatprep.subr.mxu0 0.0
      %3473 = vmatpush1.msra.mxu0 %v2466
      %3474 = vmatprep.subr.mxu0 0.0
      %3475 = vmatpush1.msra.mxu0 %v2463
      %3476 = vmatprep.subr.mxu0 0.0
      %3477 = vmatpush2.msra.mxu0 0.0
      %3478 = vmatprep.subr.mxu0 0.0
      %3479 = vmatpush2.msra.mxu0 0.0
      %3480 = vmatprep.subr.mxu0 0.0
      %3481 = vmatpush2.msra.mxu0 0.0
      %3482 = vmatprep.subr.mxu0 0.0
      %3483 = vmatpush2.msra.mxu0 0.0
      %3484 = vmatprep.subr.mxu0 0.0
      %3485 = vmatpush2.msra.mxu0 0.0
      %3486 = vmatprep.subr.mxu0 0.0
      %3487 = vmatpush2.msra.mxu0 0.0
      %3488 = vmatprep.subr.mxu0 0.0
      %3489 = vmatpush2.msra.mxu0 0.0
      %3490 = vmatprep.subr.mxu0 0.0
      %3491 = vmatpush2.msra.mxu0 0.0
      %3492 = vmatprep.subr.mxu0 0.0
      %3493 = vmatpush2.msra.mxu0 0.0
      %3494 = vmatprep.subr.mxu0 0.0
      %3495 = vmatpush2.msra.mxu0 0.0
      %3496 = vmatprep.subr.mxu0 0.0
      %3497 = vmatpush2.msra.mxu0 0.0
      %3498 = vmatprep.subr.mxu0 0.0
      %3499 = vmatpush2.msra.mxu0 0.0
      %3500 = vmatprep.subr.mxu0 0.0
      %3501 = vmatpush2.msra.mxu0 0.0
      %3502 = vmatprep.subr.mxu0 0.0
      %3503 = vmatpush2.msra.mxu0 0.0
      %3504 = vmatprep.subr.mxu0 0.0
      %3505 = vmatpush2.msra.mxu0 0.0
      %3506 = vmatprep.subr.mxu0 0.0
      %3507 = vmatpush2.msra.mxu0 0.0
      %3508 = vmatprep.mubr.f32.mxu0 0.0
      %3509 = vmatmul.mubr.f32.gmra.mxu0 %v3372
      %v3510 = vpop.f32.mrf.mxu0
      %v3511 = vadd.f32 0.0, %v3510
      %v3512 = vpop.f32.mrf.mxu0
      %3513 = vdwg.mxu0
      %v3514 = vld [vmem:[%s1040 + $0x30] sm:$0xff]
      %v3515 = vadd.f32 %v3514, %v3440
      %v3516 = vxor.u32 %v3515, 2147483648
      %v3517 = vmul.f32 %v3516, 1.442695
      %v3518 = vpow.pop %v3517
      %v3519 = vadd.f32 %v3518, 1.0
      %v3520 = vrcp.pop %v3519
      %v3521 = vmul.f32 1.0, %v3520
      %v3522 = vld [vmem:[%s1040 + $0x38] sm:$0xff]
      %v3523 = vadd.f32 %v3522, %v3442
      %v3524 = vxor.u32 %v3523, 2147483648
      %v3525 = vmul.f32 %v3524, 1.442695
      %v3526 = vpow.pop %v3525
      %v3527 = vadd.f32 %v3526, 1.0
      %v3528 = vrcp.pop %v3527
      %v3529 = vmul.f32 1.0, %v3528
      %v3530 = vld [vmem:[%s1040 + $0x40] sm:$0xff]
      %v3531 = vadd.f32 %v3511, %v2673
      %v3532 = vmul.f32 %v3521, %v3531
      %v3533 = vadd.f32 %v3530, %v3532
      %v3534 = vtanh.pop %v3533
      %v3535 = vsub.f32 1.0, %v3529
      %v3536 = vmul.f32 %v3535, %v3534
      %v3537 = vmul.f32 %v3529, %v3372
      %v3538 = vadd.f32 %v3536, %v3537
      %3539 = vst [vmem:[%s381 + $0x10] sm:$0xff] %v3538
      %3540 = vmatprep.subr.mxu0 %v2507
      %3541 = vmatpush1.msra.mxu0 %v2506
      %3542 = vmatprep.subr.mxu0 %v2504
      %3543 = vmatpush1.msra.mxu0 %v2503
      %3544 = vmatprep.subr.mxu0 %v2501
      %3545 = vmatpush1.msra.mxu0 %v2500
      %3546 = vmatprep.subr.mxu0 %v2498
      %3547 = vmatpush1.msra.mxu0 %v2497
      %3548 = vmatprep.subr.mxu0 %v2495
      %3549 = vmatpush1.msra.mxu0 %v2494
      %3550 = vmatprep.subr.mxu0 %v2492
      %3551 = vmatpush1.msra.mxu0 %v2491
      %3552 = vmatprep.subr.mxu0 %v2489
      %3553 = vmatpush1.msra.mxu0 %v2488
      %3554 = vmatprep.subr.mxu0 %v2486
      %3555 = vmatpush1.msra.mxu0 %v2485
      %3556 = vmatprep.subr.mxu0 %v2483
      %3557 = vmatpush1.msra.mxu0 %v2482
      %3558 = vmatprep.subr.mxu0 %v2480
      %3559 = vmatpush1.msra.mxu0 %v2479
      %3560 = vmatprep.subr.mxu0 %v2477
      %3561 = vmatpush1.msra.mxu0 %v2476
      %3562 = vmatprep.subr.mxu0 %v2474
      %3563 = vmatpush1.msra.mxu0 %v2473
      %3564 = vmatprep.subr.mxu0 %v2471
      %3565 = vmatpush1.msra.mxu0 %v2470
      %3566 = vmatprep.subr.mxu0 %v2468
      %3567 = vmatpush1.msra.mxu0 %v2467
      %3568 = vmatprep.subr.mxu0 %v2465
      %3569 = vmatpush1.msra.mxu0 %v2464
      %3570 = vmatprep.subr.mxu0 %v2462
      %3571 = vmatpush1.msra.mxu0 %v2461
      %3572 = vmatprep.subr.mxu0 0.0
      %3573 = vmatpush2.msra.mxu0 0.0
      %3574 = vmatprep.subr.mxu0 0.0
      %3575 = vmatpush2.msra.mxu0 0.0
      %3576 = vmatprep.subr.mxu0 0.0
      %3577 = vmatpush2.msra.mxu0 0.0
      %3578 = vmatprep.subr.mxu0 0.0
      %3579 = vmatpush2.msra.mxu0 0.0
      %3580 = vmatprep.subr.mxu0 0.0
      %3581 = vmatpush2.msra.mxu0 0.0
      %3582 = vmatprep.subr.mxu0 0.0
      %3583 = vmatpush2.msra.mxu0 0.0
      %3584 = vmatprep.subr.mxu0 0.0
      %3585 = vmatpush2.msra.mxu0 0.0
      %3586 = vmatprep.subr.mxu0 0.0
      %3587 = vmatpush2.msra.mxu0 0.0
      %3588 = vmatprep.subr.mxu0 0.0
      %3589 = vmatpush2.msra.mxu0 0.0
      %3590 = vmatprep.subr.mxu0 0.0
      %3591 = vmatpush2.msra.mxu0 0.0
      %3592 = vmatprep.subr.mxu0 0.0
      %3593 = vmatpush2.msra.mxu0 0.0
      %3594 = vmatprep.subr.mxu0 0.0
      %3595 = vmatpush2.msra.mxu0 0.0
      %3596 = vmatprep.subr.mxu0 0.0
      %3597 = vmatpush2.msra.mxu0 0.0
      %3598 = vmatprep.subr.mxu0 0.0
      %3599 = vmatpush2.msra.mxu0 0.0
      %3600 = vmatprep.subr.mxu0 0.0
      %3601 = vmatpush2.msra.mxu0 0.0
      %3602 = vmatprep.subr.mxu0 0.0
      %3603 = vmatpush2.msra.mxu0 0.0
      %3604 = vmatprep.mubr.f32.mxu0 0.0
      %3605 = vmatmul.mubr.f32.gmra.mxu0 %v3538
      %v3606 = vpop.f32.mrf.mxu0
      %v3607 = vadd.f32 0.0, %v3606
      %v3608 = vpop.f32.mrf.mxu0
      %v3609 = vadd.f32 0.0, %v3608
      %3610 = vdwg.mxu0
      %3611 = vmatprep.subr.mxu0 0.0
      %3612 = vmatpush1.msra.mxu0 %v2508
      %3613 = vmatprep.subr.mxu0 0.0
      %3614 = vmatpush1.msra.mxu0 %v2505
      %3615 = vmatprep.subr.mxu0 0.0
      %3616 = vmatpush1.msra.mxu0 %v2502
      %3617 = vmatprep.subr.mxu0 0.0
      %3618 = vmatpush1.msra.mxu0 %v2499
      %3619 = vmatprep.subr.mxu0 0.0
      %3620 = vmatpush1.msra.mxu0 %v2496
      %3621 = vmatprep.subr.mxu0 0.0
      %3622 = vmatpush1.msra.mxu0 %v2493
      %3623 = vmatprep.subr.mxu0 0.0
      %3624 = vmatpush1.msra.mxu0 %v2490
      %3625 = vmatprep.subr.mxu0 0.0
      %3626 = vmatpush1.msra.mxu0 %v2487
      %3627 = vmatprep.subr.mxu0 0.0
      %3628 = vmatpush1.msra.mxu0 %v2484
      %3629 = vmatprep.subr.mxu0 0.0
      %3630 = vmatpush1.msra.mxu0 %v2481
      %3631 = vmatprep.subr.mxu0 0.0
      %3632 = vmatpush1.msra.mxu0 %v2478
      %3633 = vmatprep.subr.mxu0 0.0
      %3634 = vmatpush1.msra.mxu0 %v2475
      %3635 = vmatprep.subr.mxu0 0.0
      %3636 = vmatpush1.msra.mxu0 %v2472
      %3637 = vmatprep.subr.mxu0 0.0
      %3638 = vmatpush1.msra.mxu0 %v2469
      %3639 = vmatprep.subr.mxu0 0.0
      %3640 = vmatpush1.msra.mxu0 %v2466
      %3641 = vmatprep.subr.mxu0 0.0
      %3642 = vmatpush1.msra.mxu0 %v2463
      %3643 = vmatprep.subr.mxu0 0.0
      %3644 = vmatpush2.msra.mxu0 0.0
      %3645 = vmatprep.subr.mxu0 0.0
      %3646 = vmatpush2.msra.mxu0 0.0
      %3647 = vmatprep.subr.mxu0 0.0
      %3648 = vmatpush2.msra.mxu0 0.0
      %3649 = vmatprep.subr.mxu0 0.0
      %3650 = vmatpush2.msra.mxu0 0.0
      %3651 = vmatprep.subr.mxu0 0.0
      %3652 = vmatpush2.msra.mxu0 0.0
      %3653 = vmatprep.subr.mxu0 0.0
      %3654 = vmatpush2.msra.mxu0 0.0
      %3655 = vmatprep.subr.mxu0 0.0
      %3656 = vmatpush2.msra.mxu0 0.0
      %3657 = vmatprep.subr.mxu0 0.0
      %3658 = vmatpush2.msra.mxu0 0.0
      %3659 = vmatprep.subr.mxu0 0.0
      %3660 = vmatpush2.msra.mxu0 0.0
      %3661 = vmatprep.subr.mxu0 0.0
      %3662 = vmatpush2.msra.mxu0 0.0
      %3663 = vmatprep.subr.mxu0 0.0
      %3664 = vmatpush2.msra.mxu0 0.0
      %3665 = vmatprep.subr.mxu0 0.0
      %3666 = vmatpush2.msra.mxu0 0.0
      %3667 = vmatprep.subr.mxu0 0.0
      %3668 = vmatpush2.msra.mxu0 0.0
      %3669 = vmatprep.subr.mxu0 0.0
      %3670 = vmatpush2.msra.mxu0 0.0
      %3671 = vmatprep.subr.mxu0 0.0
      %3672 = vmatpush2.msra.mxu0 0.0
      %3673 = vmatprep.subr.mxu0 0.0
      %3674 = vmatpush2.msra.mxu0 0.0
      %3675 = vmatprep.mubr.f32.mxu0 0.0
      %3676 = vmatmul.mubr.f32.gmra.mxu0 %v3538
      %v3677 = vpop.f32.mrf.mxu0
      %v3678 = vadd.f32 0.0, %v3677
      %v3679 = vpop.f32.mrf.mxu0
      %3680 = vdwg.mxu0
      %v3681 = vld [vmem:[%s1040 + $0x18] sm:$0xff]
      %v3682 = vadd.f32 %v3681, %v3607
      %v3683 = vxor.u32 %v3682, 2147483648
      %v3684 = vmul.f32 %v3683, 1.442695
      %v3685 = vpow.pop %v3684
      %v3686 = vadd.f32 %v3685, 1.0
      %v3687 = vrcp.pop %v3686
      %v3688 = vmul.f32 1.0, %v3687
      %v3689 = vld [vmem:[%s1040 + $0x20] sm:$0xff]
      %v3690 = vadd.f32 %v3689, %v3609
      %v3691 = vxor.u32 %v3690, 2147483648
      %v3692 = vmul.f32 %v3691, 1.442695
      %v3693 = vpow.pop %v3692
      %v3694 = vadd.f32 %v3693, 1.0
      %v3695 = vrcp.pop %v3694
      %v3696 = vmul.f32 1.0, %v3695
      %v3697 = vld [vmem:[%s1040 + $0x28] sm:$0xff]
      %v3698 = vadd.f32 %v3678, %v2673
      %v3699 = vmul.f32 %v3688, %v3698
      %v3700 = vadd.f32 %v3697, %v3699
      %v3701 = vtanh.pop %v3700
      %v3702 = vsub.f32 1.0, %v3696
      %v3703 = vmul.f32 %v3702, %v3701
      %v3704 = vmul.f32 %v3696, %v3538
      %v3705 = vadd.f32 %v3703, %v3704
      %3706 = vst [vmem:[%s381 + $0x8] sm:$0xff] %v3705
      %3707 = vmatprep.subr.mxu0 %v2507
      %3708 = vmatpush1.msra.mxu0 %v2506
      %3709 = vmatprep.subr.mxu0 %v2504
      %3710 = vmatpush1.msra.mxu0 %v2503
      %3711 = vmatprep.subr.mxu0 %v2501
      %3712 = vmatpush1.msra.mxu0 %v2500
      %3713 = vmatprep.subr.mxu0 %v2498
      %3714 = vmatpush1.msra.mxu0 %v2497
      %3715 = vmatprep.subr.mxu0 %v2495
      %3716 = vmatpush1.msra.mxu0 %v2494
      %3717 = vmatprep.subr.mxu0 %v2492
      %3718 = vmatpush1.msra.mxu0 %v2491
      %3719 = vmatprep.subr.mxu0 %v2489
      %3720 = vmatpush1.msra.mxu0 %v2488
      %3721 = vmatprep.subr.mxu0 %v2486
      %3722 = vmatpush1.msra.mxu0 %v2485
      %3723 = vmatprep.subr.mxu0 %v2483
      %3724 = vmatpush1.msra.mxu0 %v2482
      %3725 = vmatprep.subr.mxu0 %v2480
      %3726 = vmatpush1.msra.mxu0 %v2479
      %3727 = vmatprep.subr.mxu0 %v2477
      %3728 = vmatpush1.msra.mxu0 %v2476
      %3729 = vmatprep.subr.mxu0 %v2474
      %3730 = vmatpush1.msra.mxu0 %v2473
      %3731 = vmatprep.subr.mxu0 %v2471
      %3732 = vmatpush1.msra.mxu0 %v2470
      %3733 = vmatprep.subr.mxu0 %v2468
      %3734 = vmatpush1.msra.mxu0 %v2467
      %3735 = vmatprep.subr.mxu0 %v2465
      %3736 = vmatpush1.msra.mxu0 %v2464
      %3737 = vmatprep.subr.mxu0 %v2462
      %3738 = vmatpush1.msra.mxu0 %v2461
      %3739 = vmatprep.subr.mxu0 0.0
      %3740 = vmatpush2.msra.mxu0 0.0
      %3741 = vmatprep.subr.mxu0 0.0
      %3742 = vmatpush2.msra.mxu0 0.0
      %3743 = vmatprep.subr.mxu0 0.0
      %3744 = vmatpush2.msra.mxu0 0.0
      %3745 = vmatprep.subr.mxu0 0.0
      %3746 = vmatpush2.msra.mxu0 0.0
      %3747 = vmatprep.subr.mxu0 0.0
      %3748 = vmatpush2.msra.mxu0 0.0
      %3749 = vmatprep.subr.mxu0 0.0
      %3750 = vmatpush2.msra.mxu0 0.0
      %3751 = vmatprep.subr.mxu0 0.0
      %3752 = vmatpush2.msra.mxu0 0.0
      %3753 = vmatprep.subr.mxu0 0.0
      %3754 = vmatpush2.msra.mxu0 0.0
      %3755 = vmatprep.subr.mxu0 0.0
      %3756 = vmatpush2.msra.mxu0 0.0
      %3757 = vmatprep.subr.mxu0 0.0
      %3758 = vmatpush2.msra.mxu0 0.0
      %3759 = vmatprep.subr.mxu0 0.0
      %3760 = vmatpush2.msra.mxu0 0.0
      %3761 = vmatprep.subr.mxu0 0.0
      %3762 = vmatpush2.msra.mxu0 0.0
      %3763 = vmatprep.subr.mxu0 0.0
      %3764 = vmatpush2.msra.mxu0 0.0
      %3765 = vmatprep.subr.mxu0 0.0
      %3766 = vmatpush2.msra.mxu0 0.0
      %3767 = vmatprep.subr.mxu0 0.0
      %3768 = vmatpush2.msra.mxu0 0.0
      %3769 = vmatprep.subr.mxu0 0.0
      %3770 = vmatpush2.msra.mxu0 0.0
      %3771 = vmatprep.mubr.f32.mxu0 0.0
      %3772 = vmatmul.mubr.f32.gmra.mxu0 %v3705
      %v3773 = vpop.f32.mrf.mxu0
      %v3774 = vadd.f32 0.0, %v3773
      %v3775 = vpop.f32.mrf.mxu0
      %v3776 = vadd.f32 0.0, %v3775
      %3777 = vdwg.mxu0
      %3778 = vmatprep.subr.mxu0 0.0
      %3779 = vmatpush1.msra.mxu0 %v2508
      %3780 = vmatprep.subr.mxu0 0.0
      %3781 = vmatpush1.msra.mxu0 %v2505
      %3782 = vmatprep.subr.mxu0 0.0
      %3783 = vmatpush1.msra.mxu0 %v2502
      %3784 = vmatprep.subr.mxu0 0.0
      %3785 = vmatpush1.msra.mxu0 %v2499
      %3786 = vmatprep.subr.mxu0 0.0
      %3787 = vmatpush1.msra.mxu0 %v2496
      %3788 = vmatprep.subr.mxu0 0.0
      %3789 = vmatpush1.msra.mxu0 %v2493
      %3790 = vmatprep.subr.mxu0 0.0
      %3791 = vmatpush1.msra.mxu0 %v2490
      %3792 = vmatprep.subr.mxu0 0.0
      %3793 = vmatpush1.msra.mxu0 %v2487
      %3794 = vmatprep.subr.mxu0 0.0
      %3795 = vmatpush1.msra.mxu0 %v2484
      %3796 = vmatprep.subr.mxu0 0.0
      %3797 = vmatpush1.msra.mxu0 %v2481
      %3798 = vmatprep.subr.mxu0 0.0
      %3799 = vmatpush1.msra.mxu0 %v2478
      %3800 = vmatprep.subr.mxu0 0.0
      %3801 = vmatpush1.msra.mxu0 %v2475
      %3802 = vmatprep.subr.mxu0 0.0
      %3803 = vmatpush1.msra.mxu0 %v2472
      %3804 = vmatprep.subr.mxu0 0.0
      %3805 = vmatpush1.msra.mxu0 %v2469
      %3806 = vmatprep.subr.mxu0 0.0
      %3807 = vmatpush1.msra.mxu0 %v2466
      %3808 = vmatprep.subr.mxu0 0.0
      %3809 = vmatpush1.msra.mxu0 %v2463
      %3810 = vmatprep.subr.mxu0 0.0
      %3811 = vmatpush2.msra.mxu0 0.0
      %3812 = vmatprep.subr.mxu0 0.0
      %3813 = vmatpush2.msra.mxu0 0.0
      %3814 = vmatprep.subr.mxu0 0.0
      %3815 = vmatpush2.msra.mxu0 0.0
      %3816 = vmatprep.subr.mxu0 0.0
      %3817 = vmatpush2.msra.mxu0 0.0
      %3818 = vmatprep.subr.mxu0 0.0
      %3819 = vmatpush2.msra.mxu0 0.0
      %3820 = vmatprep.subr.mxu0 0.0
      %3821 = vmatpush2.msra.mxu0 0.0
      %3822 = vmatprep.subr.mxu0 0.0
      %3823 = vmatpush2.msra.mxu0 0.0
      %3824 = vmatprep.subr.mxu0 0.0
      %3825 = vmatpush2.msra.mxu0 0.0
      %3826 = vmatprep.subr.mxu0 0.0
      %3827 = vmatpush2.msra.mxu0 0.0
      %3828 = vmatprep.subr.mxu0 0.0
      %3829 = vmatpush2.msra.mxu0 0.0
      %3830 = vmatprep.subr.mxu0 0.0
      %3831 = vmatpush2.msra.mxu0 0.0
      %3832 = vmatprep.subr.mxu0 0.0
      %3833 = vmatpush2.msra.mxu0 0.0
      %3834 = vmatprep.subr.mxu0 0.0
      %3835 = vmatpush2.msra.mxu0 0.0
      %3836 = vmatprep.subr.mxu0 0.0
      %3837 = vmatpush2.msra.mxu0 0.0
      %3838 = vmatprep.subr.mxu0 0.0
      %3839 = vmatpush2.msra.mxu0 0.0
      %3840 = vmatprep.subr.mxu0 0.0
      %3841 = vmatpush2.msra.mxu0 0.0
      %3842 = vmatprep.mubr.f32.mxu0 0.0
      %3843 = vmatmul.mubr.f32.gmra.mxu0 %v3705
      %v3844 = vpop.f32.mrf.mxu0
      %v3845 = vadd.f32 0.0, %v3844
      %v3846 = vpop.f32.mrf.mxu0
      %3847 = vdwg.mxu0
      %v3848 = vld [vmem:[%s1040] sm:$0xff]
      %v3849 = vadd.f32 %v3848, %v3774
      %v3850 = vxor.u32 %v3849, 2147483648
      %v3851 = vmul.f32 %v3850, 1.442695
      %v3852 = vpow.pop %v3851
      %v3853 = vadd.f32 %v3852, 1.0
      %v3854 = vrcp.pop %v3853
      %v3855 = vmul.f32 1.0, %v3854
      %v3856 = vld [vmem:[%s1040 + $0x8] sm:$0xff]
      %v3857 = vadd.f32 %v3856, %v3776
      %v3858 = vxor.u32 %v3857, 2147483648
      %v3859 = vmul.f32 %v3858, 1.442695
      %v3860 = vpow.pop %v3859
      %v3861 = vadd.f32 %v3860, 1.0
      %v3862 = vrcp.pop %v3861
      %v3863 = vmul.f32 1.0, %v3862
      %v3864 = vld [vmem:[%s1040 + $0x10] sm:$0xff]
      %v3865 = vadd.f32 %v3845, %v2673
      %v3866 = vmul.f32 %v3855, %v3865
      %v3867 = vadd.f32 %v3864, %v3866
      %v3868 = vtanh.pop %v3867
      %v3869 = vsub.f32 1.0, %v3863
      %v3870 = vmul.f32 %v3869, %v3868
      %v3871 = vmul.f32 %v3863, %v3705
      %v3872 = vadd.f32 %v3870, %v3871
      %3873 = vst [vmem:[%s381] sm:$0xff] %v3872
      %3874 = vst [vmem:[%s2458] sm:$0xff] %v3872
      %s3875 = smul.u32 8, %s21
      %p3876 = scmp.lt.s32.totalorder %s3875, 15
      %s3877 = scalar_select %p3876, %s3875, 15
      %s3878 = smul.addr %s3877, 8
      %s3879 = scalar_lea.vmem %s8, %s3878
      %s3880 = ssub.s32 1, %s21
      %s3881 = smul.u32 8, %s3880
      %p3882 = scmp.lt.s32.totalorder %s3881, 15
      %s3883 = scalar_select %p3882, %s3881, 15
      %s3884 = smul.addr %s3883, 8
      %s3885 = scalar_lea.vmem %s9, %s3884
      // Predicated region
      $region57: #{_lambda_.1} parent=51 // pred_check
        %p3886 = pneg %p219
      $region58: #{_lambda_.1} parent=51 // pred_check_branch
        %3888 = sbr.rel (%p3886) target = $region60
      $region59: #{_lambda_.1} parent=51 // pred_region
        %s3889 = smul.u32 8, %s21
      $region60: #{_lambda_.1} parent=51 // pred_fallthru
        _
      // Predicated region
      $region61: #{_lambda_.1} parent=51 // pred_check
        %p3890 = pneg %p247
      $region62: #{_lambda_.1} parent=51 // pred_check_branch
        %3892 = sbr.rel (%p3890) target = $region64
      $region63: #{_lambda_.1} parent=51 // pred_region
        %s3893 = ssub.s32 1, %s21
        %s3894 = smul.u32 8, %s3893
      $region64: #{_lambda_.1} parent=51 // pred_fallthru
        _
    $region52: #{_lambda_.1} parent=5 // pred_fallthru
      _
    %p3895 = scmp.le.s32.totalorder 2, %s16
    // Predicated region
    $region65: #{_lambda_.1} parent=5 // pred_check
      %p3896 = pneg %p3895
    $region66: #{_lambda_.1} parent=5 // pred_check_branch
      %3898 = sbr.rel (%p3896) target = $region68
    $region67: #{_lambda_.1} parent=5 // pred_region
      %s3899 = ssub.s32 %s16, 2
      // Predicated region
      $region69: #{_lambda_.1} parent=67 // pred_check
        %p3900 = pneg %p225
      $region70: #{_lambda_.1} parent=67 // pred_check_branch
        %3902 = sbr.rel (%p3900) target = $region72
      $region71: #{_lambda_.1} parent=67 // pred_region
        %s3903 = smul.u32 8, %s22
        %p3904 = scmp.lt.s32.totalorder %s3903, 15
        %s3905 = scalar_select %p3904, %s3903, 15
        %s3906 = smul.addr %s3905, 8
        %s3907 = scalar_lea.vmem %s8, %s3906
      $region72: #{_lambda_.1} parent=67 // pred_fallthru
        _
      // Predicated region
      $region73: #{_lambda_.1} parent=67 // pred_check
        %p3908 = pneg %p253
      $region74: #{_lambda_.1} parent=67 // pred_check_branch
        %3910 = sbr.rel (%p3908) target = $region76
      $region75: #{_lambda_.1} parent=67 // pred_region
        %s3911 = ssub.s32 1, %s22
        %s3912 = smul.u32 8, %s3911
        %p3913 = scmp.lt.s32.totalorder %s3912, 15
        %s3914 = scalar_select %p3913, %s3912, 15
        %s3915 = smul.addr %s3914, 8
        %s3916 = scalar_lea.vmem %s9, %s3915
      $region76: #{_lambda_.1} parent=67 // pred_fallthru
        _
    $region68: #{_lambda_.1} parent=5 // pred_fallthru
      _
  $region6: #{_lambda_.1} parent=0 // loop_footer
    %s20 = sadd.s32 1, %s16
  $region7: #{_lambda_.1} parent=0 // loop_footer_branch
    %15 = sbr.rel target = $region3
  $region8: #{_lambda_.1} parent=0 // loop_exit
    _

</llo_original>
